<compile_context>
chip_gen: v7x
topology: tpu7x:2x2x1
jax: 0.10.0
libtpu: 0.0.40
codegen_flags: <defaults>
</compile_context>

<pallas_src>
import jax
import jax.numpy as jnp
import numpy as np
from jax import lax
from jax.experimental import pallas as pl
from jax.experimental.pallas import tpu as pltpu


_VMEM = pl.BlockSpec(memory_space=pltpu.MemorySpace.VMEM)


# ------------------------------------------------------------------ kernel --

def _build_vae_kernel(num_layers, W, B, H, L, Din):
    """Fused forward kernel. All sequence tensors are flat time-major:
    row index = t * B + b. Weights are pre-transposed: w_ih (Din,4H),
    w_hh (H,4H), bias (1,4H); gate order [i, f, g, o] (PyTorch)."""

    def kernel(*refs):
        it = iter(refs)
        x_ref = next(it)          # (W*B, Din)
        eps_ref = next(it)        # (W*B, L)
        enc_layers = [(next(it), next(it), next(it)) for _ in range(num_layers)]
        enc_wh_ref = next(it)     # (H, 2L)  = [w_mu | w_logvar]
        enc_bh_ref = next(it)     # (1, 2L)
        dec_layers = [(next(it), next(it), next(it)) for _ in range(num_layers)]
        dec_wh_ref = next(it)     # (H, 2)   = [w_mu | w_logvar]
        dec_bh_ref = next(it)     # (1, 2)
        z_ref = next(it)          # out: (W*B, L)
        dec_ref = next(it)        # out: (W*B, 2) = [mu | tanh(logvar)]
        seq_sc = next(it)         # scratch: (W*B, H)

        def run_layer(full_in, wih_ref, whh_ref, b_ref):
            # Hoisted input projection: one big MXU matmul over all timesteps,
            # bias broadcast added once (outside the recurrence).
            gx = (jnp.dot(full_in, wih_ref[...],
                          preferred_element_type=jnp.float32) + b_ref[...])
            whh = whh_ref[...]
            h = jnp.zeros((B, H), jnp.float32)
            c = jnp.zeros((B, H), jnp.float32)
            # Fully unrolled time loop: only h @ W_hh on the serial path.
            for t in range(W):
                gates = gx[t * B:(t + 1) * B, :] + jnp.dot(
                    h, whh, preferred_element_type=jnp.float32)   # (B, 4H)
                sig = jax.nn.sigmoid(gates)   # one full-vreg EUP pass
                th = jnp.tanh(gates)          # one full-vreg EUP pass
                c = sig[:, H:2 * H] * c + sig[:, 0:H] * th[:, 2 * H:3 * H]
                h = sig[:, 3 * H:4 * H] * jnp.tanh(c)
                seq_sc[t * B:(t + 1) * B, :] = h

        def run_stack(full_in, layers):
            cur = full_in
            for (wih, whh, b) in layers:
                run_layer(cur, wih, whh, b)
                cur = seq_sc[...]             # (W*B, H) output of this layer
            return cur

        # ---------------- encoder + reparameterization ----------------
        hs = run_stack(x_ref[...], enc_layers)                         # (W*B, H)
        head = (jnp.dot(hs, enc_wh_ref[...],
                        preferred_element_type=jnp.float32) + enc_bh_ref[...])
        mu = head[:, 0:L]
        logvar = head[:, L:2 * L]
        z = mu + jnp.exp(logvar * 0.5) * eps_ref[...]
        z_ref[...] = z

        # ---------------- decoder ----------------
        hs_d = run_stack(z, dec_layers)                                # (W*B, H)
        head_d = (jnp.dot(hs_d, dec_wh_ref[...],
                          preferred_element_type=jnp.float32) + dec_bh_ref[...])
        # Apply tanh only to the logvar column (col 1) via a full-vreg select.
        col = lax.broadcasted_iota(jnp.int32, head_d.shape, 1)
        dec_ref[...] = jnp.where(col == 1, jnp.tanh(head_d), head_d)

    return kernel


# ----------------------------------------------------------------- wrapper --

def lstm_vae_forward(params, x, eps):
    """x: (B, W, input_size); eps: (B, W, latent) reparameterization noise.
    Returns (z, mu, logvar) with shapes (B,W,L), (B,W,1), (B,W,1)."""
    B, W, Din = x.shape
    H = params["enc_lstm"][0]["w_hh_t"].shape[0]
    L = params["enc_head_w"].shape[1] // 2
    num_layers = len(params["enc_lstm"])

    # Pad batch to a multiple of 8 so the (B, .) rows fill f32 sublanes.
    B_pad = max(8, ((B + 7) // 8) * 8)

    x_tm = jnp.transpose(x, (1, 0, 2))       # (W, B, Din)
    eps_tm = jnp.transpose(eps, (1, 0, 2))   # (W, B, L)
    if B_pad != B:
        pad = ((0, 0), (0, B_pad - B), (0, 0))
        x_tm = jnp.pad(x_tm, pad)
        eps_tm = jnp.pad(eps_tm, pad)
    n = W * B_pad
    x2d = x_tm.reshape(n, Din)
    eps2d = eps_tm.reshape(n, L)

    args = [x2d, eps2d]
    for lp in params["enc_lstm"]:
        args += [lp["w_ih_t"], lp["w_hh_t"], lp["b"]]
    args += [params["enc_head_w"], params["enc_head_b"]]
    for lp in params["dec_lstm"]:
        args += [lp["w_ih_t"], lp["w_hh_t"], lp["b"]]
    args += [params["dec_head_w"], params["dec_head_b"]]

    kernel = _build_vae_kernel(num_layers, W, B_pad, H, L, Din)

    # Advisory cost estimate for the XLA scheduler.
    layer_flops = 0
    for stack in (params["enc_lstm"], params["dec_lstm"]):
        for lp in stack:
            din_l = lp["w_ih_t"].shape[0]
            layer_flops += 2 * n * din_l * 4 * H + 2 * n * H * 4 * H
    head_flops = 2 * n * H * (2 * L) + 2 * n * H * 2
    trans = 2 * num_layers * n * (2 * 4 * H + H) + n * L + n
    bytes_acc = 4 * sum(int(np.prod(a.shape)) for a in args) + 4 * (n * L + n * 2)

    z2d, dec2d = pl.pallas_call(
        kernel,
        out_shape=(
            jax.ShapeDtypeStruct((n, L), jnp.float32),
            jax.ShapeDtypeStruct((n, 2), jnp.float32),
        ),
        in_specs=[_VMEM] * len(args),
        out_specs=(_VMEM, _VMEM),
        scratch_shapes=[pltpu.VMEM((n, H), jnp.float32)],
        cost_estimate=pl.CostEstimate(
            flops=int(layer_flops + head_flops),
            transcendentals=int(trans),
            bytes_accessed=int(bytes_acc)),
    )(*args)

    z = jnp.transpose(z2d.reshape(W, B_pad, L)[:, :B, :], (1, 0, 2))     # (B,W,L)
    dec = jnp.transpose(dec2d.reshape(W, B_pad, 2)[:, :B, :], (1, 0, 2))  # (B,W,2)
    return z, dec[..., 0:1], dec[..., 1:2]


# -------------------------------------------------------------- param init --

def _uniform(key, shape, k):
    return jax.random.uniform(key, shape, jnp.float32, minval=-k, maxval=k)


def init_lstm_params(key, num_layers, input_size, hidden):
    k = 1.0 / np.sqrt(hidden)
    layers = []
    for layer in range(num_layers):
        din = input_size if layer == 0 else hidden
        key, k1, k2, k3, k4 = jax.random.split(key, 5)
        w_ih = _uniform(k1, (4 * hidden, din), k)       # PyTorch layout
        w_hh = _uniform(k2, (4 * hidden, hidden), k)
        b_ih = _uniform(k3, (4 * hidden,), k)
        b_hh = _uniform(k4, (4 * hidden,), k)
        layers.append({
            "w_ih_t": w_ih.T,                            # (din, 4H)
            "w_hh_t": w_hh.T,                            # (H, 4H)
            "b": (b_ih + b_hh).reshape(1, 4 * hidden),   # (1, 4H)
        })
    return layers, key


def init_linear(key, din, dout):
    k = 1.0 / np.sqrt(din)
    key, k1, k2 = jax.random.split(key, 3)
    w = _uniform(k1, (dout, din), k)        # PyTorch layout
    b = _uniform(k2, (dout,), k)
    return w.T, b.reshape(1, dout), key     # (din, dout), (1, dout)


def init_params(key, lstm_layers, hidden, latent, input_size):
    enc_lstm, key = init_lstm_params(key, lstm_layers, input_size, hidden)
    enc_wmu, enc_bmu, key = init_linear(key, hidden, latent)
    enc_wlv, enc_blv, key = init_linear(key, hidden, latent)
    dec_lstm, key = init_lstm_params(key, lstm_layers, latent, hidden)
    dec_wmu, dec_bmu, key = init_linear(key, hidden, 1)
    dec_wlv, dec_blv, key = init_linear(key, hidden, 1)
    return {
        "enc_lstm": enc_lstm,
        "enc_head_w": jnp.concatenate([enc_wmu, enc_wlv], axis=1),   # (H, 2L)
        "enc_head_b": jnp.concatenate([enc_bmu, enc_blv], axis=1),   # (1, 2L)
        "dec_lstm": dec_lstm,
        "dec_head_w": jnp.concatenate([dec_wmu, dec_wlv], axis=1),   # (H, 2)
        "dec_head_b": jnp.concatenate([dec_bmu, dec_blv], axis=1),   # (1, 2)
    }


# --------------------------------------------------------------- reference --

def _ref_lstm_stack(x, layers):
    B, W, _ = x.shape
    for lp in layers:
        H = lp["w_hh_t"].shape[0]
        h = jnp.zeros((B, H), jnp.float32)
        c = jnp.zeros((B, H), jnp.float32)
        outs = []
        for t in range(W):
            gates = x[:, t, :] @ lp["w_ih_t"] + h @ lp["w_hh_t"] + lp["b"]
            i_g = jax.nn.sigmoid(gates[:, 0 * H:1 * H])
            f_g = jax.nn.sigmoid(gates[:, 1 * H:2 * H])
            g_g = jnp.tanh(gates[:, 2 * H:3 * H])
            o_g = jax.nn.sigmoid(gates[:, 3 * H:4 * H])
            c = f_g * c + i_g * g_g
            h = o_g * jnp.tanh(c)
            outs.append(h)
        x = jnp.stack(outs, axis=1)
    return x


def _ref_forward(params, x, eps):
    B, W, _ = x.shape
    H = params["enc_lstm"][0]["w_hh_t"].shape[0]
    L = params["enc_head_w"].shape[1] // 2
    hs = _ref_lstm_stack(x, params["enc_lstm"]).reshape(B * W, H)
    head = hs @ params["enc_head_w"] + params["enc_head_b"]
    mu, lv = head[:, :L], head[:, L:]
    z = (mu + jnp.exp(lv * 0.5) * eps.reshape(B * W, L)).reshape(B, W, L)
    hs_d = _ref_lstm_stack(z, params["dec_lstm"]).reshape(B * W, H)
    head_d = hs_d @ params["dec_head_w"] + params["dec_head_b"]
    d_mu = head_d[:, 0:1]
    d_lv = jnp.tanh(head_d[:, 1:2])
    return z, d_mu.reshape(B, W, 1), d_lv.reshape(B, W, 1)


# -------------------------------------------------------------------- main --

if __name__ == "__main__":
    # Shapes consistent with the module: after convert_x the input is
    # (batch, window_size, 1).
    batch, window_size, lstm_layers = 2, 8, 2
    rnn_hidden_size, latent_size, input_size = 32, 8, 1

    key = jax.random.PRNGKey(0)
    key, pkey, xkey, ekey = jax.random.split(key, 4)
    params = init_params(pkey, lstm_layers, rnn_hidden_size, latent_size,
                         input_size)
    x = jax.random.normal(xkey, (batch, window_size, input_size), jnp.float32)
    # Reparameterization noise (torch.randn in the module) drawn host-side.
    eps = jax.random.normal(ekey, (batch, window_size, latent_size),
                            jnp.float32)

    fwd = jax.jit(lstm_vae_forward)
    z, mu, logvar = fwd(params, x, eps)
    jax.block_until_ready((z, mu, logvar))

    # Correctness check against a pure-JAX reference.
    z_r, mu_r, lv_r = _ref_forward(params, x, eps)
    np.testing.assert_allclose(np.asarray(z), np.asarray(z_r),
                               rtol=1e-3, atol=1e-4)
    np.testing.assert_allclose(np.asarray(mu), np.asarray(mu_r),
                               rtol=1e-3, atol=1e-4)
    np.testing.assert_allclose(np.asarray(logvar), np.asarray(lv_r),
                               rtol=1e-3, atol=1e-4)

    assert z.shape == (batch, window_size, latent_size)
    assert mu.shape == (batch, window_size, 1)
    assert logvar.shape == (batch, window_size, 1)

    print("KERNEL_OK")
</pallas_src>

<mosaic_0001>
module attributes {stable_mosaic.version = 11 : i64} {
  func.func @kernel(%arg0: memref<64x1xf32, #tpu.memory_space<vmem>>, %arg1: memref<64x8xf32, #tpu.memory_space<vmem>>, %arg2: memref<1x128xf32, #tpu.memory_space<vmem>>, %arg3: memref<32x128xf32, #tpu.memory_space<vmem>>, %arg4: memref<1x128xf32, #tpu.memory_space<vmem>>, %arg5: memref<32x128xf32, #tpu.memory_space<vmem>>, %arg6: memref<32x128xf32, #tpu.memory_space<vmem>>, %arg7: memref<1x128xf32, #tpu.memory_space<vmem>>, %arg8: memref<32x16xf32, #tpu.memory_space<vmem>>, %arg9: memref<1x16xf32, #tpu.memory_space<vmem>>, %arg10: memref<8x128xf32, #tpu.memory_space<vmem>>, %arg11: memref<32x128xf32, #tpu.memory_space<vmem>>, %arg12: memref<1x128xf32, #tpu.memory_space<vmem>>, %arg13: memref<32x128xf32, #tpu.memory_space<vmem>>, %arg14: memref<32x128xf32, #tpu.memory_space<vmem>>, %arg15: memref<1x128xf32, #tpu.memory_space<vmem>>, %arg16: memref<32x2xf32, #tpu.memory_space<vmem>>, %arg17: memref<1x2xf32, #tpu.memory_space<vmem>>, %arg18: memref<64x8xf32, #tpu.memory_space<vmem>>, %arg19: memref<64x2xf32, #tpu.memory_space<vmem>>, %arg20: memref<64x32xf32, #tpu.memory_space<vmem>>) attributes {dimension_semantics = [], scalar_prefetch = 0 : i64, scratch_operands = 1 : i64, tpu.core_type = #tpu.core_type<tc>} {
    %c0 = arith.constant 0 : index
    %c0_0 = arith.constant 0 : index
    %0 = vector.load %arg0[%c0, %c0_0] : memref<64x1xf32, #tpu.memory_space<vmem>>, vector<64x1xf32>
    %c0_1 = arith.constant 0 : index
    %c0_2 = arith.constant 0 : index
    %1 = vector.load %arg2[%c0_1, %c0_2] : memref<1x128xf32, #tpu.memory_space<vmem>>, vector<1x128xf32>
    %cst = arith.constant dense<0.000000e+00> : vector<64x128xf32>
    %2 = tpu.matmul %0, %1, %cst {dimension_numbers = #tpu.dot_dimension_numbers<[1], [0], [0], [1], [0, 0, 1, 1], [], []>} : vector<64x1xf32>, vector<1x128xf32>, vector<64x128xf32> -> vector<64x128xf32>
    %c0_3 = arith.constant 0 : index
    %c0_4 = arith.constant 0 : index
    %3 = vector.load %arg4[%c0_3, %c0_4] : memref<1x128xf32, #tpu.memory_space<vmem>>, vector<1x128xf32>
    %4 = vector.broadcast %3 : vector<1x128xf32> to vector<64x128xf32>
    %5 = arith.addf %2, %4 : vector<64x128xf32>
    %c0_5 = arith.constant 0 : index
    %c0_6 = arith.constant 0 : index
    %6 = vector.load %arg3[%c0_5, %c0_6] : memref<32x128xf32, #tpu.memory_space<vmem>>, vector<32x128xf32>
    %cst_7 = arith.constant 0.000000e+00 : f32
    %7 = vector.broadcast %cst_7 : f32 to vector<8x32xf32>
    %cst_8 = arith.constant 0.000000e+00 : f32
    %8 = vector.broadcast %cst_8 : f32 to vector<8x32xf32>
    %9 = vector.extract_strided_slice %5 {offsets = [0, 0], sizes = [8, 128], strides = [1, 1]} : vector<64x128xf32> to vector<8x128xf32>
    %cst_9 = arith.constant dense<0.000000e+00> : vector<8x128xf32>
    %10 = tpu.matmul %7, %6, %cst_9 {dimension_numbers = #tpu.dot_dimension_numbers<[1], [0], [0], [1], [0, 0, 1, 1], [], []>} : vector<8x32xf32>, vector<32x128xf32>, vector<8x128xf32> -> vector<8x128xf32>
    %11 = arith.addf %9, %10 : vector<8x128xf32>
    %12 = arith.negf %11 : vector<8x128xf32>
    %13 = math.exp %12 : vector<8x128xf32>
    %cst_10 = arith.constant 1.000000e+00 : f32
    %14 = vector.broadcast %cst_10 : f32 to vector<8x128xf32>
    %15 = arith.addf %14, %13 : vector<8x128xf32>
    %16 = arith.divf %14, %15 : vector<8x128xf32>
    %17 = math.tanh %11 : vector<8x128xf32>
    %18 = vector.extract_strided_slice %16 {offsets = [0, 32], sizes = [8, 32], strides = [1, 1]} : vector<8x128xf32> to vector<8x32xf32>
    %19 = arith.mulf %18, %8 : vector<8x32xf32>
    %20 = vector.extract_strided_slice %16 {offsets = [0, 0], sizes = [8, 32], strides = [1, 1]} : vector<8x128xf32> to vector<8x32xf32>
    %21 = vector.extract_strided_slice %17 {offsets = [0, 64], sizes = [8, 32], strides = [1, 1]} : vector<8x128xf32> to vector<8x32xf32>
    %22 = arith.mulf %20, %21 : vector<8x32xf32>
    %23 = arith.addf %19, %22 : vector<8x32xf32>
    %24 = vector.extract_strided_slice %16 {offsets = [0, 96], sizes = [8, 32], strides = [1, 1]} : vector<8x128xf32> to vector<8x32xf32>
    %25 = math.tanh %23 : vector<8x32xf32>
    %26 = arith.mulf %24, %25 : vector<8x32xf32>
    %c0_11 = arith.constant 0 : index
    %c0_12 = arith.constant 0 : index
    %27 = vector.load %arg20[%c0_11, %c0_12] : memref<64x32xf32, #tpu.memory_space<vmem>>, vector<8x32xf32>
    tpu.vector_store %arg20[%c0_11, %c0_12], %26 {strides = array<i32>} : memref<64x32xf32, #tpu.memory_space<vmem>>, vector<8x32xf32>,
    %28 = vector.extract_strided_slice %5 {offsets = [8, 0], sizes = [8, 128], strides = [1, 1]} : vector<64x128xf32> to vector<8x128xf32>
    %cst_13 = arith.constant dense<0.000000e+00> : vector<8x128xf32>
    %29 = tpu.matmul %26, %6, %cst_13 {dimension_numbers = #tpu.dot_dimension_numbers<[1], [0], [0], [1], [0, 0, 1, 1], [], []>} : vector<8x32xf32>, vector<32x128xf32>, vector<8x128xf32> -> vector<8x128xf32>
    %30 = arith.addf %28, %29 : vector<8x128xf32>
    %31 = arith.negf %30 : vector<8x128xf32>
    %32 = math.exp %31 : vector<8x128xf32>
    %cst_14 = arith.constant 1.000000e+00 : f32
    %33 = vector.broadcast %cst_14 : f32 to vector<8x128xf32>
    %34 = arith.addf %33, %32 : vector<8x128xf32>
    %35 = arith.divf %33, %34 : vector<8x128xf32>
    %36 = math.tanh %30 : vector<8x128xf32>
    %37 = vector.extract_strided_slice %35 {offsets = [0, 32], sizes = [8, 32], strides = [1, 1]} : vector<8x128xf32> to vector<8x32xf32>
    %38 = arith.mulf %37, %23 : vector<8x32xf32>
    %39 = vector.extract_strided_slice %35 {offsets = [0, 0], sizes = [8, 32], strides = [1, 1]} : vector<8x128xf32> to vector<8x32xf32>
    %40 = vector.extract_strided_slice %36 {offsets = [0, 64], sizes = [8, 32], strides = [1, 1]} : vector<8x128xf32> to vector<8x32xf32>
    %41 = arith.mulf %39, %40 : vector<8x32xf32>
    %42 = arith.addf %38, %41 : vector<8x32xf32>
    %43 = vector.extract_strided_slice %35 {offsets = [0, 96], sizes = [8, 32], strides = [1, 1]} : vector<8x128xf32> to vector<8x32xf32>
    %44 = math.tanh %42 : vector<8x32xf32>
    %45 = arith.mulf %43, %44 : vector<8x32xf32>
    %c8 = arith.constant 8 : index
    %c0_15 = arith.constant 0 : index
    %46 = vector.load %arg20[%c8, %c0_15] : memref<64x32xf32, #tpu.memory_space<vmem>>, vector<8x32xf32>
    tpu.vector_store %arg20[%c8, %c0_15], %45 {strides = array<i32>} : memref<64x32xf32, #tpu.memory_space<vmem>>, vector<8x32xf32>,
    %47 = vector.extract_strided_slice %5 {offsets = [16, 0], sizes = [8, 128], strides = [1, 1]} : vector<64x128xf32> to vector<8x128xf32>
    %cst_16 = arith.constant dense<0.000000e+00> : vector<8x128xf32>
    %48 = tpu.matmul %45, %6, %cst_16 {dimension_numbers = #tpu.dot_dimension_numbers<[1], [0], [0], [1], [0, 0, 1, 1], [], []>} : vector<8x32xf32>, vector<32x128xf32>, vector<8x128xf32> -> vector<8x128xf32>
    %49 = arith.addf %47, %48 : vector<8x128xf32>
    %50 = arith.negf %49 : vector<8x128xf32>
    %51 = math.exp %50 : vector<8x128xf32>
    %cst_17 = arith.constant 1.000000e+00 : f32
    %52 = vector.broadcast %cst_17 : f32 to vector<8x128xf32>
    %53 = arith.addf %52, %51 : vector<8x128xf32>
    %54 = arith.divf %52, %53 : vector<8x128xf32>
    %55 = math.tanh %49 : vector<8x128xf32>
    %56 = vector.extract_strided_slice %54 {offsets = [0, 32], sizes = [8, 32], strides = [1, 1]} : vector<8x128xf32> to vector<8x32xf32>
    %57 = arith.mulf %56, %42 : vector<8x32xf32>
    %58 = vector.extract_strided_slice %54 {offsets = [0, 0], sizes = [8, 32], strides = [1, 1]} : vector<8x128xf32> to vector<8x32xf32>
    %59 = vector.extract_strided_slice %55 {offsets = [0, 64], sizes = [8, 32], strides = [1, 1]} : vector<8x128xf32> to vector<8x32xf32>
    %60 = arith.mulf %58, %59 : vector<8x32xf32>
    %61 = arith.addf %57, %60 : vector<8x32xf32>
    %62 = vector.extract_strided_slice %54 {offsets = [0, 96], sizes = [8, 32], strides = [1, 1]} : vector<8x128xf32> to vector<8x32xf32>
    %63 = math.tanh %61 : vector<8x32xf32>
    %64 = arith.mulf %62, %63 : vector<8x32xf32>
    %c16 = arith.constant 16 : index
    %c0_18 = arith.constant 0 : index
    %65 = vector.load %arg20[%c16, %c0_18] : memref<64x32xf32, #tpu.memory_space<vmem>>, vector<8x32xf32>
    tpu.vector_store %arg20[%c16, %c0_18], %64 {strides = array<i32>} : memref<64x32xf32, #tpu.memory_space<vmem>>, vector<8x32xf32>,
    %66 = vector.extract_strided_slice %5 {offsets = [24, 0], sizes = [8, 128], strides = [1, 1]} : vector<64x128xf32> to vector<8x128xf32>
    %cst_19 = arith.constant dense<0.000000e+00> : vector<8x128xf32>
    %67 = tpu.matmul %64, %6, %cst_19 {dimension_numbers = #tpu.dot_dimension_numbers<[1], [0], [0], [1], [0, 0, 1, 1], [], []>} : vector<8x32xf32>, vector<32x128xf32>, vector<8x128xf32> -> vector<8x128xf32>
    %68 = arith.addf %66, %67 : vector<8x128xf32>
    %69 = arith.negf %68 : vector<8x128xf32>
    %70 = math.exp %69 : vector<8x128xf32>
    %cst_20 = arith.constant 1.000000e+00 : f32
    %71 = vector.broadcast %cst_20 : f32 to vector<8x128xf32>
    %72 = arith.addf %71, %70 : vector<8x128xf32>
    %73 = arith.divf %71, %72 : vector<8x128xf32>
    %74 = math.tanh %68 : vector<8x128xf32>
    %75 = vector.extract_strided_slice %73 {offsets = [0, 32], sizes = [8, 32], strides = [1, 1]} : vector<8x128xf32> to vector<8x32xf32>
    %76 = arith.mulf %75, %61 : vector<8x32xf32>
    %77 = vector.extract_strided_slice %73 {offsets = [0, 0], sizes = [8, 32], strides = [1, 1]} : vector<8x128xf32> to vector<8x32xf32>
    %78 = vector.extract_strided_slice %74 {offsets = [0, 64], sizes = [8, 32], strides = [1, 1]} : vector<8x128xf32> to vector<8x32xf32>
    %79 = arith.mulf %77, %78 : vector<8x32xf32>
    %80 = arith.addf %76, %79 : vector<8x32xf32>
    %81 = vector.extract_strided_slice %73 {offsets = [0, 96], sizes = [8, 32], strides = [1, 1]} : vector<8x128xf32> to vector<8x32xf32>
    %82 = math.tanh %80 : vector<8x32xf32>
    %83 = arith.mulf %81, %82 : vector<8x32xf32>
    %c24 = arith.constant 24 : index
    %c0_21 = arith.constant 0 : index
    %84 = vector.load %arg20[%c24, %c0_21] : memref<64x32xf32, #tpu.memory_space<vmem>>, vector<8x32xf32>
    tpu.vector_store %arg20[%c24, %c0_21], %83 {strides = array<i32>} : memref<64x32xf32, #tpu.memory_space<vmem>>, vector<8x32xf32>,
    %85 = vector.extract_strided_slice %5 {offsets = [32, 0], sizes = [8, 128], strides = [1, 1]} : vector<64x128xf32> to vector<8x128xf32>
    %cst_22 = arith.constant dense<0.000000e+00> : vector<8x128xf32>
    %86 = tpu.matmul %83, %6, %cst_22 {dimension_numbers = #tpu.dot_dimension_numbers<[1], [0], [0], [1], [0, 0, 1, 1], [], []>} : vector<8x32xf32>, vector<32x128xf32>, vector<8x128xf32> -> vector<8x128xf32>
    %87 = arith.addf %85, %86 : vector<8x128xf32>
    %88 = arith.negf %87 : vector<8x128xf32>
    %89 = math.exp %88 : vector<8x128xf32>
    %cst_23 = arith.constant 1.000000e+00 : f32
    %90 = vector.broadcast %cst_23 : f32 to vector<8x128xf32>
    %91 = arith.addf %90, %89 : vector<8x128xf32>
    %92 = arith.divf %90, %91 : vector<8x128xf32>
    %93 = math.tanh %87 : vector<8x128xf32>
    %94 = vector.extract_strided_slice %92 {offsets = [0, 32], sizes = [8, 32], strides = [1, 1]} : vector<8x128xf32> to vector<8x32xf32>
    %95 = arith.mulf %94, %80 : vector<8x32xf32>
    %96 = vector.extract_strided_slice %92 {offsets = [0, 0], sizes = [8, 32], strides = [1, 1]} : vector<8x128xf32> to vector<8x32xf32>
    %97 = vector.extract_strided_slice %93 {offsets = [0, 64], sizes = [8, 32], strides = [1, 1]} : vector<8x128xf32> to vector<8x32xf32>
    %98 = arith.mulf %96, %97 : vector<8x32xf32>
    %99 = arith.addf %95, %98 : vector<8x32xf32>
    %100 = vector.extract_strided_slice %92 {offsets = [0, 96], sizes = [8, 32], strides = [1, 1]} : vector<8x128xf32> to vector<8x32xf32>
    %101 = math.tanh %99 : vector<8x32xf32>
    %102 = arith.mulf %100, %101 : vector<8x32xf32>
    %c32 = arith.constant 32 : index
    %c0_24 = arith.constant 0 : index
    %103 = vector.load %arg20[%c32, %c0_24] : memref<64x32xf32, #tpu.memory_space<vmem>>, vector<8x32xf32>
    tpu.vector_store %arg20[%c32, %c0_24], %102 {strides = array<i32>} : memref<64x32xf32, #tpu.memory_space<vmem>>, vector<8x32xf32>,
    %104 = vector.extract_strided_slice %5 {offsets = [40, 0], sizes = [8, 128], strides = [1, 1]} : vector<64x128xf32> to vector<8x128xf32>
    %cst_25 = arith.constant dense<0.000000e+00> : vector<8x128xf32>
    %105 = tpu.matmul %102, %6, %cst_25 {dimension_numbers = #tpu.dot_dimension_numbers<[1], [0], [0], [1], [0, 0, 1, 1], [], []>} : vector<8x32xf32>, vector<32x128xf32>, vector<8x128xf32> -> vector<8x128xf32>
    %106 = arith.addf %104, %105 : vector<8x128xf32>
    %107 = arith.negf %106 : vector<8x128xf32>
    %108 = math.exp %107 : vector<8x128xf32>
    %cst_26 = arith.constant 1.000000e+00 : f32
    %109 = vector.broadcast %cst_26 : f32 to vector<8x128xf32>
    %110 = arith.addf %109, %108 : vector<8x128xf32>
    %111 = arith.divf %109, %110 : vector<8x128xf32>
    %112 = math.tanh %106 : vector<8x128xf32>
    %113 = vector.extract_strided_slice %111 {offsets = [0, 32], sizes = [8, 32], strides = [1, 1]} : vector<8x128xf32> to vector<8x32xf32>
    %114 = arith.mulf %113, %99 : vector<8x32xf32>
    %115 = vector.extract_strided_slice %111 {offsets = [0, 0], sizes = [8, 32], strides = [1, 1]} : vector<8x128xf32> to vector<8x32xf32>
    %116 = vector.extract_strided_slice %112 {offsets = [0, 64], sizes = [8, 32], strides = [1, 1]} : vector<8x128xf32> to vector<8x32xf32>
    %117 = arith.mulf %115, %116 : vector<8x32xf32>
    %118 = arith.addf %114, %117 : vector<8x32xf32>
    %119 = vector.extract_strided_slice %111 {offsets = [0, 96], sizes = [8, 32], strides = [1, 1]} : vector<8x128xf32> to vector<8x32xf32>
    %120 = math.tanh %118 : vector<8x32xf32>
    %121 = arith.mulf %119, %120 : vector<8x32xf32>
    %c40 = arith.constant 40 : index
    %c0_27 = arith.constant 0 : index
    %122 = vector.load %arg20[%c40, %c0_27] : memref<64x32xf32, #tpu.memory_space<vmem>>, vector<8x32xf32>
    tpu.vector_store %arg20[%c40, %c0_27], %121 {strides = array<i32>} : memref<64x32xf32, #tpu.memory_space<vmem>>, vector<8x32xf32>,
    %123 = vector.extract_strided_slice %5 {offsets = [48, 0], sizes = [8, 128], strides = [1, 1]} : vector<64x128xf32> to vector<8x128xf32>
    %cst_28 = arith.constant dense<0.000000e+00> : vector<8x128xf32>
    %124 = tpu.matmul %121, %6, %cst_28 {dimension_numbers = #tpu.dot_dimension_numbers<[1], [0], [0], [1], [0, 0, 1, 1], [], []>} : vector<8x32xf32>, vector<32x128xf32>, vector<8x128xf32> -> vector<8x128xf32>
    %125 = arith.addf %123, %124 : vector<8x128xf32>
    %126 = arith.negf %125 : vector<8x128xf32>
    %127 = math.exp %126 : vector<8x128xf32>
    %cst_29 = arith.constant 1.000000e+00 : f32
    %128 = vector.broadcast %cst_29 : f32 to vector<8x128xf32>
    %129 = arith.addf %128, %127 : vector<8x128xf32>
    %130 = arith.divf %128, %129 : vector<8x128xf32>
    %131 = math.tanh %125 : vector<8x128xf32>
    %132 = vector.extract_strided_slice %130 {offsets = [0, 32], sizes = [8, 32], strides = [1, 1]} : vector<8x128xf32> to vector<8x32xf32>
    %133 = arith.mulf %132, %118 : vector<8x32xf32>
    %134 = vector.extract_strided_slice %130 {offsets = [0, 0], sizes = [8, 32], strides = [1, 1]} : vector<8x128xf32> to vector<8x32xf32>
    %135 = vector.extract_strided_slice %131 {offsets = [0, 64], sizes = [8, 32], strides = [1, 1]} : vector<8x128xf32> to vector<8x32xf32>
    %136 = arith.mulf %134, %135 : vector<8x32xf32>
    %137 = arith.addf %133, %136 : vector<8x32xf32>
    %138 = vector.extract_strided_slice %130 {offsets = [0, 96], sizes = [8, 32], strides = [1, 1]} : vector<8x128xf32> to vector<8x32xf32>
    %139 = math.tanh %137 : vector<8x32xf32>
    %140 = arith.mulf %138, %139 : vector<8x32xf32>
    %c48 = arith.constant 48 : index
    %c0_30 = arith.constant 0 : index
    %141 = vector.load %arg20[%c48, %c0_30] : memref<64x32xf32, #tpu.memory_space<vmem>>, vector<8x32xf32>
    tpu.vector_store %arg20[%c48, %c0_30], %140 {strides = array<i32>} : memref<64x32xf32, #tpu.memory_space<vmem>>, vector<8x32xf32>,
    %142 = vector.extract_strided_slice %5 {offsets = [56, 0], sizes = [8, 128], strides = [1, 1]} : vector<64x128xf32> to vector<8x128xf32>
    %cst_31 = arith.constant dense<0.000000e+00> : vector<8x128xf32>
    %143 = tpu.matmul %140, %6, %cst_31 {dimension_numbers = #tpu.dot_dimension_numbers<[1], [0], [0], [1], [0, 0, 1, 1], [], []>} : vector<8x32xf32>, vector<32x128xf32>, vector<8x128xf32> -> vector<8x128xf32>
    %144 = arith.addf %142, %143 : vector<8x128xf32>
    %145 = arith.negf %144 : vector<8x128xf32>
    %146 = math.exp %145 : vector<8x128xf32>
    %cst_32 = arith.constant 1.000000e+00 : f32
    %147 = vector.broadcast %cst_32 : f32 to vector<8x128xf32>
    %148 = arith.addf %147, %146 : vector<8x128xf32>
    %149 = arith.divf %147, %148 : vector<8x128xf32>
    %150 = math.tanh %144 : vector<8x128xf32>
    %151 = vector.extract_strided_slice %149 {offsets = [0, 32], sizes = [8, 32], strides = [1, 1]} : vector<8x128xf32> to vector<8x32xf32>
    %152 = arith.mulf %151, %137 : vector<8x32xf32>
    %153 = vector.extract_strided_slice %149 {offsets = [0, 0], sizes = [8, 32], strides = [1, 1]} : vector<8x128xf32> to vector<8x32xf32>
    %154 = vector.extract_strided_slice %150 {offsets = [0, 64], sizes = [8, 32], strides = [1, 1]} : vector<8x128xf32> to vector<8x32xf32>
    %155 = arith.mulf %153, %154 : vector<8x32xf32>
    %156 = arith.addf %152, %155 : vector<8x32xf32>
    %157 = vector.extract_strided_slice %149 {offsets = [0, 96], sizes = [8, 32], strides = [1, 1]} : vector<8x128xf32> to vector<8x32xf32>
    %158 = math.tanh %156 : vector<8x32xf32>
    %159 = arith.mulf %157, %158 : vector<8x32xf32>
    %c56 = arith.constant 56 : index
    %c0_33 = arith.constant 0 : index
    %160 = vector.load %arg20[%c56, %c0_33] : memref<64x32xf32, #tpu.memory_space<vmem>>, vector<8x32xf32>
    tpu.vector_store %arg20[%c56, %c0_33], %159 {strides = array<i32>} : memref<64x32xf32, #tpu.memory_space<vmem>>, vector<8x32xf32>,
    %c0_34 = arith.constant 0 : index
    %c0_35 = arith.constant 0 : index
    %161 = vector.load %arg20[%c0_34, %c0_35] : memref<64x32xf32, #tpu.memory_space<vmem>>, vector<64x32xf32>
    %c0_36 = arith.constant 0 : index
    %c0_37 = arith.constant 0 : index
    %162 = vector.load %arg5[%c0_36, %c0_37] : memref<32x128xf32, #tpu.memory_space<vmem>>, vector<32x128xf32>
    %cst_38 = arith.constant dense<0.000000e+00> : vector<64x128xf32>
    %163 = tpu.matmul %161, %162, %cst_38 {dimension_numbers = #tpu.dot_dimension_numbers<[1], [0], [0], [1], [0, 0, 1, 1], [], []>} : vector<64x32xf32>, vector<32x128xf32>, vector<64x128xf32> -> vector<64x128xf32>
    %c0_39 = arith.constant 0 : index
    %c0_40 = arith.constant 0 : index
    %164 = vector.load %arg7[%c0_39, %c0_40] : memref<1x128xf32, #tpu.memory_space<vmem>>, vector<1x128xf32>
    %165 = vector.broadcast %164 : vector<1x128xf32> to vector<64x128xf32>
    %166 = arith.addf %163, %165 : vector<64x128xf32>
    %c0_41 = arith.constant 0 : index
    %c0_42 = arith.constant 0 : index
    %167 = vector.load %arg6[%c0_41, %c0_42] : memref<32x128xf32, #tpu.memory_space<vmem>>, vector<32x128xf32>
    %cst_43 = arith.constant 0.000000e+00 : f32
    %168 = vector.broadcast %cst_43 : f32 to vector<8x32xf32>
    %cst_44 = arith.constant 0.000000e+00 : f32
    %169 = vector.broadcast %cst_44 : f32 to vector<8x32xf32>
    %170 = vector.extract_strided_slice %166 {offsets = [0, 0], sizes = [8, 128], strides = [1, 1]} : vector<64x128xf32> to vector<8x128xf32>
    %cst_45 = arith.constant dense<0.000000e+00> : vector<8x128xf32>
    %171 = tpu.matmul %168, %167, %cst_45 {dimension_numbers = #tpu.dot_dimension_numbers<[1], [0], [0], [1], [0, 0, 1, 1], [], []>} : vector<8x32xf32>, vector<32x128xf32>, vector<8x128xf32> -> vector<8x128xf32>
    %172 = arith.addf %170, %171 : vector<8x128xf32>
    %173 = arith.negf %172 : vector<8x128xf32>
    %174 = math.exp %173 : vector<8x128xf32>
    %cst_46 = arith.constant 1.000000e+00 : f32
    %175 = vector.broadcast %cst_46 : f32 to vector<8x128xf32>
    %176 = arith.addf %175, %174 : vector<8x128xf32>
    %177 = arith.divf %175, %176 : vector<8x128xf32>
    %178 = math.tanh %172 : vector<8x128xf32>
    %179 = vector.extract_strided_slice %177 {offsets = [0, 32], sizes = [8, 32], strides = [1, 1]} : vector<8x128xf32> to vector<8x32xf32>
    %180 = arith.mulf %179, %169 : vector<8x32xf32>
    %181 = vector.extract_strided_slice %177 {offsets = [0, 0], sizes = [8, 32], strides = [1, 1]} : vector<8x128xf32> to vector<8x32xf32>
    %182 = vector.extract_strided_slice %178 {offsets = [0, 64], sizes = [8, 32], strides = [1, 1]} : vector<8x128xf32> to vector<8x32xf32>
    %183 = arith.mulf %181, %182 : vector<8x32xf32>
    %184 = arith.addf %180, %183 : vector<8x32xf32>
    %185 = vector.extract_strided_slice %177 {offsets = [0, 96], sizes = [8, 32], strides = [1, 1]} : vector<8x128xf32> to vector<8x32xf32>
    %186 = math.tanh %184 : vector<8x32xf32>
    %187 = arith.mulf %185, %186 : vector<8x32xf32>
    %c0_47 = arith.constant 0 : index
    %c0_48 = arith.constant 0 : index
    %188 = vector.load %arg20[%c0_47, %c0_48] : memref<64x32xf32, #tpu.memory_space<vmem>>, vector<8x32xf32>
    tpu.vector_store %arg20[%c0_47, %c0_48], %187 {strides = array<i32>} : memref<64x32xf32, #tpu.memory_space<vmem>>, vector<8x32xf32>,
    %189 = vector.extract_strided_slice %166 {offsets = [8, 0], sizes = [8, 128], strides = [1, 1]} : vector<64x128xf32> to vector<8x128xf32>
    %cst_49 = arith.constant dense<0.000000e+00> : vector<8x128xf32>
    %190 = tpu.matmul %187, %167, %cst_49 {dimension_numbers = #tpu.dot_dimension_numbers<[1], [0], [0], [1], [0, 0, 1, 1], [], []>} : vector<8x32xf32>, vector<32x128xf32>, vector<8x128xf32> -> vector<8x128xf32>
    %191 = arith.addf %189, %190 : vector<8x128xf32>
    %192 = arith.negf %191 : vector<8x128xf32>
    %193 = math.exp %192 : vector<8x128xf32>
    %cst_50 = arith.constant 1.000000e+00 : f32
    %194 = vector.broadcast %cst_50 : f32 to vector<8x128xf32>
    %195 = arith.addf %194, %193 : vector<8x128xf32>
    %196 = arith.divf %194, %195 : vector<8x128xf32>
    %197 = math.tanh %191 : vector<8x128xf32>
    %198 = vector.extract_strided_slice %196 {offsets = [0, 32], sizes = [8, 32], strides = [1, 1]} : vector<8x128xf32> to vector<8x32xf32>
    %199 = arith.mulf %198, %184 : vector<8x32xf32>
    %200 = vector.extract_strided_slice %196 {offsets = [0, 0], sizes = [8, 32], strides = [1, 1]} : vector<8x128xf32> to vector<8x32xf32>
    %201 = vector.extract_strided_slice %197 {offsets = [0, 64], sizes = [8, 32], strides = [1, 1]} : vector<8x128xf32> to vector<8x32xf32>
    %202 = arith.mulf %200, %201 : vector<8x32xf32>
    %203 = arith.addf %199, %202 : vector<8x32xf32>
    %204 = vector.extract_strided_slice %196 {offsets = [0, 96], sizes = [8, 32], strides = [1, 1]} : vector<8x128xf32> to vector<8x32xf32>
    %205 = math.tanh %203 : vector<8x32xf32>
    %206 = arith.mulf %204, %205 : vector<8x32xf32>
    %c8_51 = arith.constant 8 : index
    %c0_52 = arith.constant 0 : index
    %207 = vector.load %arg20[%c8_51, %c0_52] : memref<64x32xf32, #tpu.memory_space<vmem>>, vector<8x32xf32>
    tpu.vector_store %arg20[%c8_51, %c0_52], %206 {strides = array<i32>} : memref<64x32xf32, #tpu.memory_space<vmem>>, vector<8x32xf32>,
    %208 = vector.extract_strided_slice %166 {offsets = [16, 0], sizes = [8, 128], strides = [1, 1]} : vector<64x128xf32> to vector<8x128xf32>
    %cst_53 = arith.constant dense<0.000000e+00> : vector<8x128xf32>
    %209 = tpu.matmul %206, %167, %cst_53 {dimension_numbers = #tpu.dot_dimension_numbers<[1], [0], [0], [1], [0, 0, 1, 1], [], []>} : vector<8x32xf32>, vector<32x128xf32>, vector<8x128xf32> -> vector<8x128xf32>
    %210 = arith.addf %208, %209 : vector<8x128xf32>
    %211 = arith.negf %210 : vector<8x128xf32>
    %212 = math.exp %211 : vector<8x128xf32>
    %cst_54 = arith.constant 1.000000e+00 : f32
    %213 = vector.broadcast %cst_54 : f32 to vector<8x128xf32>
    %214 = arith.addf %213, %212 : vector<8x128xf32>
    %215 = arith.divf %213, %214 : vector<8x128xf32>
    %216 = math.tanh %210 : vector<8x128xf32>
    %217 = vector.extract_strided_slice %215 {offsets = [0, 32], sizes = [8, 32], strides = [1, 1]} : vector<8x128xf32> to vector<8x32xf32>
    %218 = arith.mulf %217, %203 : vector<8x32xf32>
    %219 = vector.extract_strided_slice %215 {offsets = [0, 0], sizes = [8, 32], strides = [1, 1]} : vector<8x128xf32> to vector<8x32xf32>
    %220 = vector.extract_strided_slice %216 {offsets = [0, 64], sizes = [8, 32], strides = [1, 1]} : vector<8x128xf32> to vector<8x32xf32>
    %221 = arith.mulf %219, %220 : vector<8x32xf32>
    %222 = arith.addf %218, %221 : vector<8x32xf32>
    %223 = vector.extract_strided_slice %215 {offsets = [0, 96], sizes = [8, 32], strides = [1, 1]} : vector<8x128xf32> to vector<8x32xf32>
    %224 = math.tanh %222 : vector<8x32xf32>
    %225 = arith.mulf %223, %224 : vector<8x32xf32>
    %c16_55 = arith.constant 16 : index
    %c0_56 = arith.constant 0 : index
    %226 = vector.load %arg20[%c16_55, %c0_56] : memref<64x32xf32, #tpu.memory_space<vmem>>, vector<8x32xf32>
    tpu.vector_store %arg20[%c16_55, %c0_56], %225 {strides = array<i32>} : memref<64x32xf32, #tpu.memory_space<vmem>>, vector<8x32xf32>,
    %227 = vector.extract_strided_slice %166 {offsets = [24, 0], sizes = [8, 128], strides = [1, 1]} : vector<64x128xf32> to vector<8x128xf32>
    %cst_57 = arith.constant dense<0.000000e+00> : vector<8x128xf32>
    %228 = tpu.matmul %225, %167, %cst_57 {dimension_numbers = #tpu.dot_dimension_numbers<[1], [0], [0], [1], [0, 0, 1, 1], [], []>} : vector<8x32xf32>, vector<32x128xf32>, vector<8x128xf32> -> vector<8x128xf32>
    %229 = arith.addf %227, %228 : vector<8x128xf32>
    %230 = arith.negf %229 : vector<8x128xf32>
    %231 = math.exp %230 : vector<8x128xf32>
    %cst_58 = arith.constant 1.000000e+00 : f32
    %232 = vector.broadcast %cst_58 : f32 to vector<8x128xf32>
    %233 = arith.addf %232, %231 : vector<8x128xf32>
    %234 = arith.divf %232, %233 : vector<8x128xf32>
    %235 = math.tanh %229 : vector<8x128xf32>
    %236 = vector.extract_strided_slice %234 {offsets = [0, 32], sizes = [8, 32], strides = [1, 1]} : vector<8x128xf32> to vector<8x32xf32>
    %237 = arith.mulf %236, %222 : vector<8x32xf32>
    %238 = vector.extract_strided_slice %234 {offsets = [0, 0], sizes = [8, 32], strides = [1, 1]} : vector<8x128xf32> to vector<8x32xf32>
    %239 = vector.extract_strided_slice %235 {offsets = [0, 64], sizes = [8, 32], strides = [1, 1]} : vector<8x128xf32> to vector<8x32xf32>
    %240 = arith.mulf %238, %239 : vector<8x32xf32>
    %241 = arith.addf %237, %240 : vector<8x32xf32>
    %242 = vector.extract_strided_slice %234 {offsets = [0, 96], sizes = [8, 32], strides = [1, 1]} : vector<8x128xf32> to vector<8x32xf32>
    %243 = math.tanh %241 : vector<8x32xf32>
    %244 = arith.mulf %242, %243 : vector<8x32xf32>
    %c24_59 = arith.constant 24 : index
    %c0_60 = arith.constant 0 : index
    %245 = vector.load %arg20[%c24_59, %c0_60] : memref<64x32xf32, #tpu.memory_space<vmem>>, vector<8x32xf32>
    tpu.vector_store %arg20[%c24_59, %c0_60], %244 {strides = array<i32>} : memref<64x32xf32, #tpu.memory_space<vmem>>, vector<8x32xf32>,
    %246 = vector.extract_strided_slice %166 {offsets = [32, 0], sizes = [8, 128], strides = [1, 1]} : vector<64x128xf32> to vector<8x128xf32>
    %cst_61 = arith.constant dense<0.000000e+00> : vector<8x128xf32>
    %247 = tpu.matmul %244, %167, %cst_61 {dimension_numbers = #tpu.dot_dimension_numbers<[1], [0], [0], [1], [0, 0, 1, 1], [], []>} : vector<8x32xf32>, vector<32x128xf32>, vector<8x128xf32> -> vector<8x128xf32>
    %248 = arith.addf %246, %247 : vector<8x128xf32>
    %249 = arith.negf %248 : vector<8x128xf32>
    %250 = math.exp %249 : vector<8x128xf32>
    %cst_62 = arith.constant 1.000000e+00 : f32
    %251 = vector.broadcast %cst_62 : f32 to vector<8x128xf32>
    %252 = arith.addf %251, %250 : vector<8x128xf32>
    %253 = arith.divf %251, %252 : vector<8x128xf32>
    %254 = math.tanh %248 : vector<8x128xf32>
    %255 = vector.extract_strided_slice %253 {offsets = [0, 32], sizes = [8, 32], strides = [1, 1]} : vector<8x128xf32> to vector<8x32xf32>
    %256 = arith.mulf %255, %241 : vector<8x32xf32>
    %257 = vector.extract_strided_slice %253 {offsets = [0, 0], sizes = [8, 32], strides = [1, 1]} : vector<8x128xf32> to vector<8x32xf32>
    %258 = vector.extract_strided_slice %254 {offsets = [0, 64], sizes = [8, 32], strides = [1, 1]} : vector<8x128xf32> to vector<8x32xf32>
    %259 = arith.mulf %257, %258 : vector<8x32xf32>
    %260 = arith.addf %256, %259 : vector<8x32xf32>
    %261 = vector.extract_strided_slice %253 {offsets = [0, 96], sizes = [8, 32], strides = [1, 1]} : vector<8x128xf32> to vector<8x32xf32>
    %262 = math.tanh %260 : vector<8x32xf32>
    %263 = arith.mulf %261, %262 : vector<8x32xf32>
    %c32_63 = arith.constant 32 : index
    %c0_64 = arith.constant 0 : index
    %264 = vector.load %arg20[%c32_63, %c0_64] : memref<64x32xf32, #tpu.memory_space<vmem>>, vector<8x32xf32>
    tpu.vector_store %arg20[%c32_63, %c0_64], %263 {strides = array<i32>} : memref<64x32xf32, #tpu.memory_space<vmem>>, vector<8x32xf32>,
    %265 = vector.extract_strided_slice %166 {offsets = [40, 0], sizes = [8, 128], strides = [1, 1]} : vector<64x128xf32> to vector<8x128xf32>
    %cst_65 = arith.constant dense<0.000000e+00> : vector<8x128xf32>
    %266 = tpu.matmul %263, %167, %cst_65 {dimension_numbers = #tpu.dot_dimension_numbers<[1], [0], [0], [1], [0, 0, 1, 1], [], []>} : vector<8x32xf32>, vector<32x128xf32>, vector<8x128xf32> -> vector<8x128xf32>
    %267 = arith.addf %265, %266 : vector<8x128xf32>
    %268 = arith.negf %267 : vector<8x128xf32>
    %269 = math.exp %268 : vector<8x128xf32>
    %cst_66 = arith.constant 1.000000e+00 : f32
    %270 = vector.broadcast %cst_66 : f32 to vector<8x128xf32>
    %271 = arith.addf %270, %269 : vector<8x128xf32>
    %272 = arith.divf %270, %271 : vector<8x128xf32>
    %273 = math.tanh %267 : vector<8x128xf32>
    %274 = vector.extract_strided_slice %272 {offsets = [0, 32], sizes = [8, 32], strides = [1, 1]} : vector<8x128xf32> to vector<8x32xf32>
    %275 = arith.mulf %274, %260 : vector<8x32xf32>
    %276 = vector.extract_strided_slice %272 {offsets = [0, 0], sizes = [8, 32], strides = [1, 1]} : vector<8x128xf32> to vector<8x32xf32>
    %277 = vector.extract_strided_slice %273 {offsets = [0, 64], sizes = [8, 32], strides = [1, 1]} : vector<8x128xf32> to vector<8x32xf32>
    %278 = arith.mulf %276, %277 : vector<8x32xf32>
    %279 = arith.addf %275, %278 : vector<8x32xf32>
    %280 = vector.extract_strided_slice %272 {offsets = [0, 96], sizes = [8, 32], strides = [1, 1]} : vector<8x128xf32> to vector<8x32xf32>
    %281 = math.tanh %279 : vector<8x32xf32>
    %282 = arith.mulf %280, %281 : vector<8x32xf32>
    %c40_67 = arith.constant 40 : index
    %c0_68 = arith.constant 0 : index
    %283 = vector.load %arg20[%c40_67, %c0_68] : memref<64x32xf32, #tpu.memory_space<vmem>>, vector<8x32xf32>
    tpu.vector_store %arg20[%c40_67, %c0_68], %282 {strides = array<i32>} : memref<64x32xf32, #tpu.memory_space<vmem>>, vector<8x32xf32>,
    %284 = vector.extract_strided_slice %166 {offsets = [48, 0], sizes = [8, 128], strides = [1, 1]} : vector<64x128xf32> to vector<8x128xf32>
    %cst_69 = arith.constant dense<0.000000e+00> : vector<8x128xf32>
    %285 = tpu.matmul %282, %167, %cst_69 {dimension_numbers = #tpu.dot_dimension_numbers<[1], [0], [0], [1], [0, 0, 1, 1], [], []>} : vector<8x32xf32>, vector<32x128xf32>, vector<8x128xf32> -> vector<8x128xf32>
    %286 = arith.addf %284, %285 : vector<8x128xf32>
    %287 = arith.negf %286 : vector<8x128xf32>
    %288 = math.exp %287 : vector<8x128xf32>
    %cst_70 = arith.constant 1.000000e+00 : f32
    %289 = vector.broadcast %cst_70 : f32 to vector<8x128xf32>
    %290 = arith.addf %289, %288 : vector<8x128xf32>
    %291 = arith.divf %289, %290 : vector<8x128xf32>
    %292 = math.tanh %286 : vector<8x128xf32>
    %293 = vector.extract_strided_slice %291 {offsets = [0, 32], sizes = [8, 32], strides = [1, 1]} : vector<8x128xf32> to vector<8x32xf32>
    %294 = arith.mulf %293, %279 : vector<8x32xf32>
    %295 = vector.extract_strided_slice %291 {offsets = [0, 0], sizes = [8, 32], strides = [1, 1]} : vector<8x128xf32> to vector<8x32xf32>
    %296 = vector.extract_strided_slice %292 {offsets = [0, 64], sizes = [8, 32], strides = [1, 1]} : vector<8x128xf32> to vector<8x32xf32>
    %297 = arith.mulf %295, %296 : vector<8x32xf32>
    %298 = arith.addf %294, %297 : vector<8x32xf32>
    %299 = vector.extract_strided_slice %291 {offsets = [0, 96], sizes = [8, 32], strides = [1, 1]} : vector<8x128xf32> to vector<8x32xf32>
    %300 = math.tanh %298 : vector<8x32xf32>
    %301 = arith.mulf %299, %300 : vector<8x32xf32>
    %c48_71 = arith.constant 48 : index
    %c0_72 = arith.constant 0 : index
    %302 = vector.load %arg20[%c48_71, %c0_72] : memref<64x32xf32, #tpu.memory_space<vmem>>, vector<8x32xf32>
    tpu.vector_store %arg20[%c48_71, %c0_72], %301 {strides = array<i32>} : memref<64x32xf32, #tpu.memory_space<vmem>>, vector<8x32xf32>,
    %303 = vector.extract_strided_slice %166 {offsets = [56, 0], sizes = [8, 128], strides = [1, 1]} : vector<64x128xf32> to vector<8x128xf32>
    %cst_73 = arith.constant dense<0.000000e+00> : vector<8x128xf32>
    %304 = tpu.matmul %301, %167, %cst_73 {dimension_numbers = #tpu.dot_dimension_numbers<[1], [0], [0], [1], [0, 0, 1, 1], [], []>} : vector<8x32xf32>, vector<32x128xf32>, vector<8x128xf32> -> vector<8x128xf32>
    %305 = arith.addf %303, %304 : vector<8x128xf32>
    %306 = arith.negf %305 : vector<8x128xf32>
    %307 = math.exp %306 : vector<8x128xf32>
    %cst_74 = arith.constant 1.000000e+00 : f32
    %308 = vector.broadcast %cst_74 : f32 to vector<8x128xf32>
    %309 = arith.addf %308, %307 : vector<8x128xf32>
    %310 = arith.divf %308, %309 : vector<8x128xf32>
    %311 = math.tanh %305 : vector<8x128xf32>
    %312 = vector.extract_strided_slice %310 {offsets = [0, 32], sizes = [8, 32], strides = [1, 1]} : vector<8x128xf32> to vector<8x32xf32>
    %313 = arith.mulf %312, %298 : vector<8x32xf32>
    %314 = vector.extract_strided_slice %310 {offsets = [0, 0], sizes = [8, 32], strides = [1, 1]} : vector<8x128xf32> to vector<8x32xf32>
    %315 = vector.extract_strided_slice %311 {offsets = [0, 64], sizes = [8, 32], strides = [1, 1]} : vector<8x128xf32> to vector<8x32xf32>
    %316 = arith.mulf %314, %315 : vector<8x32xf32>
    %317 = arith.addf %313, %316 : vector<8x32xf32>
    %318 = vector.extract_strided_slice %310 {offsets = [0, 96], sizes = [8, 32], strides = [1, 1]} : vector<8x128xf32> to vector<8x32xf32>
    %319 = math.tanh %317 : vector<8x32xf32>
    %320 = arith.mulf %318, %319 : vector<8x32xf32>
    %c56_75 = arith.constant 56 : index
    %c0_76 = arith.constant 0 : index
    %321 = vector.load %arg20[%c56_75, %c0_76] : memref<64x32xf32, #tpu.memory_space<vmem>>, vector<8x32xf32>
    tpu.vector_store %arg20[%c56_75, %c0_76], %320 {strides = array<i32>} : memref<64x32xf32, #tpu.memory_space<vmem>>, vector<8x32xf32>,
    %c0_77 = arith.constant 0 : index
    %c0_78 = arith.constant 0 : index
    %322 = vector.load %arg20[%c0_77, %c0_78] : memref<64x32xf32, #tpu.memory_space<vmem>>, vector<64x32xf32>
    %c0_79 = arith.constant 0 : index
    %c0_80 = arith.constant 0 : index
    %323 = vector.load %arg8[%c0_79, %c0_80] : memref<32x16xf32, #tpu.memory_space<vmem>>, vector<32x16xf32>
    %cst_81 = arith.constant dense<0.000000e+00> : vector<64x16xf32>
    %324 = tpu.matmul %322, %323, %cst_81 {dimension_numbers = #tpu.dot_dimension_numbers<[1], [0], [0], [1], [0, 0, 1, 1], [], []>} : vector<64x32xf32>, vector<32x16xf32>, vector<64x16xf32> -> vector<64x16xf32>
    %c0_82 = arith.constant 0 : index
    %c0_83 = arith.constant 0 : index
    %325 = vector.load %arg9[%c0_82, %c0_83] : memref<1x16xf32, #tpu.memory_space<vmem>>, vector<1x16xf32>
    %326 = vector.broadcast %325 : vector<1x16xf32> to vector<64x16xf32>
    %327 = arith.addf %324, %326 : vector<64x16xf32>
    %328 = vector.extract_strided_slice %327 {offsets = [0, 0], sizes = [64, 8], strides = [1, 1]} : vector<64x16xf32> to vector<64x8xf32>
    %329 = vector.extract_strided_slice %327 {offsets = [0, 8], sizes = [64, 8], strides = [1, 1]} : vector<64x16xf32> to vector<64x8xf32>
    %cst_84 = arith.constant 5.000000e-01 : f32
    %330 = vector.broadcast %cst_84 : f32 to vector<64x8xf32>
    %331 = arith.mulf %329, %330 : vector<64x8xf32>
    %332 = math.exp %331 : vector<64x8xf32>
    %c0_85 = arith.constant 0 : index
    %c0_86 = arith.constant 0 : index
    %333 = vector.load %arg1[%c0_85, %c0_86] : memref<64x8xf32, #tpu.memory_space<vmem>>, vector<64x8xf32>
    %334 = arith.mulf %332, %333 : vector<64x8xf32>
    %335 = arith.addf %328, %334 : vector<64x8xf32>
    %c0_87 = arith.constant 0 : index
    %c0_88 = arith.constant 0 : index
    %336 = vector.load %arg18[%c0_87, %c0_88] : memref<64x8xf32, #tpu.memory_space<vmem>>, vector<64x8xf32>
    tpu.vector_store %arg18[%c0_87, %c0_88], %335 {strides = array<i32>} : memref<64x8xf32, #tpu.memory_space<vmem>>, vector<64x8xf32>,
    %c0_89 = arith.constant 0 : index
    %c0_90 = arith.constant 0 : index
    %337 = vector.load %arg10[%c0_89, %c0_90] : memref<8x128xf32, #tpu.memory_space<vmem>>, vector<8x128xf32>
    %cst_91 = arith.constant dense<0.000000e+00> : vector<64x128xf32>
    %338 = tpu.matmul %335, %337, %cst_91 {dimension_numbers = #tpu.dot_dimension_numbers<[1], [0], [0], [1], [0, 0, 1, 1], [], []>} : vector<64x8xf32>, vector<8x128xf32>, vector<64x128xf32> -> vector<64x128xf32>
    %c0_92 = arith.constant 0 : index
    %c0_93 = arith.constant 0 : index
    %339 = vector.load %arg12[%c0_92, %c0_93] : memref<1x128xf32, #tpu.memory_space<vmem>>, vector<1x128xf32>
    %340 = vector.broadcast %339 : vector<1x128xf32> to vector<64x128xf32>
    %341 = arith.addf %338, %340 : vector<64x128xf32>
    %c0_94 = arith.constant 0 : index
    %c0_95 = arith.constant 0 : index
    %342 = vector.load %arg11[%c0_94, %c0_95] : memref<32x128xf32, #tpu.memory_space<vmem>>, vector<32x128xf32>
    %cst_96 = arith.constant 0.000000e+00 : f32
    %343 = vector.broadcast %cst_96 : f32 to vector<8x32xf32>
    %cst_97 = arith.constant 0.000000e+00 : f32
    %344 = vector.broadcast %cst_97 : f32 to vector<8x32xf32>
    %345 = vector.extract_strided_slice %341 {offsets = [0, 0], sizes = [8, 128], strides = [1, 1]} : vector<64x128xf32> to vector<8x128xf32>
    %cst_98 = arith.constant dense<0.000000e+00> : vector<8x128xf32>
    %346 = tpu.matmul %343, %342, %cst_98 {dimension_numbers = #tpu.dot_dimension_numbers<[1], [0], [0], [1], [0, 0, 1, 1], [], []>} : vector<8x32xf32>, vector<32x128xf32>, vector<8x128xf32> -> vector<8x128xf32>
    %347 = arith.addf %345, %346 : vector<8x128xf32>
    %348 = arith.negf %347 : vector<8x128xf32>
    %349 = math.exp %348 : vector<8x128xf32>
    %cst_99 = arith.constant 1.000000e+00 : f32
    %350 = vector.broadcast %cst_99 : f32 to vector<8x128xf32>
    %351 = arith.addf %350, %349 : vector<8x128xf32>
    %352 = arith.divf %350, %351 : vector<8x128xf32>
    %353 = math.tanh %347 : vector<8x128xf32>
    %354 = vector.extract_strided_slice %352 {offsets = [0, 32], sizes = [8, 32], strides = [1, 1]} : vector<8x128xf32> to vector<8x32xf32>
    %355 = arith.mulf %354, %344 : vector<8x32xf32>
    %356 = vector.extract_strided_slice %352 {offsets = [0, 0], sizes = [8, 32], strides = [1, 1]} : vector<8x128xf32> to vector<8x32xf32>
    %357 = vector.extract_strided_slice %353 {offsets = [0, 64], sizes = [8, 32], strides = [1, 1]} : vector<8x128xf32> to vector<8x32xf32>
    %358 = arith.mulf %356, %357 : vector<8x32xf32>
    %359 = arith.addf %355, %358 : vector<8x32xf32>
    %360 = vector.extract_strided_slice %352 {offsets = [0, 96], sizes = [8, 32], strides = [1, 1]} : vector<8x128xf32> to vector<8x32xf32>
    %361 = math.tanh %359 : vector<8x32xf32>
    %362 = arith.mulf %360, %361 : vector<8x32xf32>
    %c0_100 = arith.constant 0 : index
    %c0_101 = arith.constant 0 : index
    %363 = vector.load %arg20[%c0_100, %c0_101] : memref<64x32xf32, #tpu.memory_space<vmem>>, vector<8x32xf32>
    tpu.vector_store %arg20[%c0_100, %c0_101], %362 {strides = array<i32>} : memref<64x32xf32, #tpu.memory_space<vmem>>, vector<8x32xf32>,
    %364 = vector.extract_strided_slice %341 {offsets = [8, 0], sizes = [8, 128], strides = [1, 1]} : vector<64x128xf32> to vector<8x128xf32>
    %cst_102 = arith.constant dense<0.000000e+00> : vector<8x128xf32>
    %365 = tpu.matmul %362, %342, %cst_102 {dimension_numbers = #tpu.dot_dimension_numbers<[1], [0], [0], [1], [0, 0, 1, 1], [], []>} : vector<8x32xf32>, vector<32x128xf32>, vector<8x128xf32> -> vector<8x128xf32>
    %366 = arith.addf %364, %365 : vector<8x128xf32>
    %367 = arith.negf %366 : vector<8x128xf32>
    %368 = math.exp %367 : vector<8x128xf32>
    %cst_103 = arith.constant 1.000000e+00 : f32
    %369 = vector.broadcast %cst_103 : f32 to vector<8x128xf32>
    %370 = arith.addf %369, %368 : vector<8x128xf32>
    %371 = arith.divf %369, %370 : vector<8x128xf32>
    %372 = math.tanh %366 : vector<8x128xf32>
    %373 = vector.extract_strided_slice %371 {offsets = [0, 32], sizes = [8, 32], strides = [1, 1]} : vector<8x128xf32> to vector<8x32xf32>
    %374 = arith.mulf %373, %359 : vector<8x32xf32>
    %375 = vector.extract_strided_slice %371 {offsets = [0, 0], sizes = [8, 32], strides = [1, 1]} : vector<8x128xf32> to vector<8x32xf32>
    %376 = vector.extract_strided_slice %372 {offsets = [0, 64], sizes = [8, 32], strides = [1, 1]} : vector<8x128xf32> to vector<8x32xf32>
    %377 = arith.mulf %375, %376 : vector<8x32xf32>
    %378 = arith.addf %374, %377 : vector<8x32xf32>
    %379 = vector.extract_strided_slice %371 {offsets = [0, 96], sizes = [8, 32], strides = [1, 1]} : vector<8x128xf32> to vector<8x32xf32>
    %380 = math.tanh %378 : vector<8x32xf32>
    %381 = arith.mulf %379, %380 : vector<8x32xf32>
    %c8_104 = arith.constant 8 : index
    %c0_105 = arith.constant 0 : index
    %382 = vector.load %arg20[%c8_104, %c0_105] : memref<64x32xf32, #tpu.memory_space<vmem>>, vector<8x32xf32>
    tpu.vector_store %arg20[%c8_104, %c0_105], %381 {strides = array<i32>} : memref<64x32xf32, #tpu.memory_space<vmem>>, vector<8x32xf32>,
    %383 = vector.extract_strided_slice %341 {offsets = [16, 0], sizes = [8, 128], strides = [1, 1]} : vector<64x128xf32> to vector<8x128xf32>
    %cst_106 = arith.constant dense<0.000000e+00> : vector<8x128xf32>
    %384 = tpu.matmul %381, %342, %cst_106 {dimension_numbers = #tpu.dot_dimension_numbers<[1], [0], [0], [1], [0, 0, 1, 1], [], []>} : vector<8x32xf32>, vector<32x128xf32>, vector<8x128xf32> -> vector<8x128xf32>
    %385 = arith.addf %383, %384 : vector<8x128xf32>
    %386 = arith.negf %385 : vector<8x128xf32>
    %387 = math.exp %386 : vector<8x128xf32>
    %cst_107 = arith.constant 1.000000e+00 : f32
    %388 = vector.broadcast %cst_107 : f32 to vector<8x128xf32>
    %389 = arith.addf %388, %387 : vector<8x128xf32>
    %390 = arith.divf %388, %389 : vector<8x128xf32>
    %391 = math.tanh %385 : vector<8x128xf32>
    %392 = vector.extract_strided_slice %390 {offsets = [0, 32], sizes = [8, 32], strides = [1, 1]} : vector<8x128xf32> to vector<8x32xf32>
    %393 = arith.mulf %392, %378 : vector<8x32xf32>
    %394 = vector.extract_strided_slice %390 {offsets = [0, 0], sizes = [8, 32], strides = [1, 1]} : vector<8x128xf32> to vector<8x32xf32>
    %395 = vector.extract_strided_slice %391 {offsets = [0, 64], sizes = [8, 32], strides = [1, 1]} : vector<8x128xf32> to vector<8x32xf32>
    %396 = arith.mulf %394, %395 : vector<8x32xf32>
    %397 = arith.addf %393, %396 : vector<8x32xf32>
    %398 = vector.extract_strided_slice %390 {offsets = [0, 96], sizes = [8, 32], strides = [1, 1]} : vector<8x128xf32> to vector<8x32xf32>
    %399 = math.tanh %397 : vector<8x32xf32>
    %400 = arith.mulf %398, %399 : vector<8x32xf32>
    %c16_108 = arith.constant 16 : index
    %c0_109 = arith.constant 0 : index
    %401 = vector.load %arg20[%c16_108, %c0_109] : memref<64x32xf32, #tpu.memory_space<vmem>>, vector<8x32xf32>
    tpu.vector_store %arg20[%c16_108, %c0_109], %400 {strides = array<i32>} : memref<64x32xf32, #tpu.memory_space<vmem>>, vector<8x32xf32>,
    %402 = vector.extract_strided_slice %341 {offsets = [24, 0], sizes = [8, 128], strides = [1, 1]} : vector<64x128xf32> to vector<8x128xf32>
    %cst_110 = arith.constant dense<0.000000e+00> : vector<8x128xf32>
    %403 = tpu.matmul %400, %342, %cst_110 {dimension_numbers = #tpu.dot_dimension_numbers<[1], [0], [0], [1], [0, 0, 1, 1], [], []>} : vector<8x32xf32>, vector<32x128xf32>, vector<8x128xf32> -> vector<8x128xf32>
    %404 = arith.addf %402, %403 : vector<8x128xf32>
    %405 = arith.negf %404 : vector<8x128xf32>
    %406 = math.exp %405 : vector<8x128xf32>
    %cst_111 = arith.constant 1.000000e+00 : f32
    %407 = vector.broadcast %cst_111 : f32 to vector<8x128xf32>
    %408 = arith.addf %407, %406 : vector<8x128xf32>
    %409 = arith.divf %407, %408 : vector<8x128xf32>
    %410 = math.tanh %404 : vector<8x128xf32>
    %411 = vector.extract_strided_slice %409 {offsets = [0, 32], sizes = [8, 32], strides = [1, 1]} : vector<8x128xf32> to vector<8x32xf32>
    %412 = arith.mulf %411, %397 : vector<8x32xf32>
    %413 = vector.extract_strided_slice %409 {offsets = [0, 0], sizes = [8, 32], strides = [1, 1]} : vector<8x128xf32> to vector<8x32xf32>
    %414 = vector.extract_strided_slice %410 {offsets = [0, 64], sizes = [8, 32], strides = [1, 1]} : vector<8x128xf32> to vector<8x32xf32>
    %415 = arith.mulf %413, %414 : vector<8x32xf32>
    %416 = arith.addf %412, %415 : vector<8x32xf32>
    %417 = vector.extract_strided_slice %409 {offsets = [0, 96], sizes = [8, 32], strides = [1, 1]} : vector<8x128xf32> to vector<8x32xf32>
    %418 = math.tanh %416 : vector<8x32xf32>
    %419 = arith.mulf %417, %418 : vector<8x32xf32>
    %c24_112 = arith.constant 24 : index
    %c0_113 = arith.constant 0 : index
    %420 = vector.load %arg20[%c24_112, %c0_113] : memref<64x32xf32, #tpu.memory_space<vmem>>, vector<8x32xf32>
    tpu.vector_store %arg20[%c24_112, %c0_113], %419 {strides = array<i32>} : memref<64x32xf32, #tpu.memory_space<vmem>>, vector<8x32xf32>,
    %421 = vector.extract_strided_slice %341 {offsets = [32, 0], sizes = [8, 128], strides = [1, 1]} : vector<64x128xf32> to vector<8x128xf32>
    %cst_114 = arith.constant dense<0.000000e+00> : vector<8x128xf32>
    %422 = tpu.matmul %419, %342, %cst_114 {dimension_numbers = #tpu.dot_dimension_numbers<[1], [0], [0], [1], [0, 0, 1, 1], [], []>} : vector<8x32xf32>, vector<32x128xf32>, vector<8x128xf32> -> vector<8x128xf32>
    %423 = arith.addf %421, %422 : vector<8x128xf32>
    %424 = arith.negf %423 : vector<8x128xf32>
    %425 = math.exp %424 : vector<8x128xf32>
    %cst_115 = arith.constant 1.000000e+00 : f32
    %426 = vector.broadcast %cst_115 : f32 to vector<8x128xf32>
    %427 = arith.addf %426, %425 : vector<8x128xf32>
    %428 = arith.divf %426, %427 : vector<8x128xf32>
    %429 = math.tanh %423 : vector<8x128xf32>
    %430 = vector.extract_strided_slice %428 {offsets = [0, 32], sizes = [8, 32], strides = [1, 1]} : vector<8x128xf32> to vector<8x32xf32>
    %431 = arith.mulf %430, %416 : vector<8x32xf32>
    %432 = vector.extract_strided_slice %428 {offsets = [0, 0], sizes = [8, 32], strides = [1, 1]} : vector<8x128xf32> to vector<8x32xf32>
    %433 = vector.extract_strided_slice %429 {offsets = [0, 64], sizes = [8, 32], strides = [1, 1]} : vector<8x128xf32> to vector<8x32xf32>
    %434 = arith.mulf %432, %433 : vector<8x32xf32>
    %435 = arith.addf %431, %434 : vector<8x32xf32>
    %436 = vector.extract_strided_slice %428 {offsets = [0, 96], sizes = [8, 32], strides = [1, 1]} : vector<8x128xf32> to vector<8x32xf32>
    %437 = math.tanh %435 : vector<8x32xf32>
    %438 = arith.mulf %436, %437 : vector<8x32xf32>
    %c32_116 = arith.constant 32 : index
    %c0_117 = arith.constant 0 : index
    %439 = vector.load %arg20[%c32_116, %c0_117] : memref<64x32xf32, #tpu.memory_space<vmem>>, vector<8x32xf32>
    tpu.vector_store %arg20[%c32_116, %c0_117], %438 {strides = array<i32>} : memref<64x32xf32, #tpu.memory_space<vmem>>, vector<8x32xf32>,
    %440 = vector.extract_strided_slice %341 {offsets = [40, 0], sizes = [8, 128], strides = [1, 1]} : vector<64x128xf32> to vector<8x128xf32>
    %cst_118 = arith.constant dense<0.000000e+00> : vector<8x128xf32>
    %441 = tpu.matmul %438, %342, %cst_118 {dimension_numbers = #tpu.dot_dimension_numbers<[1], [0], [0], [1], [0, 0, 1, 1], [], []>} : vector<8x32xf32>, vector<32x128xf32>, vector<8x128xf32> -> vector<8x128xf32>
    %442 = arith.addf %440, %441 : vector<8x128xf32>
    %443 = arith.negf %442 : vector<8x128xf32>
    %444 = math.exp %443 : vector<8x128xf32>
    %cst_119 = arith.constant 1.000000e+00 : f32
    %445 = vector.broadcast %cst_119 : f32 to vector<8x128xf32>
    %446 = arith.addf %445, %444 : vector<8x128xf32>
    %447 = arith.divf %445, %446 : vector<8x128xf32>
    %448 = math.tanh %442 : vector<8x128xf32>
    %449 = vector.extract_strided_slice %447 {offsets = [0, 32], sizes = [8, 32], strides = [1, 1]} : vector<8x128xf32> to vector<8x32xf32>
    %450 = arith.mulf %449, %435 : vector<8x32xf32>
    %451 = vector.extract_strided_slice %447 {offsets = [0, 0], sizes = [8, 32], strides = [1, 1]} : vector<8x128xf32> to vector<8x32xf32>
    %452 = vector.extract_strided_slice %448 {offsets = [0, 64], sizes = [8, 32], strides = [1, 1]} : vector<8x128xf32> to vector<8x32xf32>
    %453 = arith.mulf %451, %452 : vector<8x32xf32>
    %454 = arith.addf %450, %453 : vector<8x32xf32>
    %455 = vector.extract_strided_slice %447 {offsets = [0, 96], sizes = [8, 32], strides = [1, 1]} : vector<8x128xf32> to vector<8x32xf32>
    %456 = math.tanh %454 : vector<8x32xf32>
    %457 = arith.mulf %455, %456 : vector<8x32xf32>
    %c40_120 = arith.constant 40 : index
    %c0_121 = arith.constant 0 : index
    %458 = vector.load %arg20[%c40_120, %c0_121] : memref<64x32xf32, #tpu.memory_space<vmem>>, vector<8x32xf32>
    tpu.vector_store %arg20[%c40_120, %c0_121], %457 {strides = array<i32>} : memref<64x32xf32, #tpu.memory_space<vmem>>, vector<8x32xf32>,
    %459 = vector.extract_strided_slice %341 {offsets = [48, 0], sizes = [8, 128], strides = [1, 1]} : vector<64x128xf32> to vector<8x128xf32>
    %cst_122 = arith.constant dense<0.000000e+00> : vector<8x128xf32>
    %460 = tpu.matmul %457, %342, %cst_122 {dimension_numbers = #tpu.dot_dimension_numbers<[1], [0], [0], [1], [0, 0, 1, 1], [], []>} : vector<8x32xf32>, vector<32x128xf32>, vector<8x128xf32> -> vector<8x128xf32>
    %461 = arith.addf %459, %460 : vector<8x128xf32>
    %462 = arith.negf %461 : vector<8x128xf32>
    %463 = math.exp %462 : vector<8x128xf32>
    %cst_123 = arith.constant 1.000000e+00 : f32
    %464 = vector.broadcast %cst_123 : f32 to vector<8x128xf32>
    %465 = arith.addf %464, %463 : vector<8x128xf32>
    %466 = arith.divf %464, %465 : vector<8x128xf32>
    %467 = math.tanh %461 : vector<8x128xf32>
    %468 = vector.extract_strided_slice %466 {offsets = [0, 32], sizes = [8, 32], strides = [1, 1]} : vector<8x128xf32> to vector<8x32xf32>
    %469 = arith.mulf %468, %454 : vector<8x32xf32>
    %470 = vector.extract_strided_slice %466 {offsets = [0, 0], sizes = [8, 32], strides = [1, 1]} : vector<8x128xf32> to vector<8x32xf32>
    %471 = vector.extract_strided_slice %467 {offsets = [0, 64], sizes = [8, 32], strides = [1, 1]} : vector<8x128xf32> to vector<8x32xf32>
    %472 = arith.mulf %470, %471 : vector<8x32xf32>
    %473 = arith.addf %469, %472 : vector<8x32xf32>
    %474 = vector.extract_strided_slice %466 {offsets = [0, 96], sizes = [8, 32], strides = [1, 1]} : vector<8x128xf32> to vector<8x32xf32>
    %475 = math.tanh %473 : vector<8x32xf32>
    %476 = arith.mulf %474, %475 : vector<8x32xf32>
    %c48_124 = arith.constant 48 : index
    %c0_125 = arith.constant 0 : index
    %477 = vector.load %arg20[%c48_124, %c0_125] : memref<64x32xf32, #tpu.memory_space<vmem>>, vector<8x32xf32>
    tpu.vector_store %arg20[%c48_124, %c0_125], %476 {strides = array<i32>} : memref<64x32xf32, #tpu.memory_space<vmem>>, vector<8x32xf32>,
    %478 = vector.extract_strided_slice %341 {offsets = [56, 0], sizes = [8, 128], strides = [1, 1]} : vector<64x128xf32> to vector<8x128xf32>
    %cst_126 = arith.constant dense<0.000000e+00> : vector<8x128xf32>
    %479 = tpu.matmul %476, %342, %cst_126 {dimension_numbers = #tpu.dot_dimension_numbers<[1], [0], [0], [1], [0, 0, 1, 1], [], []>} : vector<8x32xf32>, vector<32x128xf32>, vector<8x128xf32> -> vector<8x128xf32>
    %480 = arith.addf %478, %479 : vector<8x128xf32>
    %481 = arith.negf %480 : vector<8x128xf32>
    %482 = math.exp %481 : vector<8x128xf32>
    %cst_127 = arith.constant 1.000000e+00 : f32
    %483 = vector.broadcast %cst_127 : f32 to vector<8x128xf32>
    %484 = arith.addf %483, %482 : vector<8x128xf32>
    %485 = arith.divf %483, %484 : vector<8x128xf32>
    %486 = math.tanh %480 : vector<8x128xf32>
    %487 = vector.extract_strided_slice %485 {offsets = [0, 32], sizes = [8, 32], strides = [1, 1]} : vector<8x128xf32> to vector<8x32xf32>
    %488 = arith.mulf %487, %473 : vector<8x32xf32>
    %489 = vector.extract_strided_slice %485 {offsets = [0, 0], sizes = [8, 32], strides = [1, 1]} : vector<8x128xf32> to vector<8x32xf32>
    %490 = vector.extract_strided_slice %486 {offsets = [0, 64], sizes = [8, 32], strides = [1, 1]} : vector<8x128xf32> to vector<8x32xf32>
    %491 = arith.mulf %489, %490 : vector<8x32xf32>
    %492 = arith.addf %488, %491 : vector<8x32xf32>
    %493 = vector.extract_strided_slice %485 {offsets = [0, 96], sizes = [8, 32], strides = [1, 1]} : vector<8x128xf32> to vector<8x32xf32>
    %494 = math.tanh %492 : vector<8x32xf32>
    %495 = arith.mulf %493, %494 : vector<8x32xf32>
    %c56_128 = arith.constant 56 : index
    %c0_129 = arith.constant 0 : index
    %496 = vector.load %arg20[%c56_128, %c0_129] : memref<64x32xf32, #tpu.memory_space<vmem>>, vector<8x32xf32>
    tpu.vector_store %arg20[%c56_128, %c0_129], %495 {strides = array<i32>} : memref<64x32xf32, #tpu.memory_space<vmem>>, vector<8x32xf32>,
    %c0_130 = arith.constant 0 : index
    %c0_131 = arith.constant 0 : index
    %497 = vector.load %arg20[%c0_130, %c0_131] : memref<64x32xf32, #tpu.memory_space<vmem>>, vector<64x32xf32>
    %c0_132 = arith.constant 0 : index
    %c0_133 = arith.constant 0 : index
    %498 = vector.load %arg13[%c0_132, %c0_133] : memref<32x128xf32, #tpu.memory_space<vmem>>, vector<32x128xf32>
    %cst_134 = arith.constant dense<0.000000e+00> : vector<64x128xf32>
    %499 = tpu.matmul %497, %498, %cst_134 {dimension_numbers = #tpu.dot_dimension_numbers<[1], [0], [0], [1], [0, 0, 1, 1], [], []>} : vector<64x32xf32>, vector<32x128xf32>, vector<64x128xf32> -> vector<64x128xf32>
    %c0_135 = arith.constant 0 : index
    %c0_136 = arith.constant 0 : index
    %500 = vector.load %arg15[%c0_135, %c0_136] : memref<1x128xf32, #tpu.memory_space<vmem>>, vector<1x128xf32>
    %501 = vector.broadcast %500 : vector<1x128xf32> to vector<64x128xf32>
    %502 = arith.addf %499, %501 : vector<64x128xf32>
    %c0_137 = arith.constant 0 : index
    %c0_138 = arith.constant 0 : index
    %503 = vector.load %arg14[%c0_137, %c0_138] : memref<32x128xf32, #tpu.memory_space<vmem>>, vector<32x128xf32>
    %cst_139 = arith.constant 0.000000e+00 : f32
    %504 = vector.broadcast %cst_139 : f32 to vector<8x32xf32>
    %cst_140 = arith.constant 0.000000e+00 : f32
    %505 = vector.broadcast %cst_140 : f32 to vector<8x32xf32>
    %506 = vector.extract_strided_slice %502 {offsets = [0, 0], sizes = [8, 128], strides = [1, 1]} : vector<64x128xf32> to vector<8x128xf32>
    %cst_141 = arith.constant dense<0.000000e+00> : vector<8x128xf32>
    %507 = tpu.matmul %504, %503, %cst_141 {dimension_numbers = #tpu.dot_dimension_numbers<[1], [0], [0], [1], [0, 0, 1, 1], [], []>} : vector<8x32xf32>, vector<32x128xf32>, vector<8x128xf32> -> vector<8x128xf32>
    %508 = arith.addf %506, %507 : vector<8x128xf32>
    %509 = arith.negf %508 : vector<8x128xf32>
    %510 = math.exp %509 : vector<8x128xf32>
    %cst_142 = arith.constant 1.000000e+00 : f32
    %511 = vector.broadcast %cst_142 : f32 to vector<8x128xf32>
    %512 = arith.addf %511, %510 : vector<8x128xf32>
    %513 = arith.divf %511, %512 : vector<8x128xf32>
    %514 = math.tanh %508 : vector<8x128xf32>
    %515 = vector.extract_strided_slice %513 {offsets = [0, 32], sizes = [8, 32], strides = [1, 1]} : vector<8x128xf32> to vector<8x32xf32>
    %516 = arith.mulf %515, %505 : vector<8x32xf32>
    %517 = vector.extract_strided_slice %513 {offsets = [0, 0], sizes = [8, 32], strides = [1, 1]} : vector<8x128xf32> to vector<8x32xf32>
    %518 = vector.extract_strided_slice %514 {offsets = [0, 64], sizes = [8, 32], strides = [1, 1]} : vector<8x128xf32> to vector<8x32xf32>
    %519 = arith.mulf %517, %518 : vector<8x32xf32>
    %520 = arith.addf %516, %519 : vector<8x32xf32>
    %521 = vector.extract_strided_slice %513 {offsets = [0, 96], sizes = [8, 32], strides = [1, 1]} : vector<8x128xf32> to vector<8x32xf32>
    %522 = math.tanh %520 : vector<8x32xf32>
    %523 = arith.mulf %521, %522 : vector<8x32xf32>
    %c0_143 = arith.constant 0 : index
    %c0_144 = arith.constant 0 : index
    %524 = vector.load %arg20[%c0_143, %c0_144] : memref<64x32xf32, #tpu.memory_space<vmem>>, vector<8x32xf32>
    tpu.vector_store %arg20[%c0_143, %c0_144], %523 {strides = array<i32>} : memref<64x32xf32, #tpu.memory_space<vmem>>, vector<8x32xf32>,
    %525 = vector.extract_strided_slice %502 {offsets = [8, 0], sizes = [8, 128], strides = [1, 1]} : vector<64x128xf32> to vector<8x128xf32>
    %cst_145 = arith.constant dense<0.000000e+00> : vector<8x128xf32>
    %526 = tpu.matmul %523, %503, %cst_145 {dimension_numbers = #tpu.dot_dimension_numbers<[1], [0], [0], [1], [0, 0, 1, 1], [], []>} : vector<8x32xf32>, vector<32x128xf32>, vector<8x128xf32> -> vector<8x128xf32>
    %527 = arith.addf %525, %526 : vector<8x128xf32>
    %528 = arith.negf %527 : vector<8x128xf32>
    %529 = math.exp %528 : vector<8x128xf32>
    %cst_146 = arith.constant 1.000000e+00 : f32
    %530 = vector.broadcast %cst_146 : f32 to vector<8x128xf32>
    %531 = arith.addf %530, %529 : vector<8x128xf32>
    %532 = arith.divf %530, %531 : vector<8x128xf32>
    %533 = math.tanh %527 : vector<8x128xf32>
    %534 = vector.extract_strided_slice %532 {offsets = [0, 32], sizes = [8, 32], strides = [1, 1]} : vector<8x128xf32> to vector<8x32xf32>
    %535 = arith.mulf %534, %520 : vector<8x32xf32>
    %536 = vector.extract_strided_slice %532 {offsets = [0, 0], sizes = [8, 32], strides = [1, 1]} : vector<8x128xf32> to vector<8x32xf32>
    %537 = vector.extract_strided_slice %533 {offsets = [0, 64], sizes = [8, 32], strides = [1, 1]} : vector<8x128xf32> to vector<8x32xf32>
    %538 = arith.mulf %536, %537 : vector<8x32xf32>
    %539 = arith.addf %535, %538 : vector<8x32xf32>
    %540 = vector.extract_strided_slice %532 {offsets = [0, 96], sizes = [8, 32], strides = [1, 1]} : vector<8x128xf32> to vector<8x32xf32>
    %541 = math.tanh %539 : vector<8x32xf32>
    %542 = arith.mulf %540, %541 : vector<8x32xf32>
    %c8_147 = arith.constant 8 : index
    %c0_148 = arith.constant 0 : index
    %543 = vector.load %arg20[%c8_147, %c0_148] : memref<64x32xf32, #tpu.memory_space<vmem>>, vector<8x32xf32>
    tpu.vector_store %arg20[%c8_147, %c0_148], %542 {strides = array<i32>} : memref<64x32xf32, #tpu.memory_space<vmem>>, vector<8x32xf32>,
    %544 = vector.extract_strided_slice %502 {offsets = [16, 0], sizes = [8, 128], strides = [1, 1]} : vector<64x128xf32> to vector<8x128xf32>
    %cst_149 = arith.constant dense<0.000000e+00> : vector<8x128xf32>
    %545 = tpu.matmul %542, %503, %cst_149 {dimension_numbers = #tpu.dot_dimension_numbers<[1], [0], [0], [1], [0, 0, 1, 1], [], []>} : vector<8x32xf32>, vector<32x128xf32>, vector<8x128xf32> -> vector<8x128xf32>
    %546 = arith.addf %544, %545 : vector<8x128xf32>
    %547 = arith.negf %546 : vector<8x128xf32>
    %548 = math.exp %547 : vector<8x128xf32>
    %cst_150 = arith.constant 1.000000e+00 : f32
    %549 = vector.broadcast %cst_150 : f32 to vector<8x128xf32>
    %550 = arith.addf %549, %548 : vector<8x128xf32>
    %551 = arith.divf %549, %550 : vector<8x128xf32>
    %552 = math.tanh %546 : vector<8x128xf32>
    %553 = vector.extract_strided_slice %551 {offsets = [0, 32], sizes = [8, 32], strides = [1, 1]} : vector<8x128xf32> to vector<8x32xf32>
    %554 = arith.mulf %553, %539 : vector<8x32xf32>
    %555 = vector.extract_strided_slice %551 {offsets = [0, 0], sizes = [8, 32], strides = [1, 1]} : vector<8x128xf32> to vector<8x32xf32>
    %556 = vector.extract_strided_slice %552 {offsets = [0, 64], sizes = [8, 32], strides = [1, 1]} : vector<8x128xf32> to vector<8x32xf32>
    %557 = arith.mulf %555, %556 : vector<8x32xf32>
    %558 = arith.addf %554, %557 : vector<8x32xf32>
    %559 = vector.extract_strided_slice %551 {offsets = [0, 96], sizes = [8, 32], strides = [1, 1]} : vector<8x128xf32> to vector<8x32xf32>
    %560 = math.tanh %558 : vector<8x32xf32>
    %561 = arith.mulf %559, %560 : vector<8x32xf32>
    %c16_151 = arith.constant 16 : index
    %c0_152 = arith.constant 0 : index
    %562 = vector.load %arg20[%c16_151, %c0_152] : memref<64x32xf32, #tpu.memory_space<vmem>>, vector<8x32xf32>
    tpu.vector_store %arg20[%c16_151, %c0_152], %561 {strides = array<i32>} : memref<64x32xf32, #tpu.memory_space<vmem>>, vector<8x32xf32>,
    %563 = vector.extract_strided_slice %502 {offsets = [24, 0], sizes = [8, 128], strides = [1, 1]} : vector<64x128xf32> to vector<8x128xf32>
    %cst_153 = arith.constant dense<0.000000e+00> : vector<8x128xf32>
    %564 = tpu.matmul %561, %503, %cst_153 {dimension_numbers = #tpu.dot_dimension_numbers<[1], [0], [0], [1], [0, 0, 1, 1], [], []>} : vector<8x32xf32>, vector<32x128xf32>, vector<8x128xf32> -> vector<8x128xf32>
    %565 = arith.addf %563, %564 : vector<8x128xf32>
    %566 = arith.negf %565 : vector<8x128xf32>
    %567 = math.exp %566 : vector<8x128xf32>
    %cst_154 = arith.constant 1.000000e+00 : f32
    %568 = vector.broadcast %cst_154 : f32 to vector<8x128xf32>
    %569 = arith.addf %568, %567 : vector<8x128xf32>
    %570 = arith.divf %568, %569 : vector<8x128xf32>
    %571 = math.tanh %565 : vector<8x128xf32>
    %572 = vector.extract_strided_slice %570 {offsets = [0, 32], sizes = [8, 32], strides = [1, 1]} : vector<8x128xf32> to vector<8x32xf32>
    %573 = arith.mulf %572, %558 : vector<8x32xf32>
    %574 = vector.extract_strided_slice %570 {offsets = [0, 0], sizes = [8, 32], strides = [1, 1]} : vector<8x128xf32> to vector<8x32xf32>
    %575 = vector.extract_strided_slice %571 {offsets = [0, 64], sizes = [8, 32], strides = [1, 1]} : vector<8x128xf32> to vector<8x32xf32>
    %576 = arith.mulf %574, %575 : vector<8x32xf32>
    %577 = arith.addf %573, %576 : vector<8x32xf32>
    %578 = vector.extract_strided_slice %570 {offsets = [0, 96], sizes = [8, 32], strides = [1, 1]} : vector<8x128xf32> to vector<8x32xf32>
    %579 = math.tanh %577 : vector<8x32xf32>
    %580 = arith.mulf %578, %579 : vector<8x32xf32>
    %c24_155 = arith.constant 24 : index
    %c0_156 = arith.constant 0 : index
    %581 = vector.load %arg20[%c24_155, %c0_156] : memref<64x32xf32, #tpu.memory_space<vmem>>, vector<8x32xf32>
    tpu.vector_store %arg20[%c24_155, %c0_156], %580 {strides = array<i32>} : memref<64x32xf32, #tpu.memory_space<vmem>>, vector<8x32xf32>,
    %582 = vector.extract_strided_slice %502 {offsets = [32, 0], sizes = [8, 128], strides = [1, 1]} : vector<64x128xf32> to vector<8x128xf32>
    %cst_157 = arith.constant dense<0.000000e+00> : vector<8x128xf32>
    %583 = tpu.matmul %580, %503, %cst_157 {dimension_numbers = #tpu.dot_dimension_numbers<[1], [0], [0], [1], [0, 0, 1, 1], [], []>} : vector<8x32xf32>, vector<32x128xf32>, vector<8x128xf32> -> vector<8x128xf32>
    %584 = arith.addf %582, %583 : vector<8x128xf32>
    %585 = arith.negf %584 : vector<8x128xf32>
    %586 = math.exp %585 : vector<8x128xf32>
    %cst_158 = arith.constant 1.000000e+00 : f32
    %587 = vector.broadcast %cst_158 : f32 to vector<8x128xf32>
    %588 = arith.addf %587, %586 : vector<8x128xf32>
    %589 = arith.divf %587, %588 : vector<8x128xf32>
    %590 = math.tanh %584 : vector<8x128xf32>
    %591 = vector.extract_strided_slice %589 {offsets = [0, 32], sizes = [8, 32], strides = [1, 1]} : vector<8x128xf32> to vector<8x32xf32>
    %592 = arith.mulf %591, %577 : vector<8x32xf32>
    %593 = vector.extract_strided_slice %589 {offsets = [0, 0], sizes = [8, 32], strides = [1, 1]} : vector<8x128xf32> to vector<8x32xf32>
    %594 = vector.extract_strided_slice %590 {offsets = [0, 64], sizes = [8, 32], strides = [1, 1]} : vector<8x128xf32> to vector<8x32xf32>
    %595 = arith.mulf %593, %594 : vector<8x32xf32>
    %596 = arith.addf %592, %595 : vector<8x32xf32>
    %597 = vector.extract_strided_slice %589 {offsets = [0, 96], sizes = [8, 32], strides = [1, 1]} : vector<8x128xf32> to vector<8x32xf32>
    %598 = math.tanh %596 : vector<8x32xf32>
    %599 = arith.mulf %597, %598 : vector<8x32xf32>
    %c32_159 = arith.constant 32 : index
    %c0_160 = arith.constant 0 : index
    %600 = vector.load %arg20[%c32_159, %c0_160] : memref<64x32xf32, #tpu.memory_space<vmem>>, vector<8x32xf32>
    tpu.vector_store %arg20[%c32_159, %c0_160], %599 {strides = array<i32>} : memref<64x32xf32, #tpu.memory_space<vmem>>, vector<8x32xf32>,
    %601 = vector.extract_strided_slice %502 {offsets = [40, 0], sizes = [8, 128], strides = [1, 1]} : vector<64x128xf32> to vector<8x128xf32>
    %cst_161 = arith.constant dense<0.000000e+00> : vector<8x128xf32>
    %602 = tpu.matmul %599, %503, %cst_161 {dimension_numbers = #tpu.dot_dimension_numbers<[1], [0], [0], [1], [0, 0, 1, 1], [], []>} : vector<8x32xf32>, vector<32x128xf32>, vector<8x128xf32> -> vector<8x128xf32>
    %603 = arith.addf %601, %602 : vector<8x128xf32>
    %604 = arith.negf %603 : vector<8x128xf32>
    %605 = math.exp %604 : vector<8x128xf32>
    %cst_162 = arith.constant 1.000000e+00 : f32
    %606 = vector.broadcast %cst_162 : f32 to vector<8x128xf32>
    %607 = arith.addf %606, %605 : vector<8x128xf32>
    %608 = arith.divf %606, %607 : vector<8x128xf32>
    %609 = math.tanh %603 : vector<8x128xf32>
    %610 = vector.extract_strided_slice %608 {offsets = [0, 32], sizes = [8, 32], strides = [1, 1]} : vector<8x128xf32> to vector<8x32xf32>
    %611 = arith.mulf %610, %596 : vector<8x32xf32>
    %612 = vector.extract_strided_slice %608 {offsets = [0, 0], sizes = [8, 32], strides = [1, 1]} : vector<8x128xf32> to vector<8x32xf32>
    %613 = vector.extract_strided_slice %609 {offsets = [0, 64], sizes = [8, 32], strides = [1, 1]} : vector<8x128xf32> to vector<8x32xf32>
    %614 = arith.mulf %612, %613 : vector<8x32xf32>
    %615 = arith.addf %611, %614 : vector<8x32xf32>
    %616 = vector.extract_strided_slice %608 {offsets = [0, 96], sizes = [8, 32], strides = [1, 1]} : vector<8x128xf32> to vector<8x32xf32>
    %617 = math.tanh %615 : vector<8x32xf32>
    %618 = arith.mulf %616, %617 : vector<8x32xf32>
    %c40_163 = arith.constant 40 : index
    %c0_164 = arith.constant 0 : index
    %619 = vector.load %arg20[%c40_163, %c0_164] : memref<64x32xf32, #tpu.memory_space<vmem>>, vector<8x32xf32>
    tpu.vector_store %arg20[%c40_163, %c0_164], %618 {strides = array<i32>} : memref<64x32xf32, #tpu.memory_space<vmem>>, vector<8x32xf32>,
    %620 = vector.extract_strided_slice %502 {offsets = [48, 0], sizes = [8, 128], strides = [1, 1]} : vector<64x128xf32> to vector<8x128xf32>
    %cst_165 = arith.constant dense<0.000000e+00> : vector<8x128xf32>
    %621 = tpu.matmul %618, %503, %cst_165 {dimension_numbers = #tpu.dot_dimension_numbers<[1], [0], [0], [1], [0, 0, 1, 1], [], []>} : vector<8x32xf32>, vector<32x128xf32>, vector<8x128xf32> -> vector<8x128xf32>
    %622 = arith.addf %620, %621 : vector<8x128xf32>
    %623 = arith.negf %622 : vector<8x128xf32>
    %624 = math.exp %623 : vector<8x128xf32>
    %cst_166 = arith.constant 1.000000e+00 : f32
    %625 = vector.broadcast %cst_166 : f32 to vector<8x128xf32>
    %626 = arith.addf %625, %624 : vector<8x128xf32>
    %627 = arith.divf %625, %626 : vector<8x128xf32>
    %628 = math.tanh %622 : vector<8x128xf32>
    %629 = vector.extract_strided_slice %627 {offsets = [0, 32], sizes = [8, 32], strides = [1, 1]} : vector<8x128xf32> to vector<8x32xf32>
    %630 = arith.mulf %629, %615 : vector<8x32xf32>
    %631 = vector.extract_strided_slice %627 {offsets = [0, 0], sizes = [8, 32], strides = [1, 1]} : vector<8x128xf32> to vector<8x32xf32>
    %632 = vector.extract_strided_slice %628 {offsets = [0, 64], sizes = [8, 32], strides = [1, 1]} : vector<8x128xf32> to vector<8x32xf32>
    %633 = arith.mulf %631, %632 : vector<8x32xf32>
    %634 = arith.addf %630, %633 : vector<8x32xf32>
    %635 = vector.extract_strided_slice %627 {offsets = [0, 96], sizes = [8, 32], strides = [1, 1]} : vector<8x128xf32> to vector<8x32xf32>
    %636 = math.tanh %634 : vector<8x32xf32>
    %637 = arith.mulf %635, %636 : vector<8x32xf32>
    %c48_167 = arith.constant 48 : index
    %c0_168 = arith.constant 0 : index
    %638 = vector.load %arg20[%c48_167, %c0_168] : memref<64x32xf32, #tpu.memory_space<vmem>>, vector<8x32xf32>
    tpu.vector_store %arg20[%c48_167, %c0_168], %637 {strides = array<i32>} : memref<64x32xf32, #tpu.memory_space<vmem>>, vector<8x32xf32>,
    %639 = vector.extract_strided_slice %502 {offsets = [56, 0], sizes = [8, 128], strides = [1, 1]} : vector<64x128xf32> to vector<8x128xf32>
    %cst_169 = arith.constant dense<0.000000e+00> : vector<8x128xf32>
    %640 = tpu.matmul %637, %503, %cst_169 {dimension_numbers = #tpu.dot_dimension_numbers<[1], [0], [0], [1], [0, 0, 1, 1], [], []>} : vector<8x32xf32>, vector<32x128xf32>, vector<8x128xf32> -> vector<8x128xf32>
    %641 = arith.addf %639, %640 : vector<8x128xf32>
    %642 = arith.negf %641 : vector<8x128xf32>
    %643 = math.exp %642 : vector<8x128xf32>
    %cst_170 = arith.constant 1.000000e+00 : f32
    %644 = vector.broadcast %cst_170 : f32 to vector<8x128xf32>
    %645 = arith.addf %644, %643 : vector<8x128xf32>
    %646 = arith.divf %644, %645 : vector<8x128xf32>
    %647 = math.tanh %641 : vector<8x128xf32>
    %648 = vector.extract_strided_slice %646 {offsets = [0, 32], sizes = [8, 32], strides = [1, 1]} : vector<8x128xf32> to vector<8x32xf32>
    %649 = arith.mulf %648, %634 : vector<8x32xf32>
    %650 = vector.extract_strided_slice %646 {offsets = [0, 0], sizes = [8, 32], strides = [1, 1]} : vector<8x128xf32> to vector<8x32xf32>
    %651 = vector.extract_strided_slice %647 {offsets = [0, 64], sizes = [8, 32], strides = [1, 1]} : vector<8x128xf32> to vector<8x32xf32>
    %652 = arith.mulf %650, %651 : vector<8x32xf32>
    %653 = arith.addf %649, %652 : vector<8x32xf32>
    %654 = vector.extract_strided_slice %646 {offsets = [0, 96], sizes = [8, 32], strides = [1, 1]} : vector<8x128xf32> to vector<8x32xf32>
    %655 = math.tanh %653 : vector<8x32xf32>
    %656 = arith.mulf %654, %655 : vector<8x32xf32>
    %c56_171 = arith.constant 56 : index
    %c0_172 = arith.constant 0 : index
    %657 = vector.load %arg20[%c56_171, %c0_172] : memref<64x32xf32, #tpu.memory_space<vmem>>, vector<8x32xf32>
    tpu.vector_store %arg20[%c56_171, %c0_172], %656 {strides = array<i32>} : memref<64x32xf32, #tpu.memory_space<vmem>>, vector<8x32xf32>,
    %c0_173 = arith.constant 0 : index
    %c0_174 = arith.constant 0 : index
    %658 = vector.load %arg20[%c0_173, %c0_174] : memref<64x32xf32, #tpu.memory_space<vmem>>, vector<64x32xf32>
    %c0_175 = arith.constant 0 : index
    %c0_176 = arith.constant 0 : index
    %659 = vector.load %arg16[%c0_175, %c0_176] : memref<32x2xf32, #tpu.memory_space<vmem>>, vector<32x2xf32>
    %cst_177 = arith.constant dense<0.000000e+00> : vector<64x2xf32>
    %660 = tpu.matmul %658, %659, %cst_177 {dimension_numbers = #tpu.dot_dimension_numbers<[1], [0], [0], [1], [0, 0, 1, 1], [], []>} : vector<64x32xf32>, vector<32x2xf32>, vector<64x2xf32> -> vector<64x2xf32>
    %c0_178 = arith.constant 0 : index
    %c0_179 = arith.constant 0 : index
    %661 = vector.load %arg17[%c0_178, %c0_179] : memref<1x2xf32, #tpu.memory_space<vmem>>, vector<1x2xf32>
    %662 = vector.broadcast %661 : vector<1x2xf32> to vector<64x2xf32>
    %663 = arith.addf %660, %662 : vector<64x2xf32>
    %664 = tpu.iota {dimensions = array<i32: 1>} : vector<64x2xi32>
    %c1_i32 = arith.constant 1 : i32
    %665 = vector.broadcast %c1_i32 : i32 to vector<64x2xi32>
    %666 = arith.cmpi eq, %664, %665 : vector<64x2xi32>
    %667 = math.tanh %663 : vector<64x2xf32>
    %668 = arith.select %666, %667, %663 : vector<64x2xi1>, vector<64x2xf32>
    %c0_180 = arith.constant 0 : index
    %c0_181 = arith.constant 0 : index
    %669 = vector.load %arg19[%c0_180, %c0_181] : memref<64x2xf32, #tpu.memory_space<vmem>>, vector<64x2xf32>
    tpu.vector_store %arg19[%c0_180, %c0_181], %668 {strides = array<i32>} : memref<64x2xf32, #tpu.memory_space<vmem>>, vector<64x2xf32>,
    return
  }
}

</mosaic_0001>

<llo_original>
// kernel: lstm_vae_forward.1
$region0: #{lstm_vae_forward.1}
  #allocation0 [shape = 'u32[]', space=smem, size = 0x4, offset = 0x4, fixed_abs, tag = 'smem constant byte address 0x4 - core index']
  #allocation1 [shape = 'u32[144,128]{1,0:T(1,128)}', space=vmem, size = 0x12000, scoped, tag = 'internal scratch']
  #allocation2 [shape = 'f32[64,32]{1,0:T(8,128)}', space=vmem, size = 0x8000, scoped, tag = 'scratch operand']
  %s0 = inlined_call_operand.vmem [shape: f32[64,1], index: 0, kind: input, shape index: {}]
  %s1 = inlined_call_operand.vmem [shape: f32[64,8], index: 1, kind: input, shape index: {}]
  %s2 = inlined_call_operand.vmem [shape: f32[1,128], index: 2, kind: input, shape index: {}]
  %s3 = inlined_call_operand.vmem [shape: f32[32,128], index: 3, kind: input, shape index: {}]
  %s4 = inlined_call_operand.vmem [shape: f32[1,128], index: 4, kind: input, shape index: {}]
  %s5 = inlined_call_operand.vmem [shape: f32[32,128], index: 5, kind: input, shape index: {}]
  %s6 = inlined_call_operand.vmem [shape: f32[32,128], index: 6, kind: input, shape index: {}]
  %s7 = inlined_call_operand.vmem [shape: f32[1,128], index: 7, kind: input, shape index: {}]
  %s8 = inlined_call_operand.vmem [shape: f32[32,16], index: 8, kind: input, shape index: {}]
  %s9 = inlined_call_operand.vmem [shape: f32[1,16], index: 9, kind: input, shape index: {}]
  %s10 = inlined_call_operand.vmem [shape: f32[8,128], index: 10, kind: input, shape index: {}]
  %s11 = inlined_call_operand.vmem [shape: f32[32,128], index: 11, kind: input, shape index: {}]
  %s12 = inlined_call_operand.vmem [shape: f32[1,128], index: 12, kind: input, shape index: {}]
  %s13 = inlined_call_operand.vmem [shape: f32[32,128], index: 13, kind: input, shape index: {}]
  %s14 = inlined_call_operand.vmem [shape: f32[32,128], index: 14, kind: input, shape index: {}]
  %s15 = inlined_call_operand.vmem [shape: f32[1,128], index: 15, kind: input, shape index: {}]
  %s16 = inlined_call_operand.vmem [shape: f32[32,2], index: 16, kind: input, shape index: {}]
  %s17 = inlined_call_operand.vmem [shape: f32[1,2], index: 17, kind: input, shape index: {}]
  %s18 = inlined_call_operand.vmem [shape: f32[64,8], index: 18, kind: output, shape index: {0}]
  %s19 = inlined_call_operand.vmem [shape: f32[64,2], index: 19, kind: output, shape index: {1}]
  %20 = xla_tuple %s18, %s19
  %s21 = sld [smem:[#allocation0]]
  $region90: #{lstm_vae_forward.1} parent=0
    _
  %s23 = ssub.s32 1, %s21
  %s24 = scalar_select 0, %s23, %s21
  // Predicated region
  $region2: #{lstm_vae_forward.1} parent=0 // pred_check
    _
  $region3: #{lstm_vae_forward.1} parent=0 // pred_check_branch
    %26 = sbr.rel (0) target = $region5
  $region4: #{lstm_vae_forward.1} parent=0 // pred_region
    _
  $region5: #{lstm_vae_forward.1} parent=0 // pred_fallthru
    _
  // Predicated region
  $region6: #{lstm_vae_forward.1} parent=0 // pred_check
    _
  $region7: #{lstm_vae_forward.1} parent=0 // pred_check_branch
    %28 = sbr.rel (0) target = $region9
  $region8: #{lstm_vae_forward.1} parent=0 // pred_region
    _
  $region9: #{lstm_vae_forward.1} parent=0 // pred_fallthru
    _
  // Predicated region
  $region10: #{lstm_vae_forward.1} parent=0 // pred_check
    _
  $region11: #{lstm_vae_forward.1} parent=0 // pred_check_branch
    %30 = sbr.rel (0) target = $region13
  $region12: #{lstm_vae_forward.1} parent=0 // pred_region
    _
  $region13: #{lstm_vae_forward.1} parent=0 // pred_fallthru
    _
  // Predicated region
  $region14: #{lstm_vae_forward.1} parent=0 // pred_check
    _
  $region15: #{lstm_vae_forward.1} parent=0 // pred_check_branch
    %32 = sbr.rel (0) target = $region17
  $region16: #{lstm_vae_forward.1} parent=0 // pred_region
    _
  $region17: #{lstm_vae_forward.1} parent=0 // pred_fallthru
    _
  // Predicated region
  $region18: #{lstm_vae_forward.1} parent=0 // pred_check
    _
  $region19: #{lstm_vae_forward.1} parent=0 // pred_check_branch
    %34 = sbr.rel (0) target = $region21
  $region20: #{lstm_vae_forward.1} parent=0 // pred_region
    _
  $region21: #{lstm_vae_forward.1} parent=0 // pred_fallthru
    _
  // Predicated region
  $region22: #{lstm_vae_forward.1} parent=0 // pred_check
    _
  $region23: #{lstm_vae_forward.1} parent=0 // pred_check_branch
    %36 = sbr.rel (0) target = $region25
  $region24: #{lstm_vae_forward.1} parent=0 // pred_region
    _
  $region25: #{lstm_vae_forward.1} parent=0 // pred_fallthru
    _
  // Predicated region
  $region26: #{lstm_vae_forward.1} parent=0 // pred_check
    _
  $region27: #{lstm_vae_forward.1} parent=0 // pred_check_branch
    %38 = sbr.rel (0) target = $region29
  $region28: #{lstm_vae_forward.1} parent=0 // pred_region
    _
  $region29: #{lstm_vae_forward.1} parent=0 // pred_fallthru
    _
  // Predicated region
  $region30: #{lstm_vae_forward.1} parent=0 // pred_check
    _
  $region31: #{lstm_vae_forward.1} parent=0 // pred_check_branch
    %40 = sbr.rel (0) target = $region33
  $region32: #{lstm_vae_forward.1} parent=0 // pred_region
    _
  $region33: #{lstm_vae_forward.1} parent=0 // pred_fallthru
    _
  // Predicated region
  $region34: #{lstm_vae_forward.1} parent=0 // pred_check
    _
  $region35: #{lstm_vae_forward.1} parent=0 // pred_check_branch
    %42 = sbr.rel (0) target = $region37
  $region36: #{lstm_vae_forward.1} parent=0 // pred_region
    _
  $region37: #{lstm_vae_forward.1} parent=0 // pred_fallthru
    _
  // Predicated region
  $region38: #{lstm_vae_forward.1} parent=0 // pred_check
    _
  $region39: #{lstm_vae_forward.1} parent=0 // pred_check_branch
    %44 = sbr.rel (0) target = $region41
  $region40: #{lstm_vae_forward.1} parent=0 // pred_region
    _
  $region41: #{lstm_vae_forward.1} parent=0 // pred_fallthru
    _
  // Predicated region
  $region42: #{lstm_vae_forward.1} parent=0 // pred_check
    _
  $region43: #{lstm_vae_forward.1} parent=0 // pred_check_branch
    %46 = sbr.rel (0) target = $region45
  $region44: #{lstm_vae_forward.1} parent=0 // pred_region
    _
  $region45: #{lstm_vae_forward.1} parent=0 // pred_fallthru
    _
  // Predicated region
  $region46: #{lstm_vae_forward.1} parent=0 // pred_check
    _
  $region47: #{lstm_vae_forward.1} parent=0 // pred_check_branch
    %48 = sbr.rel (0) target = $region49
  $region48: #{lstm_vae_forward.1} parent=0 // pred_region
    _
  $region49: #{lstm_vae_forward.1} parent=0 // pred_fallthru
    _
  // Predicated region
  $region50: #{lstm_vae_forward.1} parent=0 // pred_check
    _
  $region51: #{lstm_vae_forward.1} parent=0 // pred_check_branch
    %50 = sbr.rel (0) target = $region53
  $region52: #{lstm_vae_forward.1} parent=0 // pred_region
    _
  $region53: #{lstm_vae_forward.1} parent=0 // pred_fallthru
    _
  // Predicated region
  $region54: #{lstm_vae_forward.1} parent=0 // pred_check
    _
  $region55: #{lstm_vae_forward.1} parent=0 // pred_check_branch
    %52 = sbr.rel (0) target = $region57
  $region56: #{lstm_vae_forward.1} parent=0 // pred_region
    _
  $region57: #{lstm_vae_forward.1} parent=0 // pred_fallthru
    _
  // Predicated region
  $region58: #{lstm_vae_forward.1} parent=0 // pred_check
    _
  $region59: #{lstm_vae_forward.1} parent=0 // pred_check_branch
    %54 = sbr.rel (0) target = $region61
  $region60: #{lstm_vae_forward.1} parent=0 // pred_region
    _
  $region61: #{lstm_vae_forward.1} parent=0 // pred_fallthru
    _
  // Predicated region
  $region62: #{lstm_vae_forward.1} parent=0 // pred_check
    _
  $region63: #{lstm_vae_forward.1} parent=0 // pred_check_branch
    %56 = sbr.rel (0) target = $region65
  $region64: #{lstm_vae_forward.1} parent=0 // pred_region
    _
  $region65: #{lstm_vae_forward.1} parent=0 // pred_fallthru
    _
  // Predicated region
  $region66: #{lstm_vae_forward.1} parent=0 // pred_check
    _
  $region67: #{lstm_vae_forward.1} parent=0 // pred_check_branch
    %58 = sbr.rel (0) target = $region69
  $region68: #{lstm_vae_forward.1} parent=0 // pred_region
    _
  $region69: #{lstm_vae_forward.1} parent=0 // pred_fallthru
    _
  // Predicated region
  $region70: #{lstm_vae_forward.1} parent=0 // pred_check
    _
  $region71: #{lstm_vae_forward.1} parent=0 // pred_check_branch
    %60 = sbr.rel (0) target = $region73
  $region72: #{lstm_vae_forward.1} parent=0 // pred_region
    _
  $region73: #{lstm_vae_forward.1} parent=0 // pred_fallthru
    _
  %v61 = vld [vmem:[%s0] sm:$0xff]
  %v62 = vld [vmem:[%s0 + $0x8] sm:$0xff]
  %v63 = vld [vmem:[%s0 + $0x10] sm:$0xff]
  %v64 = vld [vmem:[%s0 + $0x18] sm:$0xff]
  %v65 = vld [vmem:[%s0 + $0x20] sm:$0xff]
  %v66 = vld [vmem:[%s0 + $0x28] sm:$0xff]
  %v67 = vld [vmem:[%s0 + $0x30] sm:$0xff]
  %v68 = vld [vmem:[%s0 + $0x38] sm:$0xff]
  %v69 = vld [vmem:[%s2] sm:$0x1]
  %v70 = vld [vmem:[%s4] sm:$0x1]
  %v72 = vlaneseq
  %v73 = vshrl.u32 %v72, 7
  %v74 = vsub.s32 0, %v73
  %v75 = vrot.slane %v70, %v74
  %vm77 = vcmask 7168
  %v79 = vsel %vm77, %v61, 0
  %v82 = vsel %vm77, %v62, 0
  %v85 = vsel %vm77, %v63, 0
  %v88 = vsel %vm77, %v64, 0
  %v91 = vsel %vm77, %v65, 0
  %v94 = vsel %vm77, %v66, 0
  %v97 = vsel %vm77, %v67, 0
  %v100 = vsel %vm77, %v68, 0
  %vm102 = vcmask 1040384
  %v104 = vsel %vm102, %v69, 0
  %106 = vmatprep.subr.mxu0 0.0
  %107 = vmatpush1.msra.mxu0 %v104
  %108 = vmatprep.subr.mxu0 0.0
  %109 = vmatpush1.msra.mxu0 0.0
  %110 = vmatprep.subr.mxu0 0.0
  %111 = vmatpush1.msra.mxu0 0.0
  %112 = vmatprep.subr.mxu0 0.0
  %113 = vmatpush1.msra.mxu0 0.0
  %114 = vmatprep.subr.mxu0 0.0
  %115 = vmatpush1.msra.mxu0 0.0
  %116 = vmatprep.subr.mxu0 0.0
  %117 = vmatpush1.msra.mxu0 0.0
  %118 = vmatprep.subr.mxu0 0.0
  %119 = vmatpush1.msra.mxu0 0.0
  %120 = vmatprep.subr.mxu0 0.0
  %121 = vmatpush1.msra.mxu0 0.0
  %122 = vmatprep.subr.mxu0 0.0
  %123 = vmatpush1.msra.mxu0 0.0
  %124 = vmatprep.subr.mxu0 0.0
  %125 = vmatpush1.msra.mxu0 0.0
  %126 = vmatprep.subr.mxu0 0.0
  %127 = vmatpush1.msra.mxu0 0.0
  %128 = vmatprep.subr.mxu0 0.0
  %129 = vmatpush1.msra.mxu0 0.0
  %130 = vmatprep.subr.mxu0 0.0
  %131 = vmatpush1.msra.mxu0 0.0
  %132 = vmatprep.subr.mxu0 0.0
  %133 = vmatpush1.msra.mxu0 0.0
  %134 = vmatprep.subr.mxu0 0.0
  %135 = vmatpush1.msra.mxu0 0.0
  %136 = vmatprep.subr.mxu0 0.0
  %137 = vmatpush1.msra.mxu0 0.0
  %138 = vmatprep.subr.mxu0 0.0
  %139 = vmatpush1.msra.mxu0 0.0
  %140 = vmatprep.subr.mxu0 0.0
  %141 = vmatpush1.msra.mxu0 0.0
  %142 = vmatprep.subr.mxu0 0.0
  %143 = vmatpush1.msra.mxu0 0.0
  %144 = vmatprep.subr.mxu0 0.0
  %145 = vmatpush1.msra.mxu0 0.0
  %146 = vmatprep.subr.mxu0 0.0
  %147 = vmatpush1.msra.mxu0 0.0
  %148 = vmatprep.subr.mxu0 0.0
  %149 = vmatpush1.msra.mxu0 0.0
  %150 = vmatprep.subr.mxu0 0.0
  %151 = vmatpush1.msra.mxu0 0.0
  %152 = vmatprep.subr.mxu0 0.0
  %153 = vmatpush1.msra.mxu0 0.0
  %154 = vmatprep.subr.mxu0 0.0
  %155 = vmatpush1.msra.mxu0 0.0
  %156 = vmatprep.subr.mxu0 0.0
  %157 = vmatpush1.msra.mxu0 0.0
  %158 = vmatprep.subr.mxu0 0.0
  %159 = vmatpush1.msra.mxu0 0.0
  %160 = vmatprep.subr.mxu0 0.0
  %161 = vmatpush1.msra.mxu0 0.0
  %162 = vmatprep.subr.mxu0 0.0
  %163 = vmatpush1.msra.mxu0 0.0
  %164 = vmatprep.subr.mxu0 0.0
  %165 = vmatpush1.msra.mxu0 0.0
  %166 = vmatprep.subr.mxu0 0.0
  %167 = vmatpush1.msra.mxu0 0.0
  %168 = vmatprep.subr.mxu0 0.0
  %169 = vmatpush1.msra.mxu0 0.0
  %170 = vmatprep.mubr.f32.mxu0 0.0
  %171 = vmatmul.mubr.f32.gmra.mrb[0].mxu0 %v79
  %v172 = vpop.f32.mrb[0].mxu0
  %v173 = vadd.f32 %v75, %v172
  %v174 = vpop.f32.mrb[0].mxu0
  %175 = vmatprep.mubr.f32.mxu0 0.0
  %176 = vmatmul.mubr.f32.gmra.mrb[0].mxu0 %v82
  %v177 = vpop.f32.mrb[0].mxu0
  %v178 = vadd.f32 %v75, %v177
  %v179 = vpop.f32.mrb[0].mxu0
  %180 = vmatprep.mubr.f32.mxu0 0.0
  %181 = vmatmul.mubr.f32.gmra.mrb[0].mxu0 %v85
  %v182 = vpop.f32.mrb[0].mxu0
  %v183 = vadd.f32 %v75, %v182
  %v184 = vpop.f32.mrb[0].mxu0
  %185 = vmatprep.mubr.f32.mxu0 0.0
  %186 = vmatmul.mubr.f32.gmra.mrb[0].mxu0 %v88
  %v187 = vpop.f32.mrb[0].mxu0
  %v188 = vadd.f32 %v75, %v187
  %v189 = vpop.f32.mrb[0].mxu0
  %190 = vmatprep.mubr.f32.mxu0 0.0
  %191 = vmatmul.mubr.f32.gmra.mrb[0].mxu0 %v91
  %v192 = vpop.f32.mrb[0].mxu0
  %v193 = vadd.f32 %v75, %v192
  %v194 = vpop.f32.mrb[0].mxu0
  %195 = vmatprep.mubr.f32.mxu0 0.0
  %196 = vmatmul.mubr.f32.gmra.mrb[0].mxu0 %v94
  %v197 = vpop.f32.mrb[0].mxu0
  %v198 = vadd.f32 %v75, %v197
  %v199 = vpop.f32.mrb[0].mxu0
  %200 = vmatprep.mubr.f32.mxu0 0.0
  %201 = vmatmul.mubr.f32.gmra.mrb[0].mxu0 %v97
  %v202 = vpop.f32.mrb[0].mxu0
  %v203 = vadd.f32 %v75, %v202
  %v204 = vpop.f32.mrb[0].mxu0
  %205 = vmatprep.mubr.f32.mxu0 0.0
  %206 = vmatmul.mubr.f32.gmra.mrb[0].mxu0 %v100
  %v207 = vpop.f32.mrb[0].mxu0
  %v208 = vadd.f32 %v75, %v207
  %v209 = vpop.f32.mrb[0].mxu0
  %210 = vdwg.mxu0
  %v211 = vld [vmem:[%s3] sm:$0xff]
  %v212 = vld [vmem:[%s3 + $0x8] sm:$0xff]
  %v213 = vld [vmem:[%s3 + $0x10] sm:$0xff]
  %v214 = vld [vmem:[%s3 + $0x18] sm:$0xff]
  %vm215 = vcmask 261120
  %v217 = vsel %vm215, 0.0, 0
  %219 = vmatprep.subr.mxu0 0.0
  %220 = vmatpush1.msra.mxu0 %v211
  %221 = vmatprep.subr.mxu0 0.0
  %222 = vmatpush1.msra.mxu0 %v212
  %223 = vmatprep.subr.mxu0 0.0
  %224 = vmatpush1.msra.mxu0 %v213
  %225 = vmatprep.subr.mxu0 0.0
  %226 = vmatpush1.msra.mxu0 %v214
  %227 = vmatprep.subr.mxu0 0.0
  %228 = vmatpush1.msra.mxu0 0.0
  %229 = vmatprep.subr.mxu0 0.0
  %230 = vmatpush1.msra.mxu0 0.0
  %231 = vmatprep.subr.mxu0 0.0
  %232 = vmatpush1.msra.mxu0 0.0
  %233 = vmatprep.subr.mxu0 0.0
  %234 = vmatpush1.msra.mxu0 0.0
  %235 = vmatprep.subr.mxu0 0.0
  %236 = vmatpush1.msra.mxu0 0.0
  %237 = vmatprep.subr.mxu0 0.0
  %238 = vmatpush1.msra.mxu0 0.0
  %239 = vmatprep.subr.mxu0 0.0
  %240 = vmatpush1.msra.mxu0 0.0
  %241 = vmatprep.subr.mxu0 0.0
  %242 = vmatpush1.msra.mxu0 0.0
  %243 = vmatprep.subr.mxu0 0.0
  %244 = vmatpush1.msra.mxu0 0.0
  %245 = vmatprep.subr.mxu0 0.0
  %246 = vmatpush1.msra.mxu0 0.0
  %247 = vmatprep.subr.mxu0 0.0
  %248 = vmatpush1.msra.mxu0 0.0
  %249 = vmatprep.subr.mxu0 0.0
  %250 = vmatpush1.msra.mxu0 0.0
  %251 = vmatprep.subr.mxu0 0.0
  %252 = vmatpush1.msra.mxu0 0.0
  %253 = vmatprep.subr.mxu0 0.0
  %254 = vmatpush1.msra.mxu0 0.0
  %255 = vmatprep.subr.mxu0 0.0
  %256 = vmatpush1.msra.mxu0 0.0
  %257 = vmatprep.subr.mxu0 0.0
  %258 = vmatpush1.msra.mxu0 0.0
  %259 = vmatprep.subr.mxu0 0.0
  %260 = vmatpush1.msra.mxu0 0.0
  %261 = vmatprep.subr.mxu0 0.0
  %262 = vmatpush1.msra.mxu0 0.0
  %263 = vmatprep.subr.mxu0 0.0
  %264 = vmatpush1.msra.mxu0 0.0
  %265 = vmatprep.subr.mxu0 0.0
  %266 = vmatpush1.msra.mxu0 0.0
  %267 = vmatprep.subr.mxu0 0.0
  %268 = vmatpush1.msra.mxu0 0.0
  %269 = vmatprep.subr.mxu0 0.0
  %270 = vmatpush1.msra.mxu0 0.0
  %271 = vmatprep.subr.mxu0 0.0
  %272 = vmatpush1.msra.mxu0 0.0
  %273 = vmatprep.subr.mxu0 0.0
  %274 = vmatpush1.msra.mxu0 0.0
  %275 = vmatprep.subr.mxu0 0.0
  %276 = vmatpush1.msra.mxu0 0.0
  %277 = vmatprep.subr.mxu0 0.0
  %278 = vmatpush1.msra.mxu0 0.0
  %279 = vmatprep.subr.mxu0 0.0
  %280 = vmatpush1.msra.mxu0 0.0
  %281 = vmatprep.subr.mxu0 0.0
  %282 = vmatpush1.msra.mxu0 0.0
  %283 = vmatprep.mubr.f32.mxu0 0.0
  %284 = vmatmul.mubr.f32.gmra.mrb[0].mxu0 %v217
  %v285 = vpop.f32.mrb[0].mxu0
  %v286 = vadd.f32 0.0, %v285
  %v287 = vpop.f32.mrb[0].mxu0
  %288 = vdwg.mxu0
  %v289 = vadd.f32 %v173, %v286
  %v290 = vxor.u32 %v289, 2147483648
  %v291 = vmul.f32 %v290, 1.442695
  %v292 = vpow.pop %v291
  %v293 = vadd.f32 %v292, 1.0
  %v294 = vrcp.pop %v293
  %v295 = vmul.f32 1.0, %v294
  %v296 = vtanh.pop %v289
  %v297 = vmul.f32 %v295, 0.0
  %299 = vrot.lane.b32.xlu0 %v296, 64
  %v300 = vpop.permute.xlu0 %299
  %v302 = vmul.f32 %v295, %v300
  %304 = vrot.lane.b32.xlu0 %v302, 32
  %v305 = vpop.permute.xlu0 %304
  %v307 = vadd.f32 %v297, %v305
  %v308 = vtanh.pop %v307
  %310 = vrot.lane.b32.xlu0 %v308, 64
  %v311 = vpop.permute.xlu0 %310
  %v313 = vmul.f32 %v295, %v311
  %315 = vrot.lane.b32.xlu0 %v313, 32
  %v316 = vpop.permute.xlu0 %315
  %318 = vst.msk [vmem:[#allocation2] sm:$0xff] %vm215, %v316
  %v319 = vsel %vm215, %v316, 0
  %321 = vmatprep.subr.mxu0 0.0
  %322 = vmatpush1.msra.mxu0 %v211
  %323 = vmatprep.subr.mxu0 0.0
  %324 = vmatpush1.msra.mxu0 %v212
  %325 = vmatprep.subr.mxu0 0.0
  %326 = vmatpush1.msra.mxu0 %v213
  %327 = vmatprep.subr.mxu0 0.0
  %328 = vmatpush1.msra.mxu0 %v214
  %329 = vmatprep.subr.mxu0 0.0
  %330 = vmatpush1.msra.mxu0 0.0
  %331 = vmatprep.subr.mxu0 0.0
  %332 = vmatpush1.msra.mxu0 0.0
  %333 = vmatprep.subr.mxu0 0.0
  %334 = vmatpush1.msra.mxu0 0.0
  %335 = vmatprep.subr.mxu0 0.0
  %336 = vmatpush1.msra.mxu0 0.0
  %337 = vmatprep.subr.mxu0 0.0
  %338 = vmatpush1.msra.mxu0 0.0
  %339 = vmatprep.subr.mxu0 0.0
  %340 = vmatpush1.msra.mxu0 0.0
  %341 = vmatprep.subr.mxu0 0.0
  %342 = vmatpush1.msra.mxu0 0.0
  %343 = vmatprep.subr.mxu0 0.0
  %344 = vmatpush1.msra.mxu0 0.0
  %345 = vmatprep.subr.mxu0 0.0
  %346 = vmatpush1.msra.mxu0 0.0
  %347 = vmatprep.subr.mxu0 0.0
  %348 = vmatpush1.msra.mxu0 0.0
  %349 = vmatprep.subr.mxu0 0.0
  %350 = vmatpush1.msra.mxu0 0.0
  %351 = vmatprep.subr.mxu0 0.0
  %352 = vmatpush1.msra.mxu0 0.0
  %353 = vmatprep.subr.mxu0 0.0
  %354 = vmatpush1.msra.mxu0 0.0
  %355 = vmatprep.subr.mxu0 0.0
  %356 = vmatpush1.msra.mxu0 0.0
  %357 = vmatprep.subr.mxu0 0.0
  %358 = vmatpush1.msra.mxu0 0.0
  %359 = vmatprep.subr.mxu0 0.0
  %360 = vmatpush1.msra.mxu0 0.0
  %361 = vmatprep.subr.mxu0 0.0
  %362 = vmatpush1.msra.mxu0 0.0
  %363 = vmatprep.subr.mxu0 0.0
  %364 = vmatpush1.msra.mxu0 0.0
  %365 = vmatprep.subr.mxu0 0.0
  %366 = vmatpush1.msra.mxu0 0.0
  %367 = vmatprep.subr.mxu0 0.0
  %368 = vmatpush1.msra.mxu0 0.0
  %369 = vmatprep.subr.mxu0 0.0
  %370 = vmatpush1.msra.mxu0 0.0
  %371 = vmatprep.subr.mxu0 0.0
  %372 = vmatpush1.msra.mxu0 0.0
  %373 = vmatprep.subr.mxu0 0.0
  %374 = vmatpush1.msra.mxu0 0.0
  %375 = vmatprep.subr.mxu0 0.0
  %376 = vmatpush1.msra.mxu0 0.0
  %377 = vmatprep.subr.mxu0 0.0
  %378 = vmatpush1.msra.mxu0 0.0
  %379 = vmatprep.subr.mxu0 0.0
  %380 = vmatpush1.msra.mxu0 0.0
  %381 = vmatprep.subr.mxu0 0.0
  %382 = vmatpush1.msra.mxu0 0.0
  %383 = vmatprep.subr.mxu0 0.0
  %384 = vmatpush1.msra.mxu0 0.0
  %385 = vmatprep.mubr.f32.mxu0 0.0
  %386 = vmatmul.mubr.f32.gmra.mrb[0].mxu0 %v319
  %v387 = vpop.f32.mrb[0].mxu0
  %v388 = vadd.f32 0.0, %v387
  %v389 = vpop.f32.mrb[0].mxu0
  %390 = vdwg.mxu0
  %v391 = vadd.f32 %v178, %v388
  %v392 = vxor.u32 %v391, 2147483648
  %v393 = vmul.f32 %v392, 1.442695
  %v394 = vpow.pop %v393
  %v395 = vadd.f32 %v394, 1.0
  %v396 = vrcp.pop %v395
  %v397 = vmul.f32 1.0, %v396
  %v398 = vtanh.pop %v391
  %v399 = vmul.f32 %v397, %v307
  %401 = vrot.lane.b32.xlu0 %v398, 64
  %v402 = vpop.permute.xlu0 %401
  %v404 = vmul.f32 %v397, %v402
  %406 = vrot.lane.b32.xlu0 %v404, 32
  %v407 = vpop.permute.xlu0 %406
  %v409 = vadd.f32 %v399, %v407
  %v410 = vtanh.pop %v409
  %412 = vrot.lane.b32.xlu0 %v410, 64
  %v413 = vpop.permute.xlu0 %412
  %v415 = vmul.f32 %v397, %v413
  %417 = vrot.lane.b32.xlu0 %v415, 32
  %v418 = vpop.permute.xlu0 %417
  %420 = vst.msk [vmem:[#allocation2 + $0x8] sm:$0xff] %vm215, %v418
  %v421 = vsel %vm215, %v418, 0
  %423 = vmatprep.subr.mxu0 0.0
  %424 = vmatpush1.msra.mxu0 %v211
  %425 = vmatprep.subr.mxu0 0.0
  %426 = vmatpush1.msra.mxu0 %v212
  %427 = vmatprep.subr.mxu0 0.0
  %428 = vmatpush1.msra.mxu0 %v213
  %429 = vmatprep.subr.mxu0 0.0
  %430 = vmatpush1.msra.mxu0 %v214
  %431 = vmatprep.subr.mxu0 0.0
  %432 = vmatpush1.msra.mxu0 0.0
  %433 = vmatprep.subr.mxu0 0.0
  %434 = vmatpush1.msra.mxu0 0.0
  %435 = vmatprep.subr.mxu0 0.0
  %436 = vmatpush1.msra.mxu0 0.0
  %437 = vmatprep.subr.mxu0 0.0
  %438 = vmatpush1.msra.mxu0 0.0
  %439 = vmatprep.subr.mxu0 0.0
  %440 = vmatpush1.msra.mxu0 0.0
  %441 = vmatprep.subr.mxu0 0.0
  %442 = vmatpush1.msra.mxu0 0.0
  %443 = vmatprep.subr.mxu0 0.0
  %444 = vmatpush1.msra.mxu0 0.0
  %445 = vmatprep.subr.mxu0 0.0
  %446 = vmatpush1.msra.mxu0 0.0
  %447 = vmatprep.subr.mxu0 0.0
  %448 = vmatpush1.msra.mxu0 0.0
  %449 = vmatprep.subr.mxu0 0.0
  %450 = vmatpush1.msra.mxu0 0.0
  %451 = vmatprep.subr.mxu0 0.0
  %452 = vmatpush1.msra.mxu0 0.0
  %453 = vmatprep.subr.mxu0 0.0
  %454 = vmatpush1.msra.mxu0 0.0
  %455 = vmatprep.subr.mxu0 0.0
  %456 = vmatpush1.msra.mxu0 0.0
  %457 = vmatprep.subr.mxu0 0.0
  %458 = vmatpush1.msra.mxu0 0.0
  %459 = vmatprep.subr.mxu0 0.0
  %460 = vmatpush1.msra.mxu0 0.0
  %461 = vmatprep.subr.mxu0 0.0
  %462 = vmatpush1.msra.mxu0 0.0
  %463 = vmatprep.subr.mxu0 0.0
  %464 = vmatpush1.msra.mxu0 0.0
  %465 = vmatprep.subr.mxu0 0.0
  %466 = vmatpush1.msra.mxu0 0.0
  %467 = vmatprep.subr.mxu0 0.0
  %468 = vmatpush1.msra.mxu0 0.0
  %469 = vmatprep.subr.mxu0 0.0
  %470 = vmatpush1.msra.mxu0 0.0
  %471 = vmatprep.subr.mxu0 0.0
  %472 = vmatpush1.msra.mxu0 0.0
  %473 = vmatprep.subr.mxu0 0.0
  %474 = vmatpush1.msra.mxu0 0.0
  %475 = vmatprep.subr.mxu0 0.0
  %476 = vmatpush1.msra.mxu0 0.0
  %477 = vmatprep.subr.mxu0 0.0
  %478 = vmatpush1.msra.mxu0 0.0
  %479 = vmatprep.subr.mxu0 0.0
  %480 = vmatpush1.msra.mxu0 0.0
  %481 = vmatprep.subr.mxu0 0.0
  %482 = vmatpush1.msra.mxu0 0.0
  %483 = vmatprep.subr.mxu0 0.0
  %484 = vmatpush1.msra.mxu0 0.0
  %485 = vmatprep.subr.mxu0 0.0
  %486 = vmatpush1.msra.mxu0 0.0
  %487 = vmatprep.mubr.f32.mxu0 0.0
  %488 = vmatmul.mubr.f32.gmra.mrb[0].mxu0 %v421
  %v489 = vpop.f32.mrb[0].mxu0
  %v490 = vadd.f32 0.0, %v489
  %v491 = vpop.f32.mrb[0].mxu0
  %492 = vdwg.mxu0
  %v493 = vadd.f32 %v183, %v490
  %v494 = vxor.u32 %v493, 2147483648
  %v495 = vmul.f32 %v494, 1.442695
  %v496 = vpow.pop %v495
  %v497 = vadd.f32 %v496, 1.0
  %v498 = vrcp.pop %v497
  %v499 = vmul.f32 1.0, %v498
  %v500 = vtanh.pop %v493
  %v501 = vmul.f32 %v499, %v409
  %503 = vrot.lane.b32.xlu0 %v500, 64
  %v504 = vpop.permute.xlu0 %503
  %v506 = vmul.f32 %v499, %v504
  %508 = vrot.lane.b32.xlu0 %v506, 32
  %v509 = vpop.permute.xlu0 %508
  %v511 = vadd.f32 %v501, %v509
  %v512 = vtanh.pop %v511
  %514 = vrot.lane.b32.xlu0 %v512, 64
  %v515 = vpop.permute.xlu0 %514
  %v517 = vmul.f32 %v499, %v515
  %519 = vrot.lane.b32.xlu0 %v517, 32
  %v520 = vpop.permute.xlu0 %519
  %522 = vst.msk [vmem:[#allocation2 + $0x10] sm:$0xff] %vm215, %v520
  %v523 = vsel %vm215, %v520, 0
  %525 = vmatprep.subr.mxu0 0.0
  %526 = vmatpush1.msra.mxu0 %v211
  %527 = vmatprep.subr.mxu0 0.0
  %528 = vmatpush1.msra.mxu0 %v212
  %529 = vmatprep.subr.mxu0 0.0
  %530 = vmatpush1.msra.mxu0 %v213
  %531 = vmatprep.subr.mxu0 0.0
  %532 = vmatpush1.msra.mxu0 %v214
  %533 = vmatprep.subr.mxu0 0.0
  %534 = vmatpush1.msra.mxu0 0.0
  %535 = vmatprep.subr.mxu0 0.0
  %536 = vmatpush1.msra.mxu0 0.0
  %537 = vmatprep.subr.mxu0 0.0
  %538 = vmatpush1.msra.mxu0 0.0
  %539 = vmatprep.subr.mxu0 0.0
  %540 = vmatpush1.msra.mxu0 0.0
  %541 = vmatprep.subr.mxu0 0.0
  %542 = vmatpush1.msra.mxu0 0.0
  %543 = vmatprep.subr.mxu0 0.0
  %544 = vmatpush1.msra.mxu0 0.0
  %545 = vmatprep.subr.mxu0 0.0
  %546 = vmatpush1.msra.mxu0 0.0
  %547 = vmatprep.subr.mxu0 0.0
  %548 = vmatpush1.msra.mxu0 0.0
  %549 = vmatprep.subr.mxu0 0.0
  %550 = vmatpush1.msra.mxu0 0.0
  %551 = vmatprep.subr.mxu0 0.0
  %552 = vmatpush1.msra.mxu0 0.0
  %553 = vmatprep.subr.mxu0 0.0
  %554 = vmatpush1.msra.mxu0 0.0
  %555 = vmatprep.subr.mxu0 0.0
  %556 = vmatpush1.msra.mxu0 0.0
  %557 = vmatprep.subr.mxu0 0.0
  %558 = vmatpush1.msra.mxu0 0.0
  %559 = vmatprep.subr.mxu0 0.0
  %560 = vmatpush1.msra.mxu0 0.0
  %561 = vmatprep.subr.mxu0 0.0
  %562 = vmatpush1.msra.mxu0 0.0
  %563 = vmatprep.subr.mxu0 0.0
  %564 = vmatpush1.msra.mxu0 0.0
  %565 = vmatprep.subr.mxu0 0.0
  %566 = vmatpush1.msra.mxu0 0.0
  %567 = vmatprep.subr.mxu0 0.0
  %568 = vmatpush1.msra.mxu0 0.0
  %569 = vmatprep.subr.mxu0 0.0
  %570 = vmatpush1.msra.mxu0 0.0
  %571 = vmatprep.subr.mxu0 0.0
  %572 = vmatpush1.msra.mxu0 0.0
  %573 = vmatprep.subr.mxu0 0.0
  %574 = vmatpush1.msra.mxu0 0.0
  %575 = vmatprep.subr.mxu0 0.0
  %576 = vmatpush1.msra.mxu0 0.0
  %577 = vmatprep.subr.mxu0 0.0
  %578 = vmatpush1.msra.mxu0 0.0
  %579 = vmatprep.subr.mxu0 0.0
  %580 = vmatpush1.msra.mxu0 0.0
  %581 = vmatprep.subr.mxu0 0.0
  %582 = vmatpush1.msra.mxu0 0.0
  %583 = vmatprep.subr.mxu0 0.0
  %584 = vmatpush1.msra.mxu0 0.0
  %585 = vmatprep.subr.mxu0 0.0
  %586 = vmatpush1.msra.mxu0 0.0
  %587 = vmatprep.subr.mxu0 0.0
  %588 = vmatpush1.msra.mxu0 0.0
  %589 = vmatprep.mubr.f32.mxu0 0.0
  %590 = vmatmul.mubr.f32.gmra.mrb[0].mxu0 %v523
  %v591 = vpop.f32.mrb[0].mxu0
  %v592 = vadd.f32 0.0, %v591
  %v593 = vpop.f32.mrb[0].mxu0
  %594 = vdwg.mxu0
  %v595 = vadd.f32 %v188, %v592
  %v596 = vxor.u32 %v595, 2147483648
  %v597 = vmul.f32 %v596, 1.442695
  %v598 = vpow.pop %v597
  %v599 = vadd.f32 %v598, 1.0
  %v600 = vrcp.pop %v599
  %v601 = vmul.f32 1.0, %v600
  %v602 = vtanh.pop %v595
  %v603 = vmul.f32 %v601, %v511
  %605 = vrot.lane.b32.xlu0 %v602, 64
  %v606 = vpop.permute.xlu0 %605
  %v608 = vmul.f32 %v601, %v606
  %610 = vrot.lane.b32.xlu0 %v608, 32
  %v611 = vpop.permute.xlu0 %610
  %v613 = vadd.f32 %v603, %v611
  %v614 = vtanh.pop %v613
  %616 = vrot.lane.b32.xlu0 %v614, 64
  %v617 = vpop.permute.xlu0 %616
  %v619 = vmul.f32 %v601, %v617
  %621 = vrot.lane.b32.xlu0 %v619, 32
  %v622 = vpop.permute.xlu0 %621
  %624 = vst.msk [vmem:[#allocation2 + $0x18] sm:$0xff] %vm215, %v622
  %v625 = vsel %vm215, %v622, 0
  %627 = vmatprep.subr.mxu0 0.0
  %628 = vmatpush1.msra.mxu0 %v211
  %629 = vmatprep.subr.mxu0 0.0
  %630 = vmatpush1.msra.mxu0 %v212
  %631 = vmatprep.subr.mxu0 0.0
  %632 = vmatpush1.msra.mxu0 %v213
  %633 = vmatprep.subr.mxu0 0.0
  %634 = vmatpush1.msra.mxu0 %v214
  %635 = vmatprep.subr.mxu0 0.0
  %636 = vmatpush1.msra.mxu0 0.0
  %637 = vmatprep.subr.mxu0 0.0
  %638 = vmatpush1.msra.mxu0 0.0
  %639 = vmatprep.subr.mxu0 0.0
  %640 = vmatpush1.msra.mxu0 0.0
  %641 = vmatprep.subr.mxu0 0.0
  %642 = vmatpush1.msra.mxu0 0.0
  %643 = vmatprep.subr.mxu0 0.0
  %644 = vmatpush1.msra.mxu0 0.0
  %645 = vmatprep.subr.mxu0 0.0
  %646 = vmatpush1.msra.mxu0 0.0
  %647 = vmatprep.subr.mxu0 0.0
  %648 = vmatpush1.msra.mxu0 0.0
  %649 = vmatprep.subr.mxu0 0.0
  %650 = vmatpush1.msra.mxu0 0.0
  %651 = vmatprep.subr.mxu0 0.0
  %652 = vmatpush1.msra.mxu0 0.0
  %653 = vmatprep.subr.mxu0 0.0
  %654 = vmatpush1.msra.mxu0 0.0
  %655 = vmatprep.subr.mxu0 0.0
  %656 = vmatpush1.msra.mxu0 0.0
  %657 = vmatprep.subr.mxu0 0.0
  %658 = vmatpush1.msra.mxu0 0.0
  %659 = vmatprep.subr.mxu0 0.0
  %660 = vmatpush1.msra.mxu0 0.0
  %661 = vmatprep.subr.mxu0 0.0
  %662 = vmatpush1.msra.mxu0 0.0
  %663 = vmatprep.subr.mxu0 0.0
  %664 = vmatpush1.msra.mxu0 0.0
  %665 = vmatprep.subr.mxu0 0.0
  %666 = vmatpush1.msra.mxu0 0.0
  %667 = vmatprep.subr.mxu0 0.0
  %668 = vmatpush1.msra.mxu0 0.0
  %669 = vmatprep.subr.mxu0 0.0
  %670 = vmatpush1.msra.mxu0 0.0
  %671 = vmatprep.subr.mxu0 0.0
  %672 = vmatpush1.msra.mxu0 0.0
  %673 = vmatprep.subr.mxu0 0.0
  %674 = vmatpush1.msra.mxu0 0.0
  %675 = vmatprep.subr.mxu0 0.0
  %676 = vmatpush1.msra.mxu0 0.0
  %677 = vmatprep.subr.mxu0 0.0
  %678 = vmatpush1.msra.mxu0 0.0
  %679 = vmatprep.subr.mxu0 0.0
  %680 = vmatpush1.msra.mxu0 0.0
  %681 = vmatprep.subr.mxu0 0.0
  %682 = vmatpush1.msra.mxu0 0.0
  %683 = vmatprep.subr.mxu0 0.0
  %684 = vmatpush1.msra.mxu0 0.0
  %685 = vmatprep.subr.mxu0 0.0
  %686 = vmatpush1.msra.mxu0 0.0
  %687 = vmatprep.subr.mxu0 0.0
  %688 = vmatpush1.msra.mxu0 0.0
  %689 = vmatprep.subr.mxu0 0.0
  %690 = vmatpush1.msra.mxu0 0.0
  %691 = vmatprep.mubr.f32.mxu0 0.0
  %692 = vmatmul.mubr.f32.gmra.mrb[0].mxu0 %v625
  %v693 = vpop.f32.mrb[0].mxu0
  %v694 = vadd.f32 0.0, %v693
  %v695 = vpop.f32.mrb[0].mxu0
  %696 = vdwg.mxu0
  %v697 = vadd.f32 %v193, %v694
  %v698 = vxor.u32 %v697, 2147483648
  %v699 = vmul.f32 %v698, 1.442695
  %v700 = vpow.pop %v699
  %v701 = vadd.f32 %v700, 1.0
  %v702 = vrcp.pop %v701
  %v703 = vmul.f32 1.0, %v702
  %v704 = vtanh.pop %v697
  %v705 = vmul.f32 %v703, %v613
  %707 = vrot.lane.b32.xlu0 %v704, 64
  %v708 = vpop.permute.xlu0 %707
  %v710 = vmul.f32 %v703, %v708
  %712 = vrot.lane.b32.xlu0 %v710, 32
  %v713 = vpop.permute.xlu0 %712
  %v715 = vadd.f32 %v705, %v713
  %v716 = vtanh.pop %v715
  %718 = vrot.lane.b32.xlu0 %v716, 64
  %v719 = vpop.permute.xlu0 %718
  %v721 = vmul.f32 %v703, %v719
  %723 = vrot.lane.b32.xlu0 %v721, 32
  %v724 = vpop.permute.xlu0 %723
  %726 = vst.msk [vmem:[#allocation2 + $0x20] sm:$0xff] %vm215, %v724
  %v727 = vsel %vm215, %v724, 0
  %729 = vmatprep.subr.mxu0 0.0
  %730 = vmatpush1.msra.mxu0 %v211
  %731 = vmatprep.subr.mxu0 0.0
  %732 = vmatpush1.msra.mxu0 %v212
  %733 = vmatprep.subr.mxu0 0.0
  %734 = vmatpush1.msra.mxu0 %v213
  %735 = vmatprep.subr.mxu0 0.0
  %736 = vmatpush1.msra.mxu0 %v214
  %737 = vmatprep.subr.mxu0 0.0
  %738 = vmatpush1.msra.mxu0 0.0
  %739 = vmatprep.subr.mxu0 0.0
  %740 = vmatpush1.msra.mxu0 0.0
  %741 = vmatprep.subr.mxu0 0.0
  %742 = vmatpush1.msra.mxu0 0.0
  %743 = vmatprep.subr.mxu0 0.0
  %744 = vmatpush1.msra.mxu0 0.0
  %745 = vmatprep.subr.mxu0 0.0
  %746 = vmatpush1.msra.mxu0 0.0
  %747 = vmatprep.subr.mxu0 0.0
  %748 = vmatpush1.msra.mxu0 0.0
  %749 = vmatprep.subr.mxu0 0.0
  %750 = vmatpush1.msra.mxu0 0.0
  %751 = vmatprep.subr.mxu0 0.0
  %752 = vmatpush1.msra.mxu0 0.0
  %753 = vmatprep.subr.mxu0 0.0
  %754 = vmatpush1.msra.mxu0 0.0
  %755 = vmatprep.subr.mxu0 0.0
  %756 = vmatpush1.msra.mxu0 0.0
  %757 = vmatprep.subr.mxu0 0.0
  %758 = vmatpush1.msra.mxu0 0.0
  %759 = vmatprep.subr.mxu0 0.0
  %760 = vmatpush1.msra.mxu0 0.0
  %761 = vmatprep.subr.mxu0 0.0
  %762 = vmatpush1.msra.mxu0 0.0
  %763 = vmatprep.subr.mxu0 0.0
  %764 = vmatpush1.msra.mxu0 0.0
  %765 = vmatprep.subr.mxu0 0.0
  %766 = vmatpush1.msra.mxu0 0.0
  %767 = vmatprep.subr.mxu0 0.0
  %768 = vmatpush1.msra.mxu0 0.0
  %769 = vmatprep.subr.mxu0 0.0
  %770 = vmatpush1.msra.mxu0 0.0
  %771 = vmatprep.subr.mxu0 0.0
  %772 = vmatpush1.msra.mxu0 0.0
  %773 = vmatprep.subr.mxu0 0.0
  %774 = vmatpush1.msra.mxu0 0.0
  %775 = vmatprep.subr.mxu0 0.0
  %776 = vmatpush1.msra.mxu0 0.0
  %777 = vmatprep.subr.mxu0 0.0
  %778 = vmatpush1.msra.mxu0 0.0
  %779 = vmatprep.subr.mxu0 0.0
  %780 = vmatpush1.msra.mxu0 0.0
  %781 = vmatprep.subr.mxu0 0.0
  %782 = vmatpush1.msra.mxu0 0.0
  %783 = vmatprep.subr.mxu0 0.0
  %784 = vmatpush1.msra.mxu0 0.0
  %785 = vmatprep.subr.mxu0 0.0
  %786 = vmatpush1.msra.mxu0 0.0
  %787 = vmatprep.subr.mxu0 0.0
  %788 = vmatpush1.msra.mxu0 0.0
  %789 = vmatprep.subr.mxu0 0.0
  %790 = vmatpush1.msra.mxu0 0.0
  %791 = vmatprep.subr.mxu0 0.0
  %792 = vmatpush1.msra.mxu0 0.0
  %793 = vmatprep.mubr.f32.mxu0 0.0
  %794 = vmatmul.mubr.f32.gmra.mrb[0].mxu0 %v727
  %v795 = vpop.f32.mrb[0].mxu0
  %v796 = vadd.f32 0.0, %v795
  %v797 = vpop.f32.mrb[0].mxu0
  %798 = vdwg.mxu0
  %v799 = vadd.f32 %v198, %v796
  %v800 = vxor.u32 %v799, 2147483648
  %v801 = vmul.f32 %v800, 1.442695
  %v802 = vpow.pop %v801
  %v803 = vadd.f32 %v802, 1.0
  %v804 = vrcp.pop %v803
  %v805 = vmul.f32 1.0, %v804
  %v806 = vtanh.pop %v799
  %v807 = vmul.f32 %v805, %v715
  %809 = vrot.lane.b32.xlu0 %v806, 64
  %v810 = vpop.permute.xlu0 %809
  %v812 = vmul.f32 %v805, %v810
  %814 = vrot.lane.b32.xlu0 %v812, 32
  %v815 = vpop.permute.xlu0 %814
  %v817 = vadd.f32 %v807, %v815
  %v818 = vtanh.pop %v817
  %820 = vrot.lane.b32.xlu0 %v818, 64
  %v821 = vpop.permute.xlu0 %820
  %v823 = vmul.f32 %v805, %v821
  %825 = vrot.lane.b32.xlu0 %v823, 32
  %v826 = vpop.permute.xlu0 %825
  %828 = vst.msk [vmem:[#allocation2 + $0x28] sm:$0xff] %vm215, %v826
  %v829 = vsel %vm215, %v826, 0
  %831 = vmatprep.subr.mxu0 0.0
  %832 = vmatpush1.msra.mxu0 %v211
  %833 = vmatprep.subr.mxu0 0.0
  %834 = vmatpush1.msra.mxu0 %v212
  %835 = vmatprep.subr.mxu0 0.0
  %836 = vmatpush1.msra.mxu0 %v213
  %837 = vmatprep.subr.mxu0 0.0
  %838 = vmatpush1.msra.mxu0 %v214
  %839 = vmatprep.subr.mxu0 0.0
  %840 = vmatpush1.msra.mxu0 0.0
  %841 = vmatprep.subr.mxu0 0.0
  %842 = vmatpush1.msra.mxu0 0.0
  %843 = vmatprep.subr.mxu0 0.0
  %844 = vmatpush1.msra.mxu0 0.0
  %845 = vmatprep.subr.mxu0 0.0
  %846 = vmatpush1.msra.mxu0 0.0
  %847 = vmatprep.subr.mxu0 0.0
  %848 = vmatpush1.msra.mxu0 0.0
  %849 = vmatprep.subr.mxu0 0.0
  %850 = vmatpush1.msra.mxu0 0.0
  %851 = vmatprep.subr.mxu0 0.0
  %852 = vmatpush1.msra.mxu0 0.0
  %853 = vmatprep.subr.mxu0 0.0
  %854 = vmatpush1.msra.mxu0 0.0
  %855 = vmatprep.subr.mxu0 0.0
  %856 = vmatpush1.msra.mxu0 0.0
  %857 = vmatprep.subr.mxu0 0.0
  %858 = vmatpush1.msra.mxu0 0.0
  %859 = vmatprep.subr.mxu0 0.0
  %860 = vmatpush1.msra.mxu0 0.0
  %861 = vmatprep.subr.mxu0 0.0
  %862 = vmatpush1.msra.mxu0 0.0
  %863 = vmatprep.subr.mxu0 0.0
  %864 = vmatpush1.msra.mxu0 0.0
  %865 = vmatprep.subr.mxu0 0.0
  %866 = vmatpush1.msra.mxu0 0.0
  %867 = vmatprep.subr.mxu0 0.0
  %868 = vmatpush1.msra.mxu0 0.0
  %869 = vmatprep.subr.mxu0 0.0
  %870 = vmatpush1.msra.mxu0 0.0
  %871 = vmatprep.subr.mxu0 0.0
  %872 = vmatpush1.msra.mxu0 0.0
  %873 = vmatprep.subr.mxu0 0.0
  %874 = vmatpush1.msra.mxu0 0.0
  %875 = vmatprep.subr.mxu0 0.0
  %876 = vmatpush1.msra.mxu0 0.0
  %877 = vmatprep.subr.mxu0 0.0
  %878 = vmatpush1.msra.mxu0 0.0
  %879 = vmatprep.subr.mxu0 0.0
  %880 = vmatpush1.msra.mxu0 0.0
  %881 = vmatprep.subr.mxu0 0.0
  %882 = vmatpush1.msra.mxu0 0.0
  %883 = vmatprep.subr.mxu0 0.0
  %884 = vmatpush1.msra.mxu0 0.0
  %885 = vmatprep.subr.mxu0 0.0
  %886 = vmatpush1.msra.mxu0 0.0
  %887 = vmatprep.subr.mxu0 0.0
  %888 = vmatpush1.msra.mxu0 0.0
  %889 = vmatprep.subr.mxu0 0.0
  %890 = vmatpush1.msra.mxu0 0.0
  %891 = vmatprep.subr.mxu0 0.0
  %892 = vmatpush1.msra.mxu0 0.0
  %893 = vmatprep.subr.mxu0 0.0
  %894 = vmatpush1.msra.mxu0 0.0
  %895 = vmatprep.mubr.f32.mxu0 0.0
  %896 = vmatmul.mubr.f32.gmra.mrb[0].mxu0 %v829
  %v897 = vpop.f32.mrb[0].mxu0
  %v898 = vadd.f32 0.0, %v897
  %v899 = vpop.f32.mrb[0].mxu0
  %900 = vdwg.mxu0
  %v901 = vadd.f32 %v203, %v898
  %v902 = vxor.u32 %v901, 2147483648
  %v903 = vmul.f32 %v902, 1.442695
  %v904 = vpow.pop %v903
  %v905 = vadd.f32 %v904, 1.0
  %v906 = vrcp.pop %v905
  %v907 = vmul.f32 1.0, %v906
  %v908 = vtanh.pop %v901
  %v909 = vmul.f32 %v907, %v817
  %911 = vrot.lane.b32.xlu0 %v908, 64
  %v912 = vpop.permute.xlu0 %911
  %v914 = vmul.f32 %v907, %v912
  %916 = vrot.lane.b32.xlu0 %v914, 32
  %v917 = vpop.permute.xlu0 %916
  %v919 = vadd.f32 %v909, %v917
  %v920 = vtanh.pop %v919
  %922 = vrot.lane.b32.xlu0 %v920, 64
  %v923 = vpop.permute.xlu0 %922
  %v925 = vmul.f32 %v907, %v923
  %927 = vrot.lane.b32.xlu0 %v925, 32
  %v928 = vpop.permute.xlu0 %927
  %930 = vst.msk [vmem:[#allocation2 + $0x30] sm:$0xff] %vm215, %v928
  %v931 = vsel %vm215, %v928, 0
  %933 = vmatprep.subr.mxu0 0.0
  %934 = vmatpush1.msra.mxu0 %v211
  %935 = vmatprep.subr.mxu0 0.0
  %936 = vmatpush1.msra.mxu0 %v212
  %937 = vmatprep.subr.mxu0 0.0
  %938 = vmatpush1.msra.mxu0 %v213
  %939 = vmatprep.subr.mxu0 0.0
  %940 = vmatpush1.msra.mxu0 %v214
  %941 = vmatprep.subr.mxu0 0.0
  %942 = vmatpush1.msra.mxu0 0.0
  %943 = vmatprep.subr.mxu0 0.0
  %944 = vmatpush1.msra.mxu0 0.0
  %945 = vmatprep.subr.mxu0 0.0
  %946 = vmatpush1.msra.mxu0 0.0
  %947 = vmatprep.subr.mxu0 0.0
  %948 = vmatpush1.msra.mxu0 0.0
  %949 = vmatprep.subr.mxu0 0.0
  %950 = vmatpush1.msra.mxu0 0.0
  %951 = vmatprep.subr.mxu0 0.0
  %952 = vmatpush1.msra.mxu0 0.0
  %953 = vmatprep.subr.mxu0 0.0
  %954 = vmatpush1.msra.mxu0 0.0
  %955 = vmatprep.subr.mxu0 0.0
  %956 = vmatpush1.msra.mxu0 0.0
  %957 = vmatprep.subr.mxu0 0.0
  %958 = vmatpush1.msra.mxu0 0.0
  %959 = vmatprep.subr.mxu0 0.0
  %960 = vmatpush1.msra.mxu0 0.0
  %961 = vmatprep.subr.mxu0 0.0
  %962 = vmatpush1.msra.mxu0 0.0
  %963 = vmatprep.subr.mxu0 0.0
  %964 = vmatpush1.msra.mxu0 0.0
  %965 = vmatprep.subr.mxu0 0.0
  %966 = vmatpush1.msra.mxu0 0.0
  %967 = vmatprep.subr.mxu0 0.0
  %968 = vmatpush1.msra.mxu0 0.0
  %969 = vmatprep.subr.mxu0 0.0
  %970 = vmatpush1.msra.mxu0 0.0
  %971 = vmatprep.subr.mxu0 0.0
  %972 = vmatpush1.msra.mxu0 0.0
  %973 = vmatprep.subr.mxu0 0.0
  %974 = vmatpush1.msra.mxu0 0.0
  %975 = vmatprep.subr.mxu0 0.0
  %976 = vmatpush1.msra.mxu0 0.0
  %977 = vmatprep.subr.mxu0 0.0
  %978 = vmatpush1.msra.mxu0 0.0
  %979 = vmatprep.subr.mxu0 0.0
  %980 = vmatpush1.msra.mxu0 0.0
  %981 = vmatprep.subr.mxu0 0.0
  %982 = vmatpush1.msra.mxu0 0.0
  %983 = vmatprep.subr.mxu0 0.0
  %984 = vmatpush1.msra.mxu0 0.0
  %985 = vmatprep.subr.mxu0 0.0
  %986 = vmatpush1.msra.mxu0 0.0
  %987 = vmatprep.subr.mxu0 0.0
  %988 = vmatpush1.msra.mxu0 0.0
  %989 = vmatprep.subr.mxu0 0.0
  %990 = vmatpush1.msra.mxu0 0.0
  %991 = vmatprep.subr.mxu0 0.0
  %992 = vmatpush1.msra.mxu0 0.0
  %993 = vmatprep.subr.mxu0 0.0
  %994 = vmatpush1.msra.mxu0 0.0
  %995 = vmatprep.subr.mxu0 0.0
  %996 = vmatpush1.msra.mxu0 0.0
  %997 = vmatprep.mubr.f32.mxu0 0.0
  %998 = vmatmul.mubr.f32.gmra.mrb[0].mxu0 %v931
  %v999 = vpop.f32.mrb[0].mxu0
  %v1000 = vadd.f32 0.0, %v999
  %v1001 = vpop.f32.mrb[0].mxu0
  %1002 = vdwg.mxu0
  %v1003 = vadd.f32 %v208, %v1000
  %v1004 = vxor.u32 %v1003, 2147483648
  %v1005 = vmul.f32 %v1004, 1.442695
  %v1006 = vpow.pop %v1005
  %v1007 = vadd.f32 %v1006, 1.0
  %v1008 = vrcp.pop %v1007
  %v1009 = vmul.f32 1.0, %v1008
  %v1010 = vtanh.pop %v1003
  %v1011 = vmul.f32 %v1009, %v919
  %1013 = vrot.lane.b32.xlu0 %v1010, 64
  %v1014 = vpop.permute.xlu0 %1013
  %v1016 = vmul.f32 %v1009, %v1014
  %1018 = vrot.lane.b32.xlu0 %v1016, 32
  %v1019 = vpop.permute.xlu0 %1018
  %v1021 = vadd.f32 %v1011, %v1019
  %v1022 = vtanh.pop %v1021
  %1024 = vrot.lane.b32.xlu0 %v1022, 64
  %v1025 = vpop.permute.xlu0 %1024
  %v1027 = vmul.f32 %v1009, %v1025
  %1029 = vrot.lane.b32.xlu0 %v1027, 32
  %v1030 = vpop.permute.xlu0 %1029
  %1032 = vst.msk [vmem:[#allocation2 + $0x38] sm:$0xff] %vm215, %v1030
  %v1033 = vld [vmem:[#allocation2] sm:$0xff]
  %v1034 = vld [vmem:[#allocation2 + $0x8] sm:$0xff]
  %v1035 = vld [vmem:[#allocation2 + $0x10] sm:$0xff]
  %v1036 = vld [vmem:[#allocation2 + $0x18] sm:$0xff]
  %v1037 = vld [vmem:[#allocation2 + $0x20] sm:$0xff]
  %v1038 = vld [vmem:[#allocation2 + $0x28] sm:$0xff]
  %v1039 = vld [vmem:[#allocation2 + $0x30] sm:$0xff]
  %v1040 = vld [vmem:[#allocation2 + $0x38] sm:$0xff]
  %v1041 = vld [vmem:[%s5] sm:$0xff]
  %v1042 = vld [vmem:[%s5 + $0x8] sm:$0xff]
  %v1043 = vld [vmem:[%s5 + $0x10] sm:$0xff]
  %v1044 = vld [vmem:[%s5 + $0x18] sm:$0xff]
  %v1045 = vld [vmem:[%s7] sm:$0x1]
  %v1047 = vlaneseq
  %v1048 = vshrl.u32 %v1047, 7
  %v1049 = vsub.s32 0, %v1048
  %v1050 = vrot.slane %v1045, %v1049
  %v1053 = vsel %vm215, %v1033, 0
  %v1056 = vsel %vm215, %v1034, 0
  %v1059 = vsel %vm215, %v1035, 0
  %v1062 = vsel %vm215, %v1036, 0
  %v1065 = vsel %vm215, %v1037, 0
  %v1068 = vsel %vm215, %v1038, 0
  %v1071 = vsel %vm215, %v1039, 0
  %v1074 = vsel %vm215, %v1040, 0
  %1076 = vmatprep.subr.mxu0 0.0
  %1077 = vmatpush1.msra.mxu0 %v1041
  %1078 = vmatprep.subr.mxu0 0.0
  %1079 = vmatpush1.msra.mxu0 %v1042
  %1080 = vmatprep.subr.mxu0 0.0
  %1081 = vmatpush1.msra.mxu0 %v1043
  %1082 = vmatprep.subr.mxu0 0.0
  %1083 = vmatpush1.msra.mxu0 %v1044
  %1084 = vmatprep.subr.mxu0 0.0
  %1085 = vmatpush1.msra.mxu0 0.0
  %1086 = vmatprep.subr.mxu0 0.0
  %1087 = vmatpush1.msra.mxu0 0.0
  %1088 = vmatprep.subr.mxu0 0.0
  %1089 = vmatpush1.msra.mxu0 0.0
  %1090 = vmatprep.subr.mxu0 0.0
  %1091 = vmatpush1.msra.mxu0 0.0
  %1092 = vmatprep.subr.mxu0 0.0
  %1093 = vmatpush1.msra.mxu0 0.0
  %1094 = vmatprep.subr.mxu0 0.0
  %1095 = vmatpush1.msra.mxu0 0.0
  %1096 = vmatprep.subr.mxu0 0.0
  %1097 = vmatpush1.msra.mxu0 0.0
  %1098 = vmatprep.subr.mxu0 0.0
  %1099 = vmatpush1.msra.mxu0 0.0
  %1100 = vmatprep.subr.mxu0 0.0
  %1101 = vmatpush1.msra.mxu0 0.0
  %1102 = vmatprep.subr.mxu0 0.0
  %1103 = vmatpush1.msra.mxu0 0.0
  %1104 = vmatprep.subr.mxu0 0.0
  %1105 = vmatpush1.msra.mxu0 0.0
  %1106 = vmatprep.subr.mxu0 0.0
  %1107 = vmatpush1.msra.mxu0 0.0
  %1108 = vmatprep.subr.mxu0 0.0
  %1109 = vmatpush1.msra.mxu0 0.0
  %1110 = vmatprep.subr.mxu0 0.0
  %1111 = vmatpush1.msra.mxu0 0.0
  %1112 = vmatprep.subr.mxu0 0.0
  %1113 = vmatpush1.msra.mxu0 0.0
  %1114 = vmatprep.subr.mxu0 0.0
  %1115 = vmatpush1.msra.mxu0 0.0
  %1116 = vmatprep.subr.mxu0 0.0
  %1117 = vmatpush1.msra.mxu0 0.0
  %1118 = vmatprep.subr.mxu0 0.0
  %1119 = vmatpush1.msra.mxu0 0.0
  %1120 = vmatprep.subr.mxu0 0.0
  %1121 = vmatpush1.msra.mxu0 0.0
  %1122 = vmatprep.subr.mxu0 0.0
  %1123 = vmatpush1.msra.mxu0 0.0
  %1124 = vmatprep.subr.mxu0 0.0
  %1125 = vmatpush1.msra.mxu0 0.0
  %1126 = vmatprep.subr.mxu0 0.0
  %1127 = vmatpush1.msra.mxu0 0.0
  %1128 = vmatprep.subr.mxu0 0.0
  %1129 = vmatpush1.msra.mxu0 0.0
  %1130 = vmatprep.subr.mxu0 0.0
  %1131 = vmatpush1.msra.mxu0 0.0
  %1132 = vmatprep.subr.mxu0 0.0
  %1133 = vmatpush1.msra.mxu0 0.0
  %1134 = vmatprep.subr.mxu0 0.0
  %1135 = vmatpush1.msra.mxu0 0.0
  %1136 = vmatprep.subr.mxu0 0.0
  %1137 = vmatpush1.msra.mxu0 0.0
  %1138 = vmatprep.subr.mxu0 0.0
  %1139 = vmatpush1.msra.mxu0 0.0
  %1140 = vmatprep.mubr.f32.mxu0 0.0
  %1141 = vmatmul.mubr.f32.gmra.mrb[0].mxu0 %v1053
  %v1142 = vpop.f32.mrb[0].mxu0
  %v1143 = vadd.f32 %v1050, %v1142
  %v1144 = vpop.f32.mrb[0].mxu0
  %1145 = vmatprep.mubr.f32.mxu0 0.0
  %1146 = vmatmul.mubr.f32.gmra.mrb[0].mxu0 %v1056
  %v1147 = vpop.f32.mrb[0].mxu0
  %v1148 = vadd.f32 %v1050, %v1147
  %v1149 = vpop.f32.mrb[0].mxu0
  %1150 = vmatprep.mubr.f32.mxu0 0.0
  %1151 = vmatmul.mubr.f32.gmra.mrb[0].mxu0 %v1059
  %v1152 = vpop.f32.mrb[0].mxu0
  %v1153 = vadd.f32 %v1050, %v1152
  %v1154 = vpop.f32.mrb[0].mxu0
  %1155 = vmatprep.mubr.f32.mxu0 0.0
  %1156 = vmatmul.mubr.f32.gmra.mrb[0].mxu0 %v1062
  %v1157 = vpop.f32.mrb[0].mxu0
  %v1158 = vadd.f32 %v1050, %v1157
  %v1159 = vpop.f32.mrb[0].mxu0
  %1160 = vmatprep.mubr.f32.mxu0 0.0
  %1161 = vmatmul.mubr.f32.gmra.mrb[0].mxu0 %v1065
  %v1162 = vpop.f32.mrb[0].mxu0
  %v1163 = vadd.f32 %v1050, %v1162
  %v1164 = vpop.f32.mrb[0].mxu0
  %1165 = vmatprep.mubr.f32.mxu0 0.0
  %1166 = vmatmul.mubr.f32.gmra.mrb[0].mxu0 %v1068
  %v1167 = vpop.f32.mrb[0].mxu0
  %v1168 = vadd.f32 %v1050, %v1167
  %v1169 = vpop.f32.mrb[0].mxu0
  %1170 = vmatprep.mubr.f32.mxu0 0.0
  %1171 = vmatmul.mubr.f32.gmra.mrb[0].mxu0 %v1071
  %v1172 = vpop.f32.mrb[0].mxu0
  %v1173 = vadd.f32 %v1050, %v1172
  %v1174 = vpop.f32.mrb[0].mxu0
  %1175 = vmatprep.mubr.f32.mxu0 0.0
  %1176 = vmatmul.mubr.f32.gmra.mrb[0].mxu0 %v1074
  %v1177 = vpop.f32.mrb[0].mxu0
  %v1178 = vadd.f32 %v1050, %v1177
  %v1179 = vpop.f32.mrb[0].mxu0
  %1180 = vdwg.mxu0
  %v1181 = vld [vmem:[%s6] sm:$0xff]
  %v1182 = vld [vmem:[%s6 + $0x8] sm:$0xff]
  %v1183 = vld [vmem:[%s6 + $0x10] sm:$0xff]
  %v1184 = vld [vmem:[%s6 + $0x18] sm:$0xff]
  %1185 = vmatprep.subr.mxu0 0.0
  %1186 = vmatpush1.msra.mxu0 %v1181
  %1187 = vmatprep.subr.mxu0 0.0
  %1188 = vmatpush1.msra.mxu0 %v1182
  %1189 = vmatprep.subr.mxu0 0.0
  %1190 = vmatpush1.msra.mxu0 %v1183
  %1191 = vmatprep.subr.mxu0 0.0
  %1192 = vmatpush1.msra.mxu0 %v1184
  %1193 = vmatprep.subr.mxu0 0.0
  %1194 = vmatpush1.msra.mxu0 0.0
  %1195 = vmatprep.subr.mxu0 0.0
  %1196 = vmatpush1.msra.mxu0 0.0
  %1197 = vmatprep.subr.mxu0 0.0
  %1198 = vmatpush1.msra.mxu0 0.0
  %1199 = vmatprep.subr.mxu0 0.0
  %1200 = vmatpush1.msra.mxu0 0.0
  %1201 = vmatprep.subr.mxu0 0.0
  %1202 = vmatpush1.msra.mxu0 0.0
  %1203 = vmatprep.subr.mxu0 0.0
  %1204 = vmatpush1.msra.mxu0 0.0
  %1205 = vmatprep.subr.mxu0 0.0
  %1206 = vmatpush1.msra.mxu0 0.0
  %1207 = vmatprep.subr.mxu0 0.0
  %1208 = vmatpush1.msra.mxu0 0.0
  %1209 = vmatprep.subr.mxu0 0.0
  %1210 = vmatpush1.msra.mxu0 0.0
  %1211 = vmatprep.subr.mxu0 0.0
  %1212 = vmatpush1.msra.mxu0 0.0
  %1213 = vmatprep.subr.mxu0 0.0
  %1214 = vmatpush1.msra.mxu0 0.0
  %1215 = vmatprep.subr.mxu0 0.0
  %1216 = vmatpush1.msra.mxu0 0.0
  %1217 = vmatprep.subr.mxu0 0.0
  %1218 = vmatpush1.msra.mxu0 0.0
  %1219 = vmatprep.subr.mxu0 0.0
  %1220 = vmatpush1.msra.mxu0 0.0
  %1221 = vmatprep.subr.mxu0 0.0
  %1222 = vmatpush1.msra.mxu0 0.0
  %1223 = vmatprep.subr.mxu0 0.0
  %1224 = vmatpush1.msra.mxu0 0.0
  %1225 = vmatprep.subr.mxu0 0.0
  %1226 = vmatpush1.msra.mxu0 0.0
  %1227 = vmatprep.subr.mxu0 0.0
  %1228 = vmatpush1.msra.mxu0 0.0
  %1229 = vmatprep.subr.mxu0 0.0
  %1230 = vmatpush1.msra.mxu0 0.0
  %1231 = vmatprep.subr.mxu0 0.0
  %1232 = vmatpush1.msra.mxu0 0.0
  %1233 = vmatprep.subr.mxu0 0.0
  %1234 = vmatpush1.msra.mxu0 0.0
  %1235 = vmatprep.subr.mxu0 0.0
  %1236 = vmatpush1.msra.mxu0 0.0
  %1237 = vmatprep.subr.mxu0 0.0
  %1238 = vmatpush1.msra.mxu0 0.0
  %1239 = vmatprep.subr.mxu0 0.0
  %1240 = vmatpush1.msra.mxu0 0.0
  %1241 = vmatprep.subr.mxu0 0.0
  %1242 = vmatpush1.msra.mxu0 0.0
  %1243 = vmatprep.subr.mxu0 0.0
  %1244 = vmatpush1.msra.mxu0 0.0
  %1245 = vmatprep.subr.mxu0 0.0
  %1246 = vmatpush1.msra.mxu0 0.0
  %1247 = vmatprep.subr.mxu0 0.0
  %1248 = vmatpush1.msra.mxu0 0.0
  %1249 = vmatprep.mubr.f32.mxu0 0.0
  %1250 = vmatmul.mubr.f32.gmra.mrb[0].mxu0 %v217
  %v1251 = vpop.f32.mrb[0].mxu0
  %v1252 = vadd.f32 0.0, %v1251
  %v1253 = vpop.f32.mrb[0].mxu0
  %1254 = vdwg.mxu0
  %v1255 = vadd.f32 %v1143, %v1252
  %v1256 = vxor.u32 %v1255, 2147483648
  %v1257 = vmul.f32 %v1256, 1.442695
  %v1258 = vpow.pop %v1257
  %v1259 = vadd.f32 %v1258, 1.0
  %v1260 = vrcp.pop %v1259
  %v1261 = vmul.f32 1.0, %v1260
  %v1262 = vtanh.pop %v1255
  %v1263 = vmul.f32 %v1261, 0.0
  %1265 = vrot.lane.b32.xlu0 %v1262, 64
  %v1266 = vpop.permute.xlu0 %1265
  %v1268 = vmul.f32 %v1261, %v1266
  %1270 = vrot.lane.b32.xlu0 %v1268, 32
  %v1271 = vpop.permute.xlu0 %1270
  %v1273 = vadd.f32 %v1263, %v1271
  %v1274 = vtanh.pop %v1273
  %1276 = vrot.lane.b32.xlu0 %v1274, 64
  %v1277 = vpop.permute.xlu0 %1276
  %v1279 = vmul.f32 %v1261, %v1277
  %1281 = vrot.lane.b32.xlu0 %v1279, 32
  %v1282 = vpop.permute.xlu0 %1281
  %1284 = vst.msk [vmem:[#allocation2] sm:$0xff] %vm215, %v1282
  %v1285 = vsel %vm215, %v1282, 0
  %1287 = vmatprep.subr.mxu0 0.0
  %1288 = vmatpush1.msra.mxu0 %v1181
  %1289 = vmatprep.subr.mxu0 0.0
  %1290 = vmatpush1.msra.mxu0 %v1182
  %1291 = vmatprep.subr.mxu0 0.0
  %1292 = vmatpush1.msra.mxu0 %v1183
  %1293 = vmatprep.subr.mxu0 0.0
  %1294 = vmatpush1.msra.mxu0 %v1184
  %1295 = vmatprep.subr.mxu0 0.0
  %1296 = vmatpush1.msra.mxu0 0.0
  %1297 = vmatprep.subr.mxu0 0.0
  %1298 = vmatpush1.msra.mxu0 0.0
  %1299 = vmatprep.subr.mxu0 0.0
  %1300 = vmatpush1.msra.mxu0 0.0
  %1301 = vmatprep.subr.mxu0 0.0
  %1302 = vmatpush1.msra.mxu0 0.0
  %1303 = vmatprep.subr.mxu0 0.0
  %1304 = vmatpush1.msra.mxu0 0.0
  %1305 = vmatprep.subr.mxu0 0.0
  %1306 = vmatpush1.msra.mxu0 0.0
  %1307 = vmatprep.subr.mxu0 0.0
  %1308 = vmatpush1.msra.mxu0 0.0
  %1309 = vmatprep.subr.mxu0 0.0
  %1310 = vmatpush1.msra.mxu0 0.0
  %1311 = vmatprep.subr.mxu0 0.0
  %1312 = vmatpush1.msra.mxu0 0.0
  %1313 = vmatprep.subr.mxu0 0.0
  %1314 = vmatpush1.msra.mxu0 0.0
  %1315 = vmatprep.subr.mxu0 0.0
  %1316 = vmatpush1.msra.mxu0 0.0
  %1317 = vmatprep.subr.mxu0 0.0
  %1318 = vmatpush1.msra.mxu0 0.0
  %1319 = vmatprep.subr.mxu0 0.0
  %1320 = vmatpush1.msra.mxu0 0.0
  %1321 = vmatprep.subr.mxu0 0.0
  %1322 = vmatpush1.msra.mxu0 0.0
  %1323 = vmatprep.subr.mxu0 0.0
  %1324 = vmatpush1.msra.mxu0 0.0
  %1325 = vmatprep.subr.mxu0 0.0
  %1326 = vmatpush1.msra.mxu0 0.0
  %1327 = vmatprep.subr.mxu0 0.0
  %1328 = vmatpush1.msra.mxu0 0.0
  %1329 = vmatprep.subr.mxu0 0.0
  %1330 = vmatpush1.msra.mxu0 0.0
  %1331 = vmatprep.subr.mxu0 0.0
  %1332 = vmatpush1.msra.mxu0 0.0
  %1333 = vmatprep.subr.mxu0 0.0
  %1334 = vmatpush1.msra.mxu0 0.0
  %1335 = vmatprep.subr.mxu0 0.0
  %1336 = vmatpush1.msra.mxu0 0.0
  %1337 = vmatprep.subr.mxu0 0.0
  %1338 = vmatpush1.msra.mxu0 0.0
  %1339 = vmatprep.subr.mxu0 0.0
  %1340 = vmatpush1.msra.mxu0 0.0
  %1341 = vmatprep.subr.mxu0 0.0
  %1342 = vmatpush1.msra.mxu0 0.0
  %1343 = vmatprep.subr.mxu0 0.0
  %1344 = vmatpush1.msra.mxu0 0.0
  %1345 = vmatprep.subr.mxu0 0.0
  %1346 = vmatpush1.msra.mxu0 0.0
  %1347 = vmatprep.subr.mxu0 0.0
  %1348 = vmatpush1.msra.mxu0 0.0
  %1349 = vmatprep.subr.mxu0 0.0
  %1350 = vmatpush1.msra.mxu0 0.0
  %1351 = vmatprep.mubr.f32.mxu0 0.0
  %1352 = vmatmul.mubr.f32.gmra.mrb[0].mxu0 %v1285
  %v1353 = vpop.f32.mrb[0].mxu0
  %v1354 = vadd.f32 0.0, %v1353
  %v1355 = vpop.f32.mrb[0].mxu0
  %1356 = vdwg.mxu0
  %v1357 = vadd.f32 %v1148, %v1354
  %v1358 = vxor.u32 %v1357, 2147483648
  %v1359 = vmul.f32 %v1358, 1.442695
  %v1360 = vpow.pop %v1359
  %v1361 = vadd.f32 %v1360, 1.0
  %v1362 = vrcp.pop %v1361
  %v1363 = vmul.f32 1.0, %v1362
  %v1364 = vtanh.pop %v1357
  %v1365 = vmul.f32 %v1363, %v1273
  %1367 = vrot.lane.b32.xlu0 %v1364, 64
  %v1368 = vpop.permute.xlu0 %1367
  %v1370 = vmul.f32 %v1363, %v1368
  %1372 = vrot.lane.b32.xlu0 %v1370, 32
  %v1373 = vpop.permute.xlu0 %1372
  %v1375 = vadd.f32 %v1365, %v1373
  %v1376 = vtanh.pop %v1375
  %1378 = vrot.lane.b32.xlu0 %v1376, 64
  %v1379 = vpop.permute.xlu0 %1378
  %v1381 = vmul.f32 %v1363, %v1379
  %1383 = vrot.lane.b32.xlu0 %v1381, 32
  %v1384 = vpop.permute.xlu0 %1383
  %1386 = vst.msk [vmem:[#allocation2 + $0x8] sm:$0xff] %vm215, %v1384
  %v1387 = vsel %vm215, %v1384, 0
  %1389 = vmatprep.subr.mxu0 0.0
  %1390 = vmatpush1.msra.mxu0 %v1181
  %1391 = vmatprep.subr.mxu0 0.0
  %1392 = vmatpush1.msra.mxu0 %v1182
  %1393 = vmatprep.subr.mxu0 0.0
  %1394 = vmatpush1.msra.mxu0 %v1183
  %1395 = vmatprep.subr.mxu0 0.0
  %1396 = vmatpush1.msra.mxu0 %v1184
  %1397 = vmatprep.subr.mxu0 0.0
  %1398 = vmatpush1.msra.mxu0 0.0
  %1399 = vmatprep.subr.mxu0 0.0
  %1400 = vmatpush1.msra.mxu0 0.0
  %1401 = vmatprep.subr.mxu0 0.0
  %1402 = vmatpush1.msra.mxu0 0.0
  %1403 = vmatprep.subr.mxu0 0.0
  %1404 = vmatpush1.msra.mxu0 0.0
  %1405 = vmatprep.subr.mxu0 0.0
  %1406 = vmatpush1.msra.mxu0 0.0
  %1407 = vmatprep.subr.mxu0 0.0
  %1408 = vmatpush1.msra.mxu0 0.0
  %1409 = vmatprep.subr.mxu0 0.0
  %1410 = vmatpush1.msra.mxu0 0.0
  %1411 = vmatprep.subr.mxu0 0.0
  %1412 = vmatpush1.msra.mxu0 0.0
  %1413 = vmatprep.subr.mxu0 0.0
  %1414 = vmatpush1.msra.mxu0 0.0
  %1415 = vmatprep.subr.mxu0 0.0
  %1416 = vmatpush1.msra.mxu0 0.0
  %1417 = vmatprep.subr.mxu0 0.0
  %1418 = vmatpush1.msra.mxu0 0.0
  %1419 = vmatprep.subr.mxu0 0.0
  %1420 = vmatpush1.msra.mxu0 0.0
  %1421 = vmatprep.subr.mxu0 0.0
  %1422 = vmatpush1.msra.mxu0 0.0
  %1423 = vmatprep.subr.mxu0 0.0
  %1424 = vmatpush1.msra.mxu0 0.0
  %1425 = vmatprep.subr.mxu0 0.0
  %1426 = vmatpush1.msra.mxu0 0.0
  %1427 = vmatprep.subr.mxu0 0.0
  %1428 = vmatpush1.msra.mxu0 0.0
  %1429 = vmatprep.subr.mxu0 0.0
  %1430 = vmatpush1.msra.mxu0 0.0
  %1431 = vmatprep.subr.mxu0 0.0
  %1432 = vmatpush1.msra.mxu0 0.0
  %1433 = vmatprep.subr.mxu0 0.0
  %1434 = vmatpush1.msra.mxu0 0.0
  %1435 = vmatprep.subr.mxu0 0.0
  %1436 = vmatpush1.msra.mxu0 0.0
  %1437 = vmatprep.subr.mxu0 0.0
  %1438 = vmatpush1.msra.mxu0 0.0
  %1439 = vmatprep.subr.mxu0 0.0
  %1440 = vmatpush1.msra.mxu0 0.0
  %1441 = vmatprep.subr.mxu0 0.0
  %1442 = vmatpush1.msra.mxu0 0.0
  %1443 = vmatprep.subr.mxu0 0.0
  %1444 = vmatpush1.msra.mxu0 0.0
  %1445 = vmatprep.subr.mxu0 0.0
  %1446 = vmatpush1.msra.mxu0 0.0
  %1447 = vmatprep.subr.mxu0 0.0
  %1448 = vmatpush1.msra.mxu0 0.0
  %1449 = vmatprep.subr.mxu0 0.0
  %1450 = vmatpush1.msra.mxu0 0.0
  %1451 = vmatprep.subr.mxu0 0.0
  %1452 = vmatpush1.msra.mxu0 0.0
  %1453 = vmatprep.mubr.f32.mxu0 0.0
  %1454 = vmatmul.mubr.f32.gmra.mrb[0].mxu0 %v1387
  %v1455 = vpop.f32.mrb[0].mxu0
  %v1456 = vadd.f32 0.0, %v1455
  %v1457 = vpop.f32.mrb[0].mxu0
  %1458 = vdwg.mxu0
  %v1459 = vadd.f32 %v1153, %v1456
  %v1460 = vxor.u32 %v1459, 2147483648
  %v1461 = vmul.f32 %v1460, 1.442695
  %v1462 = vpow.pop %v1461
  %v1463 = vadd.f32 %v1462, 1.0
  %v1464 = vrcp.pop %v1463
  %v1465 = vmul.f32 1.0, %v1464
  %v1466 = vtanh.pop %v1459
  %v1467 = vmul.f32 %v1465, %v1375
  %1469 = vrot.lane.b32.xlu0 %v1466, 64
  %v1470 = vpop.permute.xlu0 %1469
  %v1472 = vmul.f32 %v1465, %v1470
  %1474 = vrot.lane.b32.xlu0 %v1472, 32
  %v1475 = vpop.permute.xlu0 %1474
  %v1477 = vadd.f32 %v1467, %v1475
  %v1478 = vtanh.pop %v1477
  %1480 = vrot.lane.b32.xlu0 %v1478, 64
  %v1481 = vpop.permute.xlu0 %1480
  %v1483 = vmul.f32 %v1465, %v1481
  %1485 = vrot.lane.b32.xlu0 %v1483, 32
  %v1486 = vpop.permute.xlu0 %1485
  %1488 = vst.msk [vmem:[#allocation2 + $0x10] sm:$0xff] %vm215, %v1486
  %v1489 = vsel %vm215, %v1486, 0
  %1491 = vmatprep.subr.mxu0 0.0
  %1492 = vmatpush1.msra.mxu0 %v1181
  %1493 = vmatprep.subr.mxu0 0.0
  %1494 = vmatpush1.msra.mxu0 %v1182
  %1495 = vmatprep.subr.mxu0 0.0
  %1496 = vmatpush1.msra.mxu0 %v1183
  %1497 = vmatprep.subr.mxu0 0.0
  %1498 = vmatpush1.msra.mxu0 %v1184
  %1499 = vmatprep.subr.mxu0 0.0
  %1500 = vmatpush1.msra.mxu0 0.0
  %1501 = vmatprep.subr.mxu0 0.0
  %1502 = vmatpush1.msra.mxu0 0.0
  %1503 = vmatprep.subr.mxu0 0.0
  %1504 = vmatpush1.msra.mxu0 0.0
  %1505 = vmatprep.subr.mxu0 0.0
  %1506 = vmatpush1.msra.mxu0 0.0
  %1507 = vmatprep.subr.mxu0 0.0
  %1508 = vmatpush1.msra.mxu0 0.0
  %1509 = vmatprep.subr.mxu0 0.0
  %1510 = vmatpush1.msra.mxu0 0.0
  %1511 = vmatprep.subr.mxu0 0.0
  %1512 = vmatpush1.msra.mxu0 0.0
  %1513 = vmatprep.subr.mxu0 0.0
  %1514 = vmatpush1.msra.mxu0 0.0
  %1515 = vmatprep.subr.mxu0 0.0
  %1516 = vmatpush1.msra.mxu0 0.0
  %1517 = vmatprep.subr.mxu0 0.0
  %1518 = vmatpush1.msra.mxu0 0.0
  %1519 = vmatprep.subr.mxu0 0.0
  %1520 = vmatpush1.msra.mxu0 0.0
  %1521 = vmatprep.subr.mxu0 0.0
  %1522 = vmatpush1.msra.mxu0 0.0
  %1523 = vmatprep.subr.mxu0 0.0
  %1524 = vmatpush1.msra.mxu0 0.0
  %1525 = vmatprep.subr.mxu0 0.0
  %1526 = vmatpush1.msra.mxu0 0.0
  %1527 = vmatprep.subr.mxu0 0.0
  %1528 = vmatpush1.msra.mxu0 0.0
  %1529 = vmatprep.subr.mxu0 0.0
  %1530 = vmatpush1.msra.mxu0 0.0
  %1531 = vmatprep.subr.mxu0 0.0
  %1532 = vmatpush1.msra.mxu0 0.0
  %1533 = vmatprep.subr.mxu0 0.0
  %1534 = vmatpush1.msra.mxu0 0.0
  %1535 = vmatprep.subr.mxu0 0.0
  %1536 = vmatpush1.msra.mxu0 0.0
  %1537 = vmatprep.subr.mxu0 0.0
  %1538 = vmatpush1.msra.mxu0 0.0
  %1539 = vmatprep.subr.mxu0 0.0
  %1540 = vmatpush1.msra.mxu0 0.0
  %1541 = vmatprep.subr.mxu0 0.0
  %1542 = vmatpush1.msra.mxu0 0.0
  %1543 = vmatprep.subr.mxu0 0.0
  %1544 = vmatpush1.msra.mxu0 0.0
  %1545 = vmatprep.subr.mxu0 0.0
  %1546 = vmatpush1.msra.mxu0 0.0
  %1547 = vmatprep.subr.mxu0 0.0
  %1548 = vmatpush1.msra.mxu0 0.0
  %1549 = vmatprep.subr.mxu0 0.0
  %1550 = vmatpush1.msra.mxu0 0.0
  %1551 = vmatprep.subr.mxu0 0.0
  %1552 = vmatpush1.msra.mxu0 0.0
  %1553 = vmatprep.subr.mxu0 0.0
  %1554 = vmatpush1.msra.mxu0 0.0
  %1555 = vmatprep.mubr.f32.mxu0 0.0
  %1556 = vmatmul.mubr.f32.gmra.mrb[0].mxu0 %v1489
  %v1557 = vpop.f32.mrb[0].mxu0
  %v1558 = vadd.f32 0.0, %v1557
  %v1559 = vpop.f32.mrb[0].mxu0
  %1560 = vdwg.mxu0
  %v1561 = vadd.f32 %v1158, %v1558
  %v1562 = vxor.u32 %v1561, 2147483648
  %v1563 = vmul.f32 %v1562, 1.442695
  %v1564 = vpow.pop %v1563
  %v1565 = vadd.f32 %v1564, 1.0
  %v1566 = vrcp.pop %v1565
  %v1567 = vmul.f32 1.0, %v1566
  %v1568 = vtanh.pop %v1561
  %v1569 = vmul.f32 %v1567, %v1477
  %1571 = vrot.lane.b32.xlu0 %v1568, 64
  %v1572 = vpop.permute.xlu0 %1571
  %v1574 = vmul.f32 %v1567, %v1572
  %1576 = vrot.lane.b32.xlu0 %v1574, 32
  %v1577 = vpop.permute.xlu0 %1576
  %v1579 = vadd.f32 %v1569, %v1577
  %v1580 = vtanh.pop %v1579
  %1582 = vrot.lane.b32.xlu0 %v1580, 64
  %v1583 = vpop.permute.xlu0 %1582
  %v1585 = vmul.f32 %v1567, %v1583
  %1587 = vrot.lane.b32.xlu0 %v1585, 32
  %v1588 = vpop.permute.xlu0 %1587
  %1590 = vst.msk [vmem:[#allocation2 + $0x18] sm:$0xff] %vm215, %v1588
  %v1591 = vsel %vm215, %v1588, 0
  %1593 = vmatprep.subr.mxu0 0.0
  %1594 = vmatpush1.msra.mxu0 %v1181
  %1595 = vmatprep.subr.mxu0 0.0
  %1596 = vmatpush1.msra.mxu0 %v1182
  %1597 = vmatprep.subr.mxu0 0.0
  %1598 = vmatpush1.msra.mxu0 %v1183
  %1599 = vmatprep.subr.mxu0 0.0
  %1600 = vmatpush1.msra.mxu0 %v1184
  %1601 = vmatprep.subr.mxu0 0.0
  %1602 = vmatpush1.msra.mxu0 0.0
  %1603 = vmatprep.subr.mxu0 0.0
  %1604 = vmatpush1.msra.mxu0 0.0
  %1605 = vmatprep.subr.mxu0 0.0
  %1606 = vmatpush1.msra.mxu0 0.0
  %1607 = vmatprep.subr.mxu0 0.0
  %1608 = vmatpush1.msra.mxu0 0.0
  %1609 = vmatprep.subr.mxu0 0.0
  %1610 = vmatpush1.msra.mxu0 0.0
  %1611 = vmatprep.subr.mxu0 0.0
  %1612 = vmatpush1.msra.mxu0 0.0
  %1613 = vmatprep.subr.mxu0 0.0
  %1614 = vmatpush1.msra.mxu0 0.0
  %1615 = vmatprep.subr.mxu0 0.0
  %1616 = vmatpush1.msra.mxu0 0.0
  %1617 = vmatprep.subr.mxu0 0.0
  %1618 = vmatpush1.msra.mxu0 0.0
  %1619 = vmatprep.subr.mxu0 0.0
  %1620 = vmatpush1.msra.mxu0 0.0
  %1621 = vmatprep.subr.mxu0 0.0
  %1622 = vmatpush1.msra.mxu0 0.0
  %1623 = vmatprep.subr.mxu0 0.0
  %1624 = vmatpush1.msra.mxu0 0.0
  %1625 = vmatprep.subr.mxu0 0.0
  %1626 = vmatpush1.msra.mxu0 0.0
  %1627 = vmatprep.subr.mxu0 0.0
  %1628 = vmatpush1.msra.mxu0 0.0
  %1629 = vmatprep.subr.mxu0 0.0
  %1630 = vmatpush1.msra.mxu0 0.0
  %1631 = vmatprep.subr.mxu0 0.0
  %1632 = vmatpush1.msra.mxu0 0.0
  %1633 = vmatprep.subr.mxu0 0.0
  %1634 = vmatpush1.msra.mxu0 0.0
  %1635 = vmatprep.subr.mxu0 0.0
  %1636 = vmatpush1.msra.mxu0 0.0
  %1637 = vmatprep.subr.mxu0 0.0
  %1638 = vmatpush1.msra.mxu0 0.0
  %1639 = vmatprep.subr.mxu0 0.0
  %1640 = vmatpush1.msra.mxu0 0.0
  %1641 = vmatprep.subr.mxu0 0.0
  %1642 = vmatpush1.msra.mxu0 0.0
  %1643 = vmatprep.subr.mxu0 0.0
  %1644 = vmatpush1.msra.mxu0 0.0
  %1645 = vmatprep.subr.mxu0 0.0
  %1646 = vmatpush1.msra.mxu0 0.0
  %1647 = vmatprep.subr.mxu0 0.0
  %1648 = vmatpush1.msra.mxu0 0.0
  %1649 = vmatprep.subr.mxu0 0.0
  %1650 = vmatpush1.msra.mxu0 0.0
  %1651 = vmatprep.subr.mxu0 0.0
  %1652 = vmatpush1.msra.mxu0 0.0
  %1653 = vmatprep.subr.mxu0 0.0
  %1654 = vmatpush1.msra.mxu0 0.0
  %1655 = vmatprep.subr.mxu0 0.0
  %1656 = vmatpush1.msra.mxu0 0.0
  %1657 = vmatprep.mubr.f32.mxu0 0.0
  %1658 = vmatmul.mubr.f32.gmra.mrb[0].mxu0 %v1591
  %v1659 = vpop.f32.mrb[0].mxu0
  %v1660 = vadd.f32 0.0, %v1659
  %v1661 = vpop.f32.mrb[0].mxu0
  %1662 = vdwg.mxu0
  %v1663 = vadd.f32 %v1163, %v1660
  %v1664 = vxor.u32 %v1663, 2147483648
  %v1665 = vmul.f32 %v1664, 1.442695
  %v1666 = vpow.pop %v1665
  %v1667 = vadd.f32 %v1666, 1.0
  %v1668 = vrcp.pop %v1667
  %v1669 = vmul.f32 1.0, %v1668
  %v1670 = vtanh.pop %v1663
  %v1671 = vmul.f32 %v1669, %v1579
  %1673 = vrot.lane.b32.xlu0 %v1670, 64
  %v1674 = vpop.permute.xlu0 %1673
  %v1676 = vmul.f32 %v1669, %v1674
  %1678 = vrot.lane.b32.xlu0 %v1676, 32
  %v1679 = vpop.permute.xlu0 %1678
  %v1681 = vadd.f32 %v1671, %v1679
  %v1682 = vtanh.pop %v1681
  %1684 = vrot.lane.b32.xlu0 %v1682, 64
  %v1685 = vpop.permute.xlu0 %1684
  %v1687 = vmul.f32 %v1669, %v1685
  %1689 = vrot.lane.b32.xlu0 %v1687, 32
  %v1690 = vpop.permute.xlu0 %1689
  %1692 = vst.msk [vmem:[#allocation2 + $0x20] sm:$0xff] %vm215, %v1690
  %v1693 = vsel %vm215, %v1690, 0
  %1695 = vmatprep.subr.mxu0 0.0
  %1696 = vmatpush1.msra.mxu0 %v1181
  %1697 = vmatprep.subr.mxu0 0.0
  %1698 = vmatpush1.msra.mxu0 %v1182
  %1699 = vmatprep.subr.mxu0 0.0
  %1700 = vmatpush1.msra.mxu0 %v1183
  %1701 = vmatprep.subr.mxu0 0.0
  %1702 = vmatpush1.msra.mxu0 %v1184
  %1703 = vmatprep.subr.mxu0 0.0
  %1704 = vmatpush1.msra.mxu0 0.0
  %1705 = vmatprep.subr.mxu0 0.0
  %1706 = vmatpush1.msra.mxu0 0.0
  %1707 = vmatprep.subr.mxu0 0.0
  %1708 = vmatpush1.msra.mxu0 0.0
  %1709 = vmatprep.subr.mxu0 0.0
  %1710 = vmatpush1.msra.mxu0 0.0
  %1711 = vmatprep.subr.mxu0 0.0
  %1712 = vmatpush1.msra.mxu0 0.0
  %1713 = vmatprep.subr.mxu0 0.0
  %1714 = vmatpush1.msra.mxu0 0.0
  %1715 = vmatprep.subr.mxu0 0.0
  %1716 = vmatpush1.msra.mxu0 0.0
  %1717 = vmatprep.subr.mxu0 0.0
  %1718 = vmatpush1.msra.mxu0 0.0
  %1719 = vmatprep.subr.mxu0 0.0
  %1720 = vmatpush1.msra.mxu0 0.0
  %1721 = vmatprep.subr.mxu0 0.0
  %1722 = vmatpush1.msra.mxu0 0.0
  %1723 = vmatprep.subr.mxu0 0.0
  %1724 = vmatpush1.msra.mxu0 0.0
  %1725 = vmatprep.subr.mxu0 0.0
  %1726 = vmatpush1.msra.mxu0 0.0
  %1727 = vmatprep.subr.mxu0 0.0
  %1728 = vmatpush1.msra.mxu0 0.0
  %1729 = vmatprep.subr.mxu0 0.0
  %1730 = vmatpush1.msra.mxu0 0.0
  %1731 = vmatprep.subr.mxu0 0.0
  %1732 = vmatpush1.msra.mxu0 0.0
  %1733 = vmatprep.subr.mxu0 0.0
  %1734 = vmatpush1.msra.mxu0 0.0
  %1735 = vmatprep.subr.mxu0 0.0
  %1736 = vmatpush1.msra.mxu0 0.0
  %1737 = vmatprep.subr.mxu0 0.0
  %1738 = vmatpush1.msra.mxu0 0.0
  %1739 = vmatprep.subr.mxu0 0.0
  %1740 = vmatpush1.msra.mxu0 0.0
  %1741 = vmatprep.subr.mxu0 0.0
  %1742 = vmatpush1.msra.mxu0 0.0
  %1743 = vmatprep.subr.mxu0 0.0
  %1744 = vmatpush1.msra.mxu0 0.0
  %1745 = vmatprep.subr.mxu0 0.0
  %1746 = vmatpush1.msra.mxu0 0.0
  %1747 = vmatprep.subr.mxu0 0.0
  %1748 = vmatpush1.msra.mxu0 0.0
  %1749 = vmatprep.subr.mxu0 0.0
  %1750 = vmatpush1.msra.mxu0 0.0
  %1751 = vmatprep.subr.mxu0 0.0
  %1752 = vmatpush1.msra.mxu0 0.0
  %1753 = vmatprep.subr.mxu0 0.0
  %1754 = vmatpush1.msra.mxu0 0.0
  %1755 = vmatprep.subr.mxu0 0.0
  %1756 = vmatpush1.msra.mxu0 0.0
  %1757 = vmatprep.subr.mxu0 0.0
  %1758 = vmatpush1.msra.mxu0 0.0
  %1759 = vmatprep.mubr.f32.mxu0 0.0
  %1760 = vmatmul.mubr.f32.gmra.mrb[0].mxu0 %v1693
  %v1761 = vpop.f32.mrb[0].mxu0
  %v1762 = vadd.f32 0.0, %v1761
  %v1763 = vpop.f32.mrb[0].mxu0
  %1764 = vdwg.mxu0
  %v1765 = vadd.f32 %v1168, %v1762
  %v1766 = vxor.u32 %v1765, 2147483648
  %v1767 = vmul.f32 %v1766, 1.442695
  %v1768 = vpow.pop %v1767
  %v1769 = vadd.f32 %v1768, 1.0
  %v1770 = vrcp.pop %v1769
  %v1771 = vmul.f32 1.0, %v1770
  %v1772 = vtanh.pop %v1765
  %v1773 = vmul.f32 %v1771, %v1681
  %1775 = vrot.lane.b32.xlu0 %v1772, 64
  %v1776 = vpop.permute.xlu0 %1775
  %v1778 = vmul.f32 %v1771, %v1776
  %1780 = vrot.lane.b32.xlu0 %v1778, 32
  %v1781 = vpop.permute.xlu0 %1780
  %v1783 = vadd.f32 %v1773, %v1781
  %v1784 = vtanh.pop %v1783
  %1786 = vrot.lane.b32.xlu0 %v1784, 64
  %v1787 = vpop.permute.xlu0 %1786
  %v1789 = vmul.f32 %v1771, %v1787
  %1791 = vrot.lane.b32.xlu0 %v1789, 32
  %v1792 = vpop.permute.xlu0 %1791
  %1794 = vst.msk [vmem:[#allocation2 + $0x28] sm:$0xff] %vm215, %v1792
  %v1795 = vsel %vm215, %v1792, 0
  %1797 = vmatprep.subr.mxu0 0.0
  %1798 = vmatpush1.msra.mxu0 %v1181
  %1799 = vmatprep.subr.mxu0 0.0
  %1800 = vmatpush1.msra.mxu0 %v1182
  %1801 = vmatprep.subr.mxu0 0.0
  %1802 = vmatpush1.msra.mxu0 %v1183
  %1803 = vmatprep.subr.mxu0 0.0
  %1804 = vmatpush1.msra.mxu0 %v1184
  %1805 = vmatprep.subr.mxu0 0.0
  %1806 = vmatpush1.msra.mxu0 0.0
  %1807 = vmatprep.subr.mxu0 0.0
  %1808 = vmatpush1.msra.mxu0 0.0
  %1809 = vmatprep.subr.mxu0 0.0
  %1810 = vmatpush1.msra.mxu0 0.0
  %1811 = vmatprep.subr.mxu0 0.0
  %1812 = vmatpush1.msra.mxu0 0.0
  %1813 = vmatprep.subr.mxu0 0.0
  %1814 = vmatpush1.msra.mxu0 0.0
  %1815 = vmatprep.subr.mxu0 0.0
  %1816 = vmatpush1.msra.mxu0 0.0
  %1817 = vmatprep.subr.mxu0 0.0
  %1818 = vmatpush1.msra.mxu0 0.0
  %1819 = vmatprep.subr.mxu0 0.0
  %1820 = vmatpush1.msra.mxu0 0.0
  %1821 = vmatprep.subr.mxu0 0.0
  %1822 = vmatpush1.msra.mxu0 0.0
  %1823 = vmatprep.subr.mxu0 0.0
  %1824 = vmatpush1.msra.mxu0 0.0
  %1825 = vmatprep.subr.mxu0 0.0
  %1826 = vmatpush1.msra.mxu0 0.0
  %1827 = vmatprep.subr.mxu0 0.0
  %1828 = vmatpush1.msra.mxu0 0.0
  %1829 = vmatprep.subr.mxu0 0.0
  %1830 = vmatpush1.msra.mxu0 0.0
  %1831 = vmatprep.subr.mxu0 0.0
  %1832 = vmatpush1.msra.mxu0 0.0
  %1833 = vmatprep.subr.mxu0 0.0
  %1834 = vmatpush1.msra.mxu0 0.0
  %1835 = vmatprep.subr.mxu0 0.0
  %1836 = vmatpush1.msra.mxu0 0.0
  %1837 = vmatprep.subr.mxu0 0.0
  %1838 = vmatpush1.msra.mxu0 0.0
  %1839 = vmatprep.subr.mxu0 0.0
  %1840 = vmatpush1.msra.mxu0 0.0
  %1841 = vmatprep.subr.mxu0 0.0
  %1842 = vmatpush1.msra.mxu0 0.0
  %1843 = vmatprep.subr.mxu0 0.0
  %1844 = vmatpush1.msra.mxu0 0.0
  %1845 = vmatprep.subr.mxu0 0.0
  %1846 = vmatpush1.msra.mxu0 0.0
  %1847 = vmatprep.subr.mxu0 0.0
  %1848 = vmatpush1.msra.mxu0 0.0
  %1849 = vmatprep.subr.mxu0 0.0
  %1850 = vmatpush1.msra.mxu0 0.0
  %1851 = vmatprep.subr.mxu0 0.0
  %1852 = vmatpush1.msra.mxu0 0.0
  %1853 = vmatprep.subr.mxu0 0.0
  %1854 = vmatpush1.msra.mxu0 0.0
  %1855 = vmatprep.subr.mxu0 0.0
  %1856 = vmatpush1.msra.mxu0 0.0
  %1857 = vmatprep.subr.mxu0 0.0
  %1858 = vmatpush1.msra.mxu0 0.0
  %1859 = vmatprep.subr.mxu0 0.0
  %1860 = vmatpush1.msra.mxu0 0.0
  %1861 = vmatprep.mubr.f32.mxu0 0.0
  %1862 = vmatmul.mubr.f32.gmra.mrb[0].mxu0 %v1795
  %v1863 = vpop.f32.mrb[0].mxu0
  %v1864 = vadd.f32 0.0, %v1863
  %v1865 = vpop.f32.mrb[0].mxu0
  %1866 = vdwg.mxu0
  %v1867 = vadd.f32 %v1173, %v1864
  %v1868 = vxor.u32 %v1867, 2147483648
  %v1869 = vmul.f32 %v1868, 1.442695
  %v1870 = vpow.pop %v1869
  %v1871 = vadd.f32 %v1870, 1.0
  %v1872 = vrcp.pop %v1871
  %v1873 = vmul.f32 1.0, %v1872
  %v1874 = vtanh.pop %v1867
  %v1875 = vmul.f32 %v1873, %v1783
  %1877 = vrot.lane.b32.xlu0 %v1874, 64
  %v1878 = vpop.permute.xlu0 %1877
  %v1880 = vmul.f32 %v1873, %v1878
  %1882 = vrot.lane.b32.xlu0 %v1880, 32
  %v1883 = vpop.permute.xlu0 %1882
  %v1885 = vadd.f32 %v1875, %v1883
  %v1886 = vtanh.pop %v1885
  %1888 = vrot.lane.b32.xlu0 %v1886, 64
  %v1889 = vpop.permute.xlu0 %1888
  %v1891 = vmul.f32 %v1873, %v1889
  %1893 = vrot.lane.b32.xlu0 %v1891, 32
  %v1894 = vpop.permute.xlu0 %1893
  %1896 = vst.msk [vmem:[#allocation2 + $0x30] sm:$0xff] %vm215, %v1894
  %v1897 = vsel %vm215, %v1894, 0
  %1899 = vmatprep.subr.mxu0 0.0
  %1900 = vmatpush1.msra.mxu0 %v1181
  %1901 = vmatprep.subr.mxu0 0.0
  %1902 = vmatpush1.msra.mxu0 %v1182
  %1903 = vmatprep.subr.mxu0 0.0
  %1904 = vmatpush1.msra.mxu0 %v1183
  %1905 = vmatprep.subr.mxu0 0.0
  %1906 = vmatpush1.msra.mxu0 %v1184
  %1907 = vmatprep.subr.mxu0 0.0
  %1908 = vmatpush1.msra.mxu0 0.0
  %1909 = vmatprep.subr.mxu0 0.0
  %1910 = vmatpush1.msra.mxu0 0.0
  %1911 = vmatprep.subr.mxu0 0.0
  %1912 = vmatpush1.msra.mxu0 0.0
  %1913 = vmatprep.subr.mxu0 0.0
  %1914 = vmatpush1.msra.mxu0 0.0
  %1915 = vmatprep.subr.mxu0 0.0
  %1916 = vmatpush1.msra.mxu0 0.0
  %1917 = vmatprep.subr.mxu0 0.0
  %1918 = vmatpush1.msra.mxu0 0.0
  %1919 = vmatprep.subr.mxu0 0.0
  %1920 = vmatpush1.msra.mxu0 0.0
  %1921 = vmatprep.subr.mxu0 0.0
  %1922 = vmatpush1.msra.mxu0 0.0
  %1923 = vmatprep.subr.mxu0 0.0
  %1924 = vmatpush1.msra.mxu0 0.0
  %1925 = vmatprep.subr.mxu0 0.0
  %1926 = vmatpush1.msra.mxu0 0.0
  %1927 = vmatprep.subr.mxu0 0.0
  %1928 = vmatpush1.msra.mxu0 0.0
  %1929 = vmatprep.subr.mxu0 0.0
  %1930 = vmatpush1.msra.mxu0 0.0
  %1931 = vmatprep.subr.mxu0 0.0
  %1932 = vmatpush1.msra.mxu0 0.0
  %1933 = vmatprep.subr.mxu0 0.0
  %1934 = vmatpush1.msra.mxu0 0.0
  %1935 = vmatprep.subr.mxu0 0.0
  %1936 = vmatpush1.msra.mxu0 0.0
  %1937 = vmatprep.subr.mxu0 0.0
  %1938 = vmatpush1.msra.mxu0 0.0
  %1939 = vmatprep.subr.mxu0 0.0
  %1940 = vmatpush1.msra.mxu0 0.0
  %1941 = vmatprep.subr.mxu0 0.0
  %1942 = vmatpush1.msra.mxu0 0.0
  %1943 = vmatprep.subr.mxu0 0.0
  %1944 = vmatpush1.msra.mxu0 0.0
  %1945 = vmatprep.subr.mxu0 0.0
  %1946 = vmatpush1.msra.mxu0 0.0
  %1947 = vmatprep.subr.mxu0 0.0
  %1948 = vmatpush1.msra.mxu0 0.0
  %1949 = vmatprep.subr.mxu0 0.0
  %1950 = vmatpush1.msra.mxu0 0.0
  %1951 = vmatprep.subr.mxu0 0.0
  %1952 = vmatpush1.msra.mxu0 0.0
  %1953 = vmatprep.subr.mxu0 0.0
  %1954 = vmatpush1.msra.mxu0 0.0
  %1955 = vmatprep.subr.mxu0 0.0
  %1956 = vmatpush1.msra.mxu0 0.0
  %1957 = vmatprep.subr.mxu0 0.0
  %1958 = vmatpush1.msra.mxu0 0.0
  %1959 = vmatprep.subr.mxu0 0.0
  %1960 = vmatpush1.msra.mxu0 0.0
  %1961 = vmatprep.subr.mxu0 0.0
  %1962 = vmatpush1.msra.mxu0 0.0
  %1963 = vmatprep.mubr.f32.mxu0 0.0
  %1964 = vmatmul.mubr.f32.gmra.mrb[0].mxu0 %v1897
  %v1965 = vpop.f32.mrb[0].mxu0
  %v1966 = vadd.f32 0.0, %v1965
  %v1967 = vpop.f32.mrb[0].mxu0
  %1968 = vdwg.mxu0
  %v1969 = vadd.f32 %v1178, %v1966
  %v1970 = vxor.u32 %v1969, 2147483648
  %v1971 = vmul.f32 %v1970, 1.442695
  %v1972 = vpow.pop %v1971
  %v1973 = vadd.f32 %v1972, 1.0
  %v1974 = vrcp.pop %v1973
  %v1975 = vmul.f32 1.0, %v1974
  %v1976 = vtanh.pop %v1969
  %v1977 = vmul.f32 %v1975, %v1885
  %1979 = vrot.lane.b32.xlu0 %v1976, 64
  %v1980 = vpop.permute.xlu0 %1979
  %v1982 = vmul.f32 %v1975, %v1980
  %1984 = vrot.lane.b32.xlu0 %v1982, 32
  %v1985 = vpop.permute.xlu0 %1984
  %v1987 = vadd.f32 %v1977, %v1985
  %v1988 = vtanh.pop %v1987
  %1990 = vrot.lane.b32.xlu0 %v1988, 64
  %v1991 = vpop.permute.xlu0 %1990
  %v1993 = vmul.f32 %v1975, %v1991
  %1995 = vrot.lane.b32.xlu0 %v1993, 32
  %v1996 = vpop.permute.xlu0 %1995
  %1998 = vst.msk [vmem:[#allocation2 + $0x38] sm:$0xff] %vm215, %v1996
  %v1999 = vld [vmem:[#allocation2] sm:$0xff]
  %v2000 = vld [vmem:[#allocation2 + $0x8] sm:$0xff]
  %v2001 = vld [vmem:[#allocation2 + $0x10] sm:$0xff]
  %v2002 = vld [vmem:[#allocation2 + $0x18] sm:$0xff]
  %v2003 = vld [vmem:[#allocation2 + $0x20] sm:$0xff]
  %v2004 = vld [vmem:[#allocation2 + $0x28] sm:$0xff]
  %v2005 = vld [vmem:[#allocation2 + $0x30] sm:$0xff]
  %v2006 = vld [vmem:[#allocation2 + $0x38] sm:$0xff]
  %v2007 = vld [vmem:[%s8] sm:$0xff]
  %v2008 = vld [vmem:[%s8 + $0x8] sm:$0xff]
  %v2009 = vld [vmem:[%s8 + $0x10] sm:$0xff]
  %v2010 = vld [vmem:[%s8 + $0x18] sm:$0xff]
  %v2011 = vld [vmem:[%s9] sm:$0x1]
  %v2013 = vlaneseq
  %v2014 = vshrl.u32 %v2013, 7
  %v2015 = vsub.s32 0, %v2014
  %v2016 = vrot.slane %v2011, %v2015
  %v2019 = vsel %vm215, %v1999, 0
  %v2022 = vsel %vm215, %v2000, 0
  %v2025 = vsel %vm215, %v2001, 0
  %v2028 = vsel %vm215, %v2002, 0
  %v2031 = vsel %vm215, %v2003, 0
  %v2034 = vsel %vm215, %v2004, 0
  %v2037 = vsel %vm215, %v2005, 0
  %v2040 = vsel %vm215, %v2006, 0
  %2042 = vmatprep.subr.mxu0 0.0
  %2043 = vmatpush1.msra.mxu0 %v2007
  %2044 = vmatprep.subr.mxu0 0.0
  %2045 = vmatpush1.msra.mxu0 %v2008
  %2046 = vmatprep.subr.mxu0 0.0
  %2047 = vmatpush1.msra.mxu0 %v2009
  %2048 = vmatprep.subr.mxu0 0.0
  %2049 = vmatpush1.msra.mxu0 %v2010
  %2050 = vmatprep.subr.mxu0 0.0
  %2051 = vmatpush1.msra.mxu0 0.0
  %2052 = vmatprep.subr.mxu0 0.0
  %2053 = vmatpush1.msra.mxu0 0.0
  %2054 = vmatprep.subr.mxu0 0.0
  %2055 = vmatpush1.msra.mxu0 0.0
  %2056 = vmatprep.subr.mxu0 0.0
  %2057 = vmatpush1.msra.mxu0 0.0
  %2058 = vmatprep.subr.mxu0 0.0
  %2059 = vmatpush1.msra.mxu0 0.0
  %2060 = vmatprep.subr.mxu0 0.0
  %2061 = vmatpush1.msra.mxu0 0.0
  %2062 = vmatprep.subr.mxu0 0.0
  %2063 = vmatpush1.msra.mxu0 0.0
  %2064 = vmatprep.subr.mxu0 0.0
  %2065 = vmatpush1.msra.mxu0 0.0
  %2066 = vmatprep.subr.mxu0 0.0
  %2067 = vmatpush1.msra.mxu0 0.0
  %2068 = vmatprep.subr.mxu0 0.0
  %2069 = vmatpush1.msra.mxu0 0.0
  %2070 = vmatprep.subr.mxu0 0.0
  %2071 = vmatpush1.msra.mxu0 0.0
  %2072 = vmatprep.subr.mxu0 0.0
  %2073 = vmatpush1.msra.mxu0 0.0
  %2074 = vmatprep.subr.mxu0 0.0
  %2075 = vmatpush1.msra.mxu0 0.0
  %2076 = vmatprep.subr.mxu0 0.0
  %2077 = vmatpush1.msra.mxu0 0.0
  %2078 = vmatprep.subr.mxu0 0.0
  %2079 = vmatpush1.msra.mxu0 0.0
  %2080 = vmatprep.subr.mxu0 0.0
  %2081 = vmatpush1.msra.mxu0 0.0
  %2082 = vmatprep.subr.mxu0 0.0
  %2083 = vmatpush1.msra.mxu0 0.0
  %2084 = vmatprep.subr.mxu0 0.0
  %2085 = vmatpush1.msra.mxu0 0.0
  %2086 = vmatprep.subr.mxu0 0.0
  %2087 = vmatpush1.msra.mxu0 0.0
  %2088 = vmatprep.subr.mxu0 0.0
  %2089 = vmatpush1.msra.mxu0 0.0
  %2090 = vmatprep.subr.mxu0 0.0
  %2091 = vmatpush1.msra.mxu0 0.0
  %2092 = vmatprep.subr.mxu0 0.0
  %2093 = vmatpush1.msra.mxu0 0.0
  %2094 = vmatprep.subr.mxu0 0.0
  %2095 = vmatpush1.msra.mxu0 0.0
  %2096 = vmatprep.subr.mxu0 0.0
  %2097 = vmatpush1.msra.mxu0 0.0
  %2098 = vmatprep.subr.mxu0 0.0
  %2099 = vmatpush1.msra.mxu0 0.0
  %2100 = vmatprep.subr.mxu0 0.0
  %2101 = vmatpush1.msra.mxu0 0.0
  %2102 = vmatprep.subr.mxu0 0.0
  %2103 = vmatpush1.msra.mxu0 0.0
  %2104 = vmatprep.subr.mxu0 0.0
  %2105 = vmatpush1.msra.mxu0 0.0
  %2106 = vmatprep.mubr.f32.mxu0 0.0
  %2107 = vmatmul.mubr.f32.gmra.mrb[0].mxu0 %v2019
  %v2108 = vpop.f32.mrb[0].mxu0
  %v2109 = vadd.f32 %v2016, %v2108
  %v2110 = vpop.f32.mrb[0].mxu0
  %2111 = vmatprep.mubr.f32.mxu0 0.0
  %2112 = vmatmul.mubr.f32.gmra.mrb[0].mxu0 %v2022
  %v2113 = vpop.f32.mrb[0].mxu0
  %v2114 = vadd.f32 %v2016, %v2113
  %v2115 = vpop.f32.mrb[0].mxu0
  %2116 = vmatprep.mubr.f32.mxu0 0.0
  %2117 = vmatmul.mubr.f32.gmra.mrb[0].mxu0 %v2025
  %v2118 = vpop.f32.mrb[0].mxu0
  %v2119 = vadd.f32 %v2016, %v2118
  %v2120 = vpop.f32.mrb[0].mxu0
  %2121 = vmatprep.mubr.f32.mxu0 0.0
  %2122 = vmatmul.mubr.f32.gmra.mrb[0].mxu0 %v2028
  %v2123 = vpop.f32.mrb[0].mxu0
  %v2124 = vadd.f32 %v2016, %v2123
  %v2125 = vpop.f32.mrb[0].mxu0
  %2126 = vmatprep.mubr.f32.mxu0 0.0
  %2127 = vmatmul.mubr.f32.gmra.mrb[0].mxu0 %v2031
  %v2128 = vpop.f32.mrb[0].mxu0
  %v2129 = vadd.f32 %v2016, %v2128
  %v2130 = vpop.f32.mrb[0].mxu0
  %2131 = vmatprep.mubr.f32.mxu0 0.0
  %2132 = vmatmul.mubr.f32.gmra.mrb[0].mxu0 %v2034
  %v2133 = vpop.f32.mrb[0].mxu0
  %v2134 = vadd.f32 %v2016, %v2133
  %v2135 = vpop.f32.mrb[0].mxu0
  %2136 = vmatprep.mubr.f32.mxu0 0.0
  %2137 = vmatmul.mubr.f32.gmra.mrb[0].mxu0 %v2037
  %v2138 = vpop.f32.mrb[0].mxu0
  %v2139 = vadd.f32 %v2016, %v2138
  %v2140 = vpop.f32.mrb[0].mxu0
  %2141 = vmatprep.mubr.f32.mxu0 0.0
  %2142 = vmatmul.mubr.f32.gmra.mrb[0].mxu0 %v2040
  %v2143 = vpop.f32.mrb[0].mxu0
  %v2144 = vadd.f32 %v2016, %v2143
  %v2145 = vpop.f32.mrb[0].mxu0
  %2146 = vdwg.mxu0
  %v2147 = vmul.f32 %v2109, 0.5
  %v2148 = vmul.f32 %v2114, 0.5
  %v2149 = vmul.f32 %v2119, 0.5
  %v2150 = vmul.f32 %v2124, 0.5
  %v2151 = vmul.f32 %v2129, 0.5
  %v2152 = vmul.f32 %v2134, 0.5
  %v2153 = vmul.f32 %v2139, 0.5
  %v2154 = vmul.f32 %v2144, 0.5
  %v2155 = vmul.f32 %v2147, 1.442695
  %v2156 = vpow.pop %v2155
  %v2157 = vmul.f32 %v2148, 1.442695
  %v2158 = vpow.pop %v2157
  %v2159 = vmul.f32 %v2149, 1.442695
  %v2160 = vpow.pop %v2159
  %v2161 = vmul.f32 %v2150, 1.442695
  %v2162 = vpow.pop %v2161
  %v2163 = vmul.f32 %v2151, 1.442695
  %v2164 = vpow.pop %v2163
  %v2165 = vmul.f32 %v2152, 1.442695
  %v2166 = vpow.pop %v2165
  %v2167 = vmul.f32 %v2153, 1.442695
  %v2168 = vpow.pop %v2167
  %v2169 = vmul.f32 %v2154, 1.442695
  %v2170 = vpow.pop %v2169
  %v2171 = vld [vmem:[%s1] sm:$0xff]
  %v2172 = vld [vmem:[%s1 + $0x8] sm:$0xff]
  %v2173 = vld [vmem:[%s1 + $0x10] sm:$0xff]
  %v2174 = vld [vmem:[%s1 + $0x18] sm:$0xff]
  %v2175 = vld [vmem:[%s1 + $0x20] sm:$0xff]
  %v2176 = vld [vmem:[%s1 + $0x28] sm:$0xff]
  %v2177 = vld [vmem:[%s1 + $0x30] sm:$0xff]
  %v2178 = vld [vmem:[%s1 + $0x38] sm:$0xff]
  %2187 = vrot.lane.b32.xlu0 %v2171, 8
  %v2188 = vpop.permute.xlu0 %2187
  %2189 = vrot.lane.b32.xlu0 %v2172, 8
  %v2190 = vpop.permute.xlu0 %2189
  %2191 = vrot.lane.b32.xlu0 %v2173, 8
  %v2192 = vpop.permute.xlu0 %2191
  %2193 = vrot.lane.b32.xlu0 %v2174, 8
  %v2194 = vpop.permute.xlu0 %2193
  %2195 = vrot.lane.b32.xlu0 %v2175, 8
  %v2196 = vpop.permute.xlu0 %2195
  %2197 = vrot.lane.b32.xlu0 %v2176, 8
  %v2198 = vpop.permute.xlu0 %2197
  %2199 = vrot.lane.b32.xlu0 %v2177, 8
  %v2200 = vpop.permute.xlu0 %2199
  %2201 = vrot.lane.b32.xlu0 %v2178, 8
  %v2202 = vpop.permute.xlu0 %2201
  %v2211 = vmul.f32 %v2156, %v2188
  %v2212 = vmul.f32 %v2158, %v2190
  %v2213 = vmul.f32 %v2160, %v2192
  %v2214 = vmul.f32 %v2162, %v2194
  %v2215 = vmul.f32 %v2164, %v2196
  %v2216 = vmul.f32 %v2166, %v2198
  %v2217 = vmul.f32 %v2168, %v2200
  %v2218 = vmul.f32 %v2170, %v2202
  %2227 = vrot.lane.b32.xlu0 %v2211, 120
  %v2228 = vpop.permute.xlu0 %2227
  %2229 = vrot.lane.b32.xlu0 %v2212, 120
  %v2230 = vpop.permute.xlu0 %2229
  %2231 = vrot.lane.b32.xlu0 %v2213, 120
  %v2232 = vpop.permute.xlu0 %2231
  %2233 = vrot.lane.b32.xlu0 %v2214, 120
  %v2234 = vpop.permute.xlu0 %2233
  %2235 = vrot.lane.b32.xlu0 %v2215, 120
  %v2236 = vpop.permute.xlu0 %2235
  %2237 = vrot.lane.b32.xlu0 %v2216, 120
  %v2238 = vpop.permute.xlu0 %2237
  %2239 = vrot.lane.b32.xlu0 %v2217, 120
  %v2240 = vpop.permute.xlu0 %2239
  %2241 = vrot.lane.b32.xlu0 %v2218, 120
  %v2242 = vpop.permute.xlu0 %2241
  %v2251 = vadd.f32 %v2109, %v2228
  %v2252 = vadd.f32 %v2114, %v2230
  %v2253 = vadd.f32 %v2119, %v2232
  %v2254 = vadd.f32 %v2124, %v2234
  %v2255 = vadd.f32 %v2129, %v2236
  %v2256 = vadd.f32 %v2134, %v2238
  %v2257 = vadd.f32 %v2139, %v2240
  %v2258 = vadd.f32 %v2144, %v2242
  %vm2259 = vcmask 64512
  %2260 = vst.msk [vmem:[%s18] sm:$0xff] %vm2259, %v2251
  %2261 = vst.msk [vmem:[%s18 + $0x8] sm:$0xff] %vm2259, %v2252
  %2262 = vst.msk [vmem:[%s18 + $0x10] sm:$0xff] %vm2259, %v2253
  %2263 = vst.msk [vmem:[%s18 + $0x18] sm:$0xff] %vm2259, %v2254
  %2264 = vst.msk [vmem:[%s18 + $0x20] sm:$0xff] %vm2259, %v2255
  %2265 = vst.msk [vmem:[%s18 + $0x28] sm:$0xff] %vm2259, %v2256
  %2266 = vst.msk [vmem:[%s18 + $0x30] sm:$0xff] %vm2259, %v2257
  %2267 = vst.msk [vmem:[%s18 + $0x38] sm:$0xff] %vm2259, %v2258
  %v2268 = vld [vmem:[%s10] sm:$0xff]
  %v2269 = vld [vmem:[%s12] sm:$0x1]
  %v2271 = vlaneseq
  %v2272 = vshrl.u32 %v2271, 7
  %v2273 = vsub.s32 0, %v2272
  %v2274 = vrot.slane %v2269, %v2273
  %v2277 = vsel %vm2259, %v2251, 0
  %v2280 = vsel %vm2259, %v2252, 0
  %v2283 = vsel %vm2259, %v2253, 0
  %v2286 = vsel %vm2259, %v2254, 0
  %v2289 = vsel %vm2259, %v2255, 0
  %v2292 = vsel %vm2259, %v2256, 0
  %v2295 = vsel %vm2259, %v2257, 0
  %v2298 = vsel %vm2259, %v2258, 0
  %2300 = vmatprep.subr.mxu0 0.0
  %2301 = vmatpush1.msra.mxu0 %v2268
  %2302 = vmatprep.subr.mxu0 0.0
  %2303 = vmatpush1.msra.mxu0 0.0
  %2304 = vmatprep.subr.mxu0 0.0
  %2305 = vmatpush1.msra.mxu0 0.0
  %2306 = vmatprep.subr.mxu0 0.0
  %2307 = vmatpush1.msra.mxu0 0.0
  %2308 = vmatprep.subr.mxu0 0.0
  %2309 = vmatpush1.msra.mxu0 0.0
  %2310 = vmatprep.subr.mxu0 0.0
  %2311 = vmatpush1.msra.mxu0 0.0
  %2312 = vmatprep.subr.mxu0 0.0
  %2313 = vmatpush1.msra.mxu0 0.0
  %2314 = vmatprep.subr.mxu0 0.0
  %2315 = vmatpush1.msra.mxu0 0.0
  %2316 = vmatprep.subr.mxu0 0.0
  %2317 = vmatpush1.msra.mxu0 0.0
  %2318 = vmatprep.subr.mxu0 0.0
  %2319 = vmatpush1.msra.mxu0 0.0
  %2320 = vmatprep.subr.mxu0 0.0
  %2321 = vmatpush1.msra.mxu0 0.0
  %2322 = vmatprep.subr.mxu0 0.0
  %2323 = vmatpush1.msra.mxu0 0.0
  %2324 = vmatprep.subr.mxu0 0.0
  %2325 = vmatpush1.msra.mxu0 0.0
  %2326 = vmatprep.subr.mxu0 0.0
  %2327 = vmatpush1.msra.mxu0 0.0
  %2328 = vmatprep.subr.mxu0 0.0
  %2329 = vmatpush1.msra.mxu0 0.0
  %2330 = vmatprep.subr.mxu0 0.0
  %2331 = vmatpush1.msra.mxu0 0.0
  %2332 = vmatprep.subr.mxu0 0.0
  %2333 = vmatpush1.msra.mxu0 0.0
  %2334 = vmatprep.subr.mxu0 0.0
  %2335 = vmatpush1.msra.mxu0 0.0
  %2336 = vmatprep.subr.mxu0 0.0
  %2337 = vmatpush1.msra.mxu0 0.0
  %2338 = vmatprep.subr.mxu0 0.0
  %2339 = vmatpush1.msra.mxu0 0.0
  %2340 = vmatprep.subr.mxu0 0.0
  %2341 = vmatpush1.msra.mxu0 0.0
  %2342 = vmatprep.subr.mxu0 0.0
  %2343 = vmatpush1.msra.mxu0 0.0
  %2344 = vmatprep.subr.mxu0 0.0
  %2345 = vmatpush1.msra.mxu0 0.0
  %2346 = vmatprep.subr.mxu0 0.0
  %2347 = vmatpush1.msra.mxu0 0.0
  %2348 = vmatprep.subr.mxu0 0.0
  %2349 = vmatpush1.msra.mxu0 0.0
  %2350 = vmatprep.subr.mxu0 0.0
  %2351 = vmatpush1.msra.mxu0 0.0
  %2352 = vmatprep.subr.mxu0 0.0
  %2353 = vmatpush1.msra.mxu0 0.0
  %2354 = vmatprep.subr.mxu0 0.0
  %2355 = vmatpush1.msra.mxu0 0.0
  %2356 = vmatprep.subr.mxu0 0.0
  %2357 = vmatpush1.msra.mxu0 0.0
  %2358 = vmatprep.subr.mxu0 0.0
  %2359 = vmatpush1.msra.mxu0 0.0
  %2360 = vmatprep.subr.mxu0 0.0
  %2361 = vmatpush1.msra.mxu0 0.0
  %2362 = vmatprep.subr.mxu0 0.0
  %2363 = vmatpush1.msra.mxu0 0.0
  %2364 = vmatprep.mubr.f32.mxu0 0.0
  %2365 = vmatmul.mubr.f32.gmra.mrb[0].mxu0 %v2277
  %v2366 = vpop.f32.mrb[0].mxu0
  %v2367 = vadd.f32 %v2274, %v2366
  %v2368 = vpop.f32.mrb[0].mxu0
  %2369 = vmatprep.mubr.f32.mxu0 0.0
  %2370 = vmatmul.mubr.f32.gmra.mrb[0].mxu0 %v2280
  %v2371 = vpop.f32.mrb[0].mxu0
  %v2372 = vadd.f32 %v2274, %v2371
  %v2373 = vpop.f32.mrb[0].mxu0
  %2374 = vmatprep.mubr.f32.mxu0 0.0
  %2375 = vmatmul.mubr.f32.gmra.mrb[0].mxu0 %v2283
  %v2376 = vpop.f32.mrb[0].mxu0
  %v2377 = vadd.f32 %v2274, %v2376
  %v2378 = vpop.f32.mrb[0].mxu0
  %2379 = vmatprep.mubr.f32.mxu0 0.0
  %2380 = vmatmul.mubr.f32.gmra.mrb[0].mxu0 %v2286
  %v2381 = vpop.f32.mrb[0].mxu0
  %v2382 = vadd.f32 %v2274, %v2381
  %v2383 = vpop.f32.mrb[0].mxu0
  %2384 = vmatprep.mubr.f32.mxu0 0.0
  %2385 = vmatmul.mubr.f32.gmra.mrb[0].mxu0 %v2289
  %v2386 = vpop.f32.mrb[0].mxu0
  %v2387 = vadd.f32 %v2274, %v2386
  %v2388 = vpop.f32.mrb[0].mxu0
  %2389 = vmatprep.mubr.f32.mxu0 0.0
  %2390 = vmatmul.mubr.f32.gmra.mrb[0].mxu0 %v2292
  %v2391 = vpop.f32.mrb[0].mxu0
  %v2392 = vadd.f32 %v2274, %v2391
  %v2393 = vpop.f32.mrb[0].mxu0
  %2394 = vmatprep.mubr.f32.mxu0 0.0
  %2395 = vmatmul.mubr.f32.gmra.mrb[0].mxu0 %v2295
  %v2396 = vpop.f32.mrb[0].mxu0
  %v2397 = vadd.f32 %v2274, %v2396
  %v2398 = vpop.f32.mrb[0].mxu0
  %2399 = vmatprep.mubr.f32.mxu0 0.0
  %2400 = vmatmul.mubr.f32.gmra.mrb[0].mxu0 %v2298
  %v2401 = vpop.f32.mrb[0].mxu0
  %v2402 = vadd.f32 %v2274, %v2401
  %v2403 = vpop.f32.mrb[0].mxu0
  %2404 = vdwg.mxu0
  %v2405 = vld [vmem:[%s11] sm:$0xff]
  %v2406 = vld [vmem:[%s11 + $0x8] sm:$0xff]
  %v2407 = vld [vmem:[%s11 + $0x10] sm:$0xff]
  %v2408 = vld [vmem:[%s11 + $0x18] sm:$0xff]
  %2409 = vmatprep.subr.mxu0 0.0
  %2410 = vmatpush1.msra.mxu0 %v2405
  %2411 = vmatprep.subr.mxu0 0.0
  %2412 = vmatpush1.msra.mxu0 %v2406
  %2413 = vmatprep.subr.mxu0 0.0
  %2414 = vmatpush1.msra.mxu0 %v2407
  %2415 = vmatprep.subr.mxu0 0.0
  %2416 = vmatpush1.msra.mxu0 %v2408
  %2417 = vmatprep.subr.mxu0 0.0
  %2418 = vmatpush1.msra.mxu0 0.0
  %2419 = vmatprep.subr.mxu0 0.0
  %2420 = vmatpush1.msra.mxu0 0.0
  %2421 = vmatprep.subr.mxu0 0.0
  %2422 = vmatpush1.msra.mxu0 0.0
  %2423 = vmatprep.subr.mxu0 0.0
  %2424 = vmatpush1.msra.mxu0 0.0
  %2425 = vmatprep.subr.mxu0 0.0
  %2426 = vmatpush1.msra.mxu0 0.0
  %2427 = vmatprep.subr.mxu0 0.0
  %2428 = vmatpush1.msra.mxu0 0.0
  %2429 = vmatprep.subr.mxu0 0.0
  %2430 = vmatpush1.msra.mxu0 0.0
  %2431 = vmatprep.subr.mxu0 0.0
  %2432 = vmatpush1.msra.mxu0 0.0
  %2433 = vmatprep.subr.mxu0 0.0
  %2434 = vmatpush1.msra.mxu0 0.0
  %2435 = vmatprep.subr.mxu0 0.0
  %2436 = vmatpush1.msra.mxu0 0.0
  %2437 = vmatprep.subr.mxu0 0.0
  %2438 = vmatpush1.msra.mxu0 0.0
  %2439 = vmatprep.subr.mxu0 0.0
  %2440 = vmatpush1.msra.mxu0 0.0
  %2441 = vmatprep.subr.mxu0 0.0
  %2442 = vmatpush1.msra.mxu0 0.0
  %2443 = vmatprep.subr.mxu0 0.0
  %2444 = vmatpush1.msra.mxu0 0.0
  %2445 = vmatprep.subr.mxu0 0.0
  %2446 = vmatpush1.msra.mxu0 0.0
  %2447 = vmatprep.subr.mxu0 0.0
  %2448 = vmatpush1.msra.mxu0 0.0
  %2449 = vmatprep.subr.mxu0 0.0
  %2450 = vmatpush1.msra.mxu0 0.0
  %2451 = vmatprep.subr.mxu0 0.0
  %2452 = vmatpush1.msra.mxu0 0.0
  %2453 = vmatprep.subr.mxu0 0.0
  %2454 = vmatpush1.msra.mxu0 0.0
  %2455 = vmatprep.subr.mxu0 0.0
  %2456 = vmatpush1.msra.mxu0 0.0
  %2457 = vmatprep.subr.mxu0 0.0
  %2458 = vmatpush1.msra.mxu0 0.0
  %2459 = vmatprep.subr.mxu0 0.0
  %2460 = vmatpush1.msra.mxu0 0.0
  %2461 = vmatprep.subr.mxu0 0.0
  %2462 = vmatpush1.msra.mxu0 0.0
  %2463 = vmatprep.subr.mxu0 0.0
  %2464 = vmatpush1.msra.mxu0 0.0
  %2465 = vmatprep.subr.mxu0 0.0
  %2466 = vmatpush1.msra.mxu0 0.0
  %2467 = vmatprep.subr.mxu0 0.0
  %2468 = vmatpush1.msra.mxu0 0.0
  %2469 = vmatprep.subr.mxu0 0.0
  %2470 = vmatpush1.msra.mxu0 0.0
  %2471 = vmatprep.subr.mxu0 0.0
  %2472 = vmatpush1.msra.mxu0 0.0
  %2473 = vmatprep.mubr.f32.mxu0 0.0
  %2474 = vmatmul.mubr.f32.gmra.mrb[0].mxu0 %v217
  %v2475 = vpop.f32.mrb[0].mxu0
  %v2476 = vadd.f32 0.0, %v2475
  %v2477 = vpop.f32.mrb[0].mxu0
  %2478 = vdwg.mxu0
  %v2479 = vadd.f32 %v2367, %v2476
  %v2480 = vxor.u32 %v2479, 2147483648
  %v2481 = vmul.f32 %v2480, 1.442695
  %v2482 = vpow.pop %v2481
  %v2483 = vadd.f32 %v2482, 1.0
  %v2484 = vrcp.pop %v2483
  %v2485 = vmul.f32 1.0, %v2484
  %v2486 = vtanh.pop %v2479
  %v2487 = vmul.f32 %v2485, 0.0
  %2489 = vrot.lane.b32.xlu0 %v2486, 64
  %v2490 = vpop.permute.xlu0 %2489
  %v2492 = vmul.f32 %v2485, %v2490
  %2494 = vrot.lane.b32.xlu0 %v2492, 32
  %v2495 = vpop.permute.xlu0 %2494
  %v2497 = vadd.f32 %v2487, %v2495
  %v2498 = vtanh.pop %v2497
  %2500 = vrot.lane.b32.xlu0 %v2498, 64
  %v2501 = vpop.permute.xlu0 %2500
  %v2503 = vmul.f32 %v2485, %v2501
  %2505 = vrot.lane.b32.xlu0 %v2503, 32
  %v2506 = vpop.permute.xlu0 %2505
  %2508 = vst.msk [vmem:[#allocation2] sm:$0xff] %vm215, %v2506
  %v2509 = vsel %vm215, %v2506, 0
  %2511 = vmatprep.subr.mxu0 0.0
  %2512 = vmatpush1.msra.mxu0 %v2405
  %2513 = vmatprep.subr.mxu0 0.0
  %2514 = vmatpush1.msra.mxu0 %v2406
  %2515 = vmatprep.subr.mxu0 0.0
  %2516 = vmatpush1.msra.mxu0 %v2407
  %2517 = vmatprep.subr.mxu0 0.0
  %2518 = vmatpush1.msra.mxu0 %v2408
  %2519 = vmatprep.subr.mxu0 0.0
  %2520 = vmatpush1.msra.mxu0 0.0
  %2521 = vmatprep.subr.mxu0 0.0
  %2522 = vmatpush1.msra.mxu0 0.0
  %2523 = vmatprep.subr.mxu0 0.0
  %2524 = vmatpush1.msra.mxu0 0.0
  %2525 = vmatprep.subr.mxu0 0.0
  %2526 = vmatpush1.msra.mxu0 0.0
  %2527 = vmatprep.subr.mxu0 0.0
  %2528 = vmatpush1.msra.mxu0 0.0
  %2529 = vmatprep.subr.mxu0 0.0
  %2530 = vmatpush1.msra.mxu0 0.0
  %2531 = vmatprep.subr.mxu0 0.0
  %2532 = vmatpush1.msra.mxu0 0.0
  %2533 = vmatprep.subr.mxu0 0.0
  %2534 = vmatpush1.msra.mxu0 0.0
  %2535 = vmatprep.subr.mxu0 0.0
  %2536 = vmatpush1.msra.mxu0 0.0
  %2537 = vmatprep.subr.mxu0 0.0
  %2538 = vmatpush1.msra.mxu0 0.0
  %2539 = vmatprep.subr.mxu0 0.0
  %2540 = vmatpush1.msra.mxu0 0.0
  %2541 = vmatprep.subr.mxu0 0.0
  %2542 = vmatpush1.msra.mxu0 0.0
  %2543 = vmatprep.subr.mxu0 0.0
  %2544 = vmatpush1.msra.mxu0 0.0
  %2545 = vmatprep.subr.mxu0 0.0
  %2546 = vmatpush1.msra.mxu0 0.0
  %2547 = vmatprep.subr.mxu0 0.0
  %2548 = vmatpush1.msra.mxu0 0.0
  %2549 = vmatprep.subr.mxu0 0.0
  %2550 = vmatpush1.msra.mxu0 0.0
  %2551 = vmatprep.subr.mxu0 0.0
  %2552 = vmatpush1.msra.mxu0 0.0
  %2553 = vmatprep.subr.mxu0 0.0
  %2554 = vmatpush1.msra.mxu0 0.0
  %2555 = vmatprep.subr.mxu0 0.0
  %2556 = vmatpush1.msra.mxu0 0.0
  %2557 = vmatprep.subr.mxu0 0.0
  %2558 = vmatpush1.msra.mxu0 0.0
  %2559 = vmatprep.subr.mxu0 0.0
  %2560 = vmatpush1.msra.mxu0 0.0
  %2561 = vmatprep.subr.mxu0 0.0
  %2562 = vmatpush1.msra.mxu0 0.0
  %2563 = vmatprep.subr.mxu0 0.0
  %2564 = vmatpush1.msra.mxu0 0.0
  %2565 = vmatprep.subr.mxu0 0.0
  %2566 = vmatpush1.msra.mxu0 0.0
  %2567 = vmatprep.subr.mxu0 0.0
  %2568 = vmatpush1.msra.mxu0 0.0
  %2569 = vmatprep.subr.mxu0 0.0
  %2570 = vmatpush1.msra.mxu0 0.0
  %2571 = vmatprep.subr.mxu0 0.0
  %2572 = vmatpush1.msra.mxu0 0.0
  %2573 = vmatprep.subr.mxu0 0.0
  %2574 = vmatpush1.msra.mxu0 0.0
  %2575 = vmatprep.mubr.f32.mxu0 0.0
  %2576 = vmatmul.mubr.f32.gmra.mrb[0].mxu0 %v2509
  %v2577 = vpop.f32.mrb[0].mxu0
  %v2578 = vadd.f32 0.0, %v2577
  %v2579 = vpop.f32.mrb[0].mxu0
  %2580 = vdwg.mxu0
  %v2581 = vadd.f32 %v2372, %v2578
  %v2582 = vxor.u32 %v2581, 2147483648
  %v2583 = vmul.f32 %v2582, 1.442695
  %v2584 = vpow.pop %v2583
  %v2585 = vadd.f32 %v2584, 1.0
  %v2586 = vrcp.pop %v2585
  %v2587 = vmul.f32 1.0, %v2586
  %v2588 = vtanh.pop %v2581
  %v2589 = vmul.f32 %v2587, %v2497
  %2591 = vrot.lane.b32.xlu0 %v2588, 64
  %v2592 = vpop.permute.xlu0 %2591
  %v2594 = vmul.f32 %v2587, %v2592
  %2596 = vrot.lane.b32.xlu0 %v2594, 32
  %v2597 = vpop.permute.xlu0 %2596
  %v2599 = vadd.f32 %v2589, %v2597
  %v2600 = vtanh.pop %v2599
  %2602 = vrot.lane.b32.xlu0 %v2600, 64
  %v2603 = vpop.permute.xlu0 %2602
  %v2605 = vmul.f32 %v2587, %v2603
  %2607 = vrot.lane.b32.xlu0 %v2605, 32
  %v2608 = vpop.permute.xlu0 %2607
  %2610 = vst.msk [vmem:[#allocation2 + $0x8] sm:$0xff] %vm215, %v2608
  %v2611 = vsel %vm215, %v2608, 0
  %2613 = vmatprep.subr.mxu0 0.0
  %2614 = vmatpush1.msra.mxu0 %v2405
  %2615 = vmatprep.subr.mxu0 0.0
  %2616 = vmatpush1.msra.mxu0 %v2406
  %2617 = vmatprep.subr.mxu0 0.0
  %2618 = vmatpush1.msra.mxu0 %v2407
  %2619 = vmatprep.subr.mxu0 0.0
  %2620 = vmatpush1.msra.mxu0 %v2408
  %2621 = vmatprep.subr.mxu0 0.0
  %2622 = vmatpush1.msra.mxu0 0.0
  %2623 = vmatprep.subr.mxu0 0.0
  %2624 = vmatpush1.msra.mxu0 0.0
  %2625 = vmatprep.subr.mxu0 0.0
  %2626 = vmatpush1.msra.mxu0 0.0
  %2627 = vmatprep.subr.mxu0 0.0
  %2628 = vmatpush1.msra.mxu0 0.0
  %2629 = vmatprep.subr.mxu0 0.0
  %2630 = vmatpush1.msra.mxu0 0.0
  %2631 = vmatprep.subr.mxu0 0.0
  %2632 = vmatpush1.msra.mxu0 0.0
  %2633 = vmatprep.subr.mxu0 0.0
  %2634 = vmatpush1.msra.mxu0 0.0
  %2635 = vmatprep.subr.mxu0 0.0
  %2636 = vmatpush1.msra.mxu0 0.0
  %2637 = vmatprep.subr.mxu0 0.0
  %2638 = vmatpush1.msra.mxu0 0.0
  %2639 = vmatprep.subr.mxu0 0.0
  %2640 = vmatpush1.msra.mxu0 0.0
  %2641 = vmatprep.subr.mxu0 0.0
  %2642 = vmatpush1.msra.mxu0 0.0
  %2643 = vmatprep.subr.mxu0 0.0
  %2644 = vmatpush1.msra.mxu0 0.0
  %2645 = vmatprep.subr.mxu0 0.0
  %2646 = vmatpush1.msra.mxu0 0.0
  %2647 = vmatprep.subr.mxu0 0.0
  %2648 = vmatpush1.msra.mxu0 0.0
  %2649 = vmatprep.subr.mxu0 0.0
  %2650 = vmatpush1.msra.mxu0 0.0
  %2651 = vmatprep.subr.mxu0 0.0
  %2652 = vmatpush1.msra.mxu0 0.0
  %2653 = vmatprep.subr.mxu0 0.0
  %2654 = vmatpush1.msra.mxu0 0.0
  %2655 = vmatprep.subr.mxu0 0.0
  %2656 = vmatpush1.msra.mxu0 0.0
  %2657 = vmatprep.subr.mxu0 0.0
  %2658 = vmatpush1.msra.mxu0 0.0
  %2659 = vmatprep.subr.mxu0 0.0
  %2660 = vmatpush1.msra.mxu0 0.0
  %2661 = vmatprep.subr.mxu0 0.0
  %2662 = vmatpush1.msra.mxu0 0.0
  %2663 = vmatprep.subr.mxu0 0.0
  %2664 = vmatpush1.msra.mxu0 0.0
  %2665 = vmatprep.subr.mxu0 0.0
  %2666 = vmatpush1.msra.mxu0 0.0
  %2667 = vmatprep.subr.mxu0 0.0
  %2668 = vmatpush1.msra.mxu0 0.0
  %2669 = vmatprep.subr.mxu0 0.0
  %2670 = vmatpush1.msra.mxu0 0.0
  %2671 = vmatprep.subr.mxu0 0.0
  %2672 = vmatpush1.msra.mxu0 0.0
  %2673 = vmatprep.subr.mxu0 0.0
  %2674 = vmatpush1.msra.mxu0 0.0
  %2675 = vmatprep.subr.mxu0 0.0
  %2676 = vmatpush1.msra.mxu0 0.0
  %2677 = vmatprep.mubr.f32.mxu0 0.0
  %2678 = vmatmul.mubr.f32.gmra.mrb[0].mxu0 %v2611
  %v2679 = vpop.f32.mrb[0].mxu0
  %v2680 = vadd.f32 0.0, %v2679
  %v2681 = vpop.f32.mrb[0].mxu0
  %2682 = vdwg.mxu0
  %v2683 = vadd.f32 %v2377, %v2680
  %v2684 = vxor.u32 %v2683, 2147483648
  %v2685 = vmul.f32 %v2684, 1.442695
  %v2686 = vpow.pop %v2685
  %v2687 = vadd.f32 %v2686, 1.0
  %v2688 = vrcp.pop %v2687
  %v2689 = vmul.f32 1.0, %v2688
  %v2690 = vtanh.pop %v2683
  %v2691 = vmul.f32 %v2689, %v2599
  %2693 = vrot.lane.b32.xlu0 %v2690, 64
  %v2694 = vpop.permute.xlu0 %2693
  %v2696 = vmul.f32 %v2689, %v2694
  %2698 = vrot.lane.b32.xlu0 %v2696, 32
  %v2699 = vpop.permute.xlu0 %2698
  %v2701 = vadd.f32 %v2691, %v2699
  %v2702 = vtanh.pop %v2701
  %2704 = vrot.lane.b32.xlu0 %v2702, 64
  %v2705 = vpop.permute.xlu0 %2704
  %v2707 = vmul.f32 %v2689, %v2705
  %2709 = vrot.lane.b32.xlu0 %v2707, 32
  %v2710 = vpop.permute.xlu0 %2709
  %2712 = vst.msk [vmem:[#allocation2 + $0x10] sm:$0xff] %vm215, %v2710
  %v2713 = vsel %vm215, %v2710, 0
  %2715 = vmatprep.subr.mxu0 0.0
  %2716 = vmatpush1.msra.mxu0 %v2405
  %2717 = vmatprep.subr.mxu0 0.0
  %2718 = vmatpush1.msra.mxu0 %v2406
  %2719 = vmatprep.subr.mxu0 0.0
  %2720 = vmatpush1.msra.mxu0 %v2407
  %2721 = vmatprep.subr.mxu0 0.0
  %2722 = vmatpush1.msra.mxu0 %v2408
  %2723 = vmatprep.subr.mxu0 0.0
  %2724 = vmatpush1.msra.mxu0 0.0
  %2725 = vmatprep.subr.mxu0 0.0
  %2726 = vmatpush1.msra.mxu0 0.0
  %2727 = vmatprep.subr.mxu0 0.0
  %2728 = vmatpush1.msra.mxu0 0.0
  %2729 = vmatprep.subr.mxu0 0.0
  %2730 = vmatpush1.msra.mxu0 0.0
  %2731 = vmatprep.subr.mxu0 0.0
  %2732 = vmatpush1.msra.mxu0 0.0
  %2733 = vmatprep.subr.mxu0 0.0
  %2734 = vmatpush1.msra.mxu0 0.0
  %2735 = vmatprep.subr.mxu0 0.0
  %2736 = vmatpush1.msra.mxu0 0.0
  %2737 = vmatprep.subr.mxu0 0.0
  %2738 = vmatpush1.msra.mxu0 0.0
  %2739 = vmatprep.subr.mxu0 0.0
  %2740 = vmatpush1.msra.mxu0 0.0
  %2741 = vmatprep.subr.mxu0 0.0
  %2742 = vmatpush1.msra.mxu0 0.0
  %2743 = vmatprep.subr.mxu0 0.0
  %2744 = vmatpush1.msra.mxu0 0.0
  %2745 = vmatprep.subr.mxu0 0.0
  %2746 = vmatpush1.msra.mxu0 0.0
  %2747 = vmatprep.subr.mxu0 0.0
  %2748 = vmatpush1.msra.mxu0 0.0
  %2749 = vmatprep.subr.mxu0 0.0
  %2750 = vmatpush1.msra.mxu0 0.0
  %2751 = vmatprep.subr.mxu0 0.0
  %2752 = vmatpush1.msra.mxu0 0.0
  %2753 = vmatprep.subr.mxu0 0.0
  %2754 = vmatpush1.msra.mxu0 0.0
  %2755 = vmatprep.subr.mxu0 0.0
  %2756 = vmatpush1.msra.mxu0 0.0
  %2757 = vmatprep.subr.mxu0 0.0
  %2758 = vmatpush1.msra.mxu0 0.0
  %2759 = vmatprep.subr.mxu0 0.0
  %2760 = vmatpush1.msra.mxu0 0.0
  %2761 = vmatprep.subr.mxu0 0.0
  %2762 = vmatpush1.msra.mxu0 0.0
  %2763 = vmatprep.subr.mxu0 0.0
  %2764 = vmatpush1.msra.mxu0 0.0
  %2765 = vmatprep.subr.mxu0 0.0
  %2766 = vmatpush1.msra.mxu0 0.0
  %2767 = vmatprep.subr.mxu0 0.0
  %2768 = vmatpush1.msra.mxu0 0.0
  %2769 = vmatprep.subr.mxu0 0.0
  %2770 = vmatpush1.msra.mxu0 0.0
  %2771 = vmatprep.subr.mxu0 0.0
  %2772 = vmatpush1.msra.mxu0 0.0
  %2773 = vmatprep.subr.mxu0 0.0
  %2774 = vmatpush1.msra.mxu0 0.0
  %2775 = vmatprep.subr.mxu0 0.0
  %2776 = vmatpush1.msra.mxu0 0.0
  %2777 = vmatprep.subr.mxu0 0.0
  %2778 = vmatpush1.msra.mxu0 0.0
  %2779 = vmatprep.mubr.f32.mxu0 0.0
  %2780 = vmatmul.mubr.f32.gmra.mrb[0].mxu0 %v2713
  %v2781 = vpop.f32.mrb[0].mxu0
  %v2782 = vadd.f32 0.0, %v2781
  %v2783 = vpop.f32.mrb[0].mxu0
  %2784 = vdwg.mxu0
  %v2785 = vadd.f32 %v2382, %v2782
  %v2786 = vxor.u32 %v2785, 2147483648
  %v2787 = vmul.f32 %v2786, 1.442695
  %v2788 = vpow.pop %v2787
  %v2789 = vadd.f32 %v2788, 1.0
  %v2790 = vrcp.pop %v2789
  %v2791 = vmul.f32 1.0, %v2790
  %v2792 = vtanh.pop %v2785
  %v2793 = vmul.f32 %v2791, %v2701
  %2795 = vrot.lane.b32.xlu0 %v2792, 64
  %v2796 = vpop.permute.xlu0 %2795
  %v2798 = vmul.f32 %v2791, %v2796
  %2800 = vrot.lane.b32.xlu0 %v2798, 32
  %v2801 = vpop.permute.xlu0 %2800
  %v2803 = vadd.f32 %v2793, %v2801
  %v2804 = vtanh.pop %v2803
  %2806 = vrot.lane.b32.xlu0 %v2804, 64
  %v2807 = vpop.permute.xlu0 %2806
  %v2809 = vmul.f32 %v2791, %v2807
  %2811 = vrot.lane.b32.xlu0 %v2809, 32
  %v2812 = vpop.permute.xlu0 %2811
  %2814 = vst.msk [vmem:[#allocation2 + $0x18] sm:$0xff] %vm215, %v2812
  %v2815 = vsel %vm215, %v2812, 0
  %2817 = vmatprep.subr.mxu0 0.0
  %2818 = vmatpush1.msra.mxu0 %v2405
  %2819 = vmatprep.subr.mxu0 0.0
  %2820 = vmatpush1.msra.mxu0 %v2406
  %2821 = vmatprep.subr.mxu0 0.0
  %2822 = vmatpush1.msra.mxu0 %v2407
  %2823 = vmatprep.subr.mxu0 0.0
  %2824 = vmatpush1.msra.mxu0 %v2408
  %2825 = vmatprep.subr.mxu0 0.0
  %2826 = vmatpush1.msra.mxu0 0.0
  %2827 = vmatprep.subr.mxu0 0.0
  %2828 = vmatpush1.msra.mxu0 0.0
  %2829 = vmatprep.subr.mxu0 0.0
  %2830 = vmatpush1.msra.mxu0 0.0
  %2831 = vmatprep.subr.mxu0 0.0
  %2832 = vmatpush1.msra.mxu0 0.0
  %2833 = vmatprep.subr.mxu0 0.0
  %2834 = vmatpush1.msra.mxu0 0.0
  %2835 = vmatprep.subr.mxu0 0.0
  %2836 = vmatpush1.msra.mxu0 0.0
  %2837 = vmatprep.subr.mxu0 0.0
  %2838 = vmatpush1.msra.mxu0 0.0
  %2839 = vmatprep.subr.mxu0 0.0
  %2840 = vmatpush1.msra.mxu0 0.0
  %2841 = vmatprep.subr.mxu0 0.0
  %2842 = vmatpush1.msra.mxu0 0.0
  %2843 = vmatprep.subr.mxu0 0.0
  %2844 = vmatpush1.msra.mxu0 0.0
  %2845 = vmatprep.subr.mxu0 0.0
  %2846 = vmatpush1.msra.mxu0 0.0
  %2847 = vmatprep.subr.mxu0 0.0
  %2848 = vmatpush1.msra.mxu0 0.0
  %2849 = vmatprep.subr.mxu0 0.0
  %2850 = vmatpush1.msra.mxu0 0.0
  %2851 = vmatprep.subr.mxu0 0.0
  %2852 = vmatpush1.msra.mxu0 0.0
  %2853 = vmatprep.subr.mxu0 0.0
  %2854 = vmatpush1.msra.mxu0 0.0
  %2855 = vmatprep.subr.mxu0 0.0
  %2856 = vmatpush1.msra.mxu0 0.0
  %2857 = vmatprep.subr.mxu0 0.0
  %2858 = vmatpush1.msra.mxu0 0.0
  %2859 = vmatprep.subr.mxu0 0.0
  %2860 = vmatpush1.msra.mxu0 0.0
  %2861 = vmatprep.subr.mxu0 0.0
  %2862 = vmatpush1.msra.mxu0 0.0
  %2863 = vmatprep.subr.mxu0 0.0
  %2864 = vmatpush1.msra.mxu0 0.0
  %2865 = vmatprep.subr.mxu0 0.0
  %2866 = vmatpush1.msra.mxu0 0.0
  %2867 = vmatprep.subr.mxu0 0.0
  %2868 = vmatpush1.msra.mxu0 0.0
  %2869 = vmatprep.subr.mxu0 0.0
  %2870 = vmatpush1.msra.mxu0 0.0
  %2871 = vmatprep.subr.mxu0 0.0
  %2872 = vmatpush1.msra.mxu0 0.0
  %2873 = vmatprep.subr.mxu0 0.0
  %2874 = vmatpush1.msra.mxu0 0.0
  %2875 = vmatprep.subr.mxu0 0.0
  %2876 = vmatpush1.msra.mxu0 0.0
  %2877 = vmatprep.subr.mxu0 0.0
  %2878 = vmatpush1.msra.mxu0 0.0
  %2879 = vmatprep.subr.mxu0 0.0
  %2880 = vmatpush1.msra.mxu0 0.0
  %2881 = vmatprep.mubr.f32.mxu0 0.0
  %2882 = vmatmul.mubr.f32.gmra.mrb[0].mxu0 %v2815
  %v2883 = vpop.f32.mrb[0].mxu0
  %v2884 = vadd.f32 0.0, %v2883
  %v2885 = vpop.f32.mrb[0].mxu0
  %2886 = vdwg.mxu0
  %v2887 = vadd.f32 %v2387, %v2884
  %v2888 = vxor.u32 %v2887, 2147483648
  %v2889 = vmul.f32 %v2888, 1.442695
  %v2890 = vpow.pop %v2889
  %v2891 = vadd.f32 %v2890, 1.0
  %v2892 = vrcp.pop %v2891
  %v2893 = vmul.f32 1.0, %v2892
  %v2894 = vtanh.pop %v2887
  %v2895 = vmul.f32 %v2893, %v2803
  %2897 = vrot.lane.b32.xlu0 %v2894, 64
  %v2898 = vpop.permute.xlu0 %2897
  %v2900 = vmul.f32 %v2893, %v2898
  %2902 = vrot.lane.b32.xlu0 %v2900, 32
  %v2903 = vpop.permute.xlu0 %2902
  %v2905 = vadd.f32 %v2895, %v2903
  %v2906 = vtanh.pop %v2905
  %2908 = vrot.lane.b32.xlu0 %v2906, 64
  %v2909 = vpop.permute.xlu0 %2908
  %v2911 = vmul.f32 %v2893, %v2909
  %2913 = vrot.lane.b32.xlu0 %v2911, 32
  %v2914 = vpop.permute.xlu0 %2913
  %2916 = vst.msk [vmem:[#allocation2 + $0x20] sm:$0xff] %vm215, %v2914
  %v2917 = vsel %vm215, %v2914, 0
  %2919 = vmatprep.subr.mxu0 0.0
  %2920 = vmatpush1.msra.mxu0 %v2405
  %2921 = vmatprep.subr.mxu0 0.0
  %2922 = vmatpush1.msra.mxu0 %v2406
  %2923 = vmatprep.subr.mxu0 0.0
  %2924 = vmatpush1.msra.mxu0 %v2407
  %2925 = vmatprep.subr.mxu0 0.0
  %2926 = vmatpush1.msra.mxu0 %v2408
  %2927 = vmatprep.subr.mxu0 0.0
  %2928 = vmatpush1.msra.mxu0 0.0
  %2929 = vmatprep.subr.mxu0 0.0
  %2930 = vmatpush1.msra.mxu0 0.0
  %2931 = vmatprep.subr.mxu0 0.0
  %2932 = vmatpush1.msra.mxu0 0.0
  %2933 = vmatprep.subr.mxu0 0.0
  %2934 = vmatpush1.msra.mxu0 0.0
  %2935 = vmatprep.subr.mxu0 0.0
  %2936 = vmatpush1.msra.mxu0 0.0
  %2937 = vmatprep.subr.mxu0 0.0
  %2938 = vmatpush1.msra.mxu0 0.0
  %2939 = vmatprep.subr.mxu0 0.0
  %2940 = vmatpush1.msra.mxu0 0.0
  %2941 = vmatprep.subr.mxu0 0.0
  %2942 = vmatpush1.msra.mxu0 0.0
  %2943 = vmatprep.subr.mxu0 0.0
  %2944 = vmatpush1.msra.mxu0 0.0
  %2945 = vmatprep.subr.mxu0 0.0
  %2946 = vmatpush1.msra.mxu0 0.0
  %2947 = vmatprep.subr.mxu0 0.0
  %2948 = vmatpush1.msra.mxu0 0.0
  %2949 = vmatprep.subr.mxu0 0.0
  %2950 = vmatpush1.msra.mxu0 0.0
  %2951 = vmatprep.subr.mxu0 0.0
  %2952 = vmatpush1.msra.mxu0 0.0
  %2953 = vmatprep.subr.mxu0 0.0
  %2954 = vmatpush1.msra.mxu0 0.0
  %2955 = vmatprep.subr.mxu0 0.0
  %2956 = vmatpush1.msra.mxu0 0.0
  %2957 = vmatprep.subr.mxu0 0.0
  %2958 = vmatpush1.msra.mxu0 0.0
  %2959 = vmatprep.subr.mxu0 0.0
  %2960 = vmatpush1.msra.mxu0 0.0
  %2961 = vmatprep.subr.mxu0 0.0
  %2962 = vmatpush1.msra.mxu0 0.0
  %2963 = vmatprep.subr.mxu0 0.0
  %2964 = vmatpush1.msra.mxu0 0.0
  %2965 = vmatprep.subr.mxu0 0.0
  %2966 = vmatpush1.msra.mxu0 0.0
  %2967 = vmatprep.subr.mxu0 0.0
  %2968 = vmatpush1.msra.mxu0 0.0
  %2969 = vmatprep.subr.mxu0 0.0
  %2970 = vmatpush1.msra.mxu0 0.0
  %2971 = vmatprep.subr.mxu0 0.0
  %2972 = vmatpush1.msra.mxu0 0.0
  %2973 = vmatprep.subr.mxu0 0.0
  %2974 = vmatpush1.msra.mxu0 0.0
  %2975 = vmatprep.subr.mxu0 0.0
  %2976 = vmatpush1.msra.mxu0 0.0
  %2977 = vmatprep.subr.mxu0 0.0
  %2978 = vmatpush1.msra.mxu0 0.0
  %2979 = vmatprep.subr.mxu0 0.0
  %2980 = vmatpush1.msra.mxu0 0.0
  %2981 = vmatprep.subr.mxu0 0.0
  %2982 = vmatpush1.msra.mxu0 0.0
  %2983 = vmatprep.mubr.f32.mxu0 0.0
  %2984 = vmatmul.mubr.f32.gmra.mrb[0].mxu0 %v2917
  %v2985 = vpop.f32.mrb[0].mxu0
  %v2986 = vadd.f32 0.0, %v2985
  %v2987 = vpop.f32.mrb[0].mxu0
  %2988 = vdwg.mxu0
  %v2989 = vadd.f32 %v2392, %v2986
  %v2990 = vxor.u32 %v2989, 2147483648
  %v2991 = vmul.f32 %v2990, 1.442695
  %v2992 = vpow.pop %v2991
  %v2993 = vadd.f32 %v2992, 1.0
  %v2994 = vrcp.pop %v2993
  %v2995 = vmul.f32 1.0, %v2994
  %v2996 = vtanh.pop %v2989
  %v2997 = vmul.f32 %v2995, %v2905
  %2999 = vrot.lane.b32.xlu0 %v2996, 64
  %v3000 = vpop.permute.xlu0 %2999
  %v3002 = vmul.f32 %v2995, %v3000
  %3004 = vrot.lane.b32.xlu0 %v3002, 32
  %v3005 = vpop.permute.xlu0 %3004
  %v3007 = vadd.f32 %v2997, %v3005
  %v3008 = vtanh.pop %v3007
  %3010 = vrot.lane.b32.xlu0 %v3008, 64
  %v3011 = vpop.permute.xlu0 %3010
  %v3013 = vmul.f32 %v2995, %v3011
  %3015 = vrot.lane.b32.xlu0 %v3013, 32
  %v3016 = vpop.permute.xlu0 %3015
  %3018 = vst.msk [vmem:[#allocation2 + $0x28] sm:$0xff] %vm215, %v3016
  %v3019 = vsel %vm215, %v3016, 0
  %3021 = vmatprep.subr.mxu0 0.0
  %3022 = vmatpush1.msra.mxu0 %v2405
  %3023 = vmatprep.subr.mxu0 0.0
  %3024 = vmatpush1.msra.mxu0 %v2406
  %3025 = vmatprep.subr.mxu0 0.0
  %3026 = vmatpush1.msra.mxu0 %v2407
  %3027 = vmatprep.subr.mxu0 0.0
  %3028 = vmatpush1.msra.mxu0 %v2408
  %3029 = vmatprep.subr.mxu0 0.0
  %3030 = vmatpush1.msra.mxu0 0.0
  %3031 = vmatprep.subr.mxu0 0.0
  %3032 = vmatpush1.msra.mxu0 0.0
  %3033 = vmatprep.subr.mxu0 0.0
  %3034 = vmatpush1.msra.mxu0 0.0
  %3035 = vmatprep.subr.mxu0 0.0
  %3036 = vmatpush1.msra.mxu0 0.0
  %3037 = vmatprep.subr.mxu0 0.0
  %3038 = vmatpush1.msra.mxu0 0.0
  %3039 = vmatprep.subr.mxu0 0.0
  %3040 = vmatpush1.msra.mxu0 0.0
  %3041 = vmatprep.subr.mxu0 0.0
  %3042 = vmatpush1.msra.mxu0 0.0
  %3043 = vmatprep.subr.mxu0 0.0
  %3044 = vmatpush1.msra.mxu0 0.0
  %3045 = vmatprep.subr.mxu0 0.0
  %3046 = vmatpush1.msra.mxu0 0.0
  %3047 = vmatprep.subr.mxu0 0.0
  %3048 = vmatpush1.msra.mxu0 0.0
  %3049 = vmatprep.subr.mxu0 0.0
  %3050 = vmatpush1.msra.mxu0 0.0
  %3051 = vmatprep.subr.mxu0 0.0
  %3052 = vmatpush1.msra.mxu0 0.0
  %3053 = vmatprep.subr.mxu0 0.0
  %3054 = vmatpush1.msra.mxu0 0.0
  %3055 = vmatprep.subr.mxu0 0.0
  %3056 = vmatpush1.msra.mxu0 0.0
  %3057 = vmatprep.subr.mxu0 0.0
  %3058 = vmatpush1.msra.mxu0 0.0
  %3059 = vmatprep.subr.mxu0 0.0
  %3060 = vmatpush1.msra.mxu0 0.0
  %3061 = vmatprep.subr.mxu0 0.0
  %3062 = vmatpush1.msra.mxu0 0.0
  %3063 = vmatprep.subr.mxu0 0.0
  %3064 = vmatpush1.msra.mxu0 0.0
  %3065 = vmatprep.subr.mxu0 0.0
  %3066 = vmatpush1.msra.mxu0 0.0
  %3067 = vmatprep.subr.mxu0 0.0
  %3068 = vmatpush1.msra.mxu0 0.0
  %3069 = vmatprep.subr.mxu0 0.0
  %3070 = vmatpush1.msra.mxu0 0.0
  %3071 = vmatprep.subr.mxu0 0.0
  %3072 = vmatpush1.msra.mxu0 0.0
  %3073 = vmatprep.subr.mxu0 0.0
  %3074 = vmatpush1.msra.mxu0 0.0
  %3075 = vmatprep.subr.mxu0 0.0
  %3076 = vmatpush1.msra.mxu0 0.0
  %3077 = vmatprep.subr.mxu0 0.0
  %3078 = vmatpush1.msra.mxu0 0.0
  %3079 = vmatprep.subr.mxu0 0.0
  %3080 = vmatpush1.msra.mxu0 0.0
  %3081 = vmatprep.subr.mxu0 0.0
  %3082 = vmatpush1.msra.mxu0 0.0
  %3083 = vmatprep.subr.mxu0 0.0
  %3084 = vmatpush1.msra.mxu0 0.0
  %3085 = vmatprep.mubr.f32.mxu0 0.0
  %3086 = vmatmul.mubr.f32.gmra.mrb[0].mxu0 %v3019
  %v3087 = vpop.f32.mrb[0].mxu0
  %v3088 = vadd.f32 0.0, %v3087
  %v3089 = vpop.f32.mrb[0].mxu0
  %3090 = vdwg.mxu0
  %v3091 = vadd.f32 %v2397, %v3088
  %v3092 = vxor.u32 %v3091, 2147483648
  %v3093 = vmul.f32 %v3092, 1.442695
  %v3094 = vpow.pop %v3093
  %v3095 = vadd.f32 %v3094, 1.0
  %v3096 = vrcp.pop %v3095
  %v3097 = vmul.f32 1.0, %v3096
  %v3098 = vtanh.pop %v3091
  %v3099 = vmul.f32 %v3097, %v3007
  %3101 = vrot.lane.b32.xlu0 %v3098, 64
  %v3102 = vpop.permute.xlu0 %3101
  %v3104 = vmul.f32 %v3097, %v3102
  %3106 = vrot.lane.b32.xlu0 %v3104, 32
  %v3107 = vpop.permute.xlu0 %3106
  %v3109 = vadd.f32 %v3099, %v3107
  %v3110 = vtanh.pop %v3109
  %3112 = vrot.lane.b32.xlu0 %v3110, 64
  %v3113 = vpop.permute.xlu0 %3112
  %v3115 = vmul.f32 %v3097, %v3113
  %3117 = vrot.lane.b32.xlu0 %v3115, 32
  %v3118 = vpop.permute.xlu0 %3117
  %3120 = vst.msk [vmem:[#allocation2 + $0x30] sm:$0xff] %vm215, %v3118
  %v3121 = vsel %vm215, %v3118, 0
  %3123 = vmatprep.subr.mxu0 0.0
  %3124 = vmatpush1.msra.mxu0 %v2405
  %3125 = vmatprep.subr.mxu0 0.0
  %3126 = vmatpush1.msra.mxu0 %v2406
  %3127 = vmatprep.subr.mxu0 0.0
  %3128 = vmatpush1.msra.mxu0 %v2407
  %3129 = vmatprep.subr.mxu0 0.0
  %3130 = vmatpush1.msra.mxu0 %v2408
  %3131 = vmatprep.subr.mxu0 0.0
  %3132 = vmatpush1.msra.mxu0 0.0
  %3133 = vmatprep.subr.mxu0 0.0
  %3134 = vmatpush1.msra.mxu0 0.0
  %3135 = vmatprep.subr.mxu0 0.0
  %3136 = vmatpush1.msra.mxu0 0.0
  %3137 = vmatprep.subr.mxu0 0.0
  %3138 = vmatpush1.msra.mxu0 0.0
  %3139 = vmatprep.subr.mxu0 0.0
  %3140 = vmatpush1.msra.mxu0 0.0
  %3141 = vmatprep.subr.mxu0 0.0
  %3142 = vmatpush1.msra.mxu0 0.0
  %3143 = vmatprep.subr.mxu0 0.0
  %3144 = vmatpush1.msra.mxu0 0.0
  %3145 = vmatprep.subr.mxu0 0.0
  %3146 = vmatpush1.msra.mxu0 0.0
  %3147 = vmatprep.subr.mxu0 0.0
  %3148 = vmatpush1.msra.mxu0 0.0
  %3149 = vmatprep.subr.mxu0 0.0
  %3150 = vmatpush1.msra.mxu0 0.0
  %3151 = vmatprep.subr.mxu0 0.0
  %3152 = vmatpush1.msra.mxu0 0.0
  %3153 = vmatprep.subr.mxu0 0.0
  %3154 = vmatpush1.msra.mxu0 0.0
  %3155 = vmatprep.subr.mxu0 0.0
  %3156 = vmatpush1.msra.mxu0 0.0
  %3157 = vmatprep.subr.mxu0 0.0
  %3158 = vmatpush1.msra.mxu0 0.0
  %3159 = vmatprep.subr.mxu0 0.0
  %3160 = vmatpush1.msra.mxu0 0.0
  %3161 = vmatprep.subr.mxu0 0.0
  %3162 = vmatpush1.msra.mxu0 0.0
  %3163 = vmatprep.subr.mxu0 0.0
  %3164 = vmatpush1.msra.mxu0 0.0
  %3165 = vmatprep.subr.mxu0 0.0
  %3166 = vmatpush1.msra.mxu0 0.0
  %3167 = vmatprep.subr.mxu0 0.0
  %3168 = vmatpush1.msra.mxu0 0.0
  %3169 = vmatprep.subr.mxu0 0.0
  %3170 = vmatpush1.msra.mxu0 0.0
  %3171 = vmatprep.subr.mxu0 0.0
  %3172 = vmatpush1.msra.mxu0 0.0
  %3173 = vmatprep.subr.mxu0 0.0
  %3174 = vmatpush1.msra.mxu0 0.0
  %3175 = vmatprep.subr.mxu0 0.0
  %3176 = vmatpush1.msra.mxu0 0.0
  %3177 = vmatprep.subr.mxu0 0.0
  %3178 = vmatpush1.msra.mxu0 0.0
  %3179 = vmatprep.subr.mxu0 0.0
  %3180 = vmatpush1.msra.mxu0 0.0
  %3181 = vmatprep.subr.mxu0 0.0
  %3182 = vmatpush1.msra.mxu0 0.0
  %3183 = vmatprep.subr.mxu0 0.0
  %3184 = vmatpush1.msra.mxu0 0.0
  %3185 = vmatprep.subr.mxu0 0.0
  %3186 = vmatpush1.msra.mxu0 0.0
  %3187 = vmatprep.mubr.f32.mxu0 0.0
  %3188 = vmatmul.mubr.f32.gmra.mrb[0].mxu0 %v3121
  %v3189 = vpop.f32.mrb[0].mxu0
  %v3190 = vadd.f32 0.0, %v3189
  %v3191 = vpop.f32.mrb[0].mxu0
  %3192 = vdwg.mxu0
  %v3193 = vadd.f32 %v2402, %v3190
  %v3194 = vxor.u32 %v3193, 2147483648
  %v3195 = vmul.f32 %v3194, 1.442695
  %v3196 = vpow.pop %v3195
  %v3197 = vadd.f32 %v3196, 1.0
  %v3198 = vrcp.pop %v3197
  %v3199 = vmul.f32 1.0, %v3198
  %v3200 = vtanh.pop %v3193
  %v3201 = vmul.f32 %v3199, %v3109
  %3203 = vrot.lane.b32.xlu0 %v3200, 64
  %v3204 = vpop.permute.xlu0 %3203
  %v3206 = vmul.f32 %v3199, %v3204
  %3208 = vrot.lane.b32.xlu0 %v3206, 32
  %v3209 = vpop.permute.xlu0 %3208
  %v3211 = vadd.f32 %v3201, %v3209
  %v3212 = vtanh.pop %v3211
  %3214 = vrot.lane.b32.xlu0 %v3212, 64
  %v3215 = vpop.permute.xlu0 %3214
  %v3217 = vmul.f32 %v3199, %v3215
  %3219 = vrot.lane.b32.xlu0 %v3217, 32
  %v3220 = vpop.permute.xlu0 %3219
  %3222 = vst.msk [vmem:[#allocation2 + $0x38] sm:$0xff] %vm215, %v3220
  %v3223 = vld [vmem:[#allocation2] sm:$0xff]
  %v3224 = vld [vmem:[#allocation2 + $0x8] sm:$0xff]
  %v3225 = vld [vmem:[#allocation2 + $0x10] sm:$0xff]
  %v3226 = vld [vmem:[#allocation2 + $0x18] sm:$0xff]
  %v3227 = vld [vmem:[#allocation2 + $0x20] sm:$0xff]
  %v3228 = vld [vmem:[#allocation2 + $0x28] sm:$0xff]
  %v3229 = vld [vmem:[#allocation2 + $0x30] sm:$0xff]
  %v3230 = vld [vmem:[#allocation2 + $0x38] sm:$0xff]
  %v3231 = vld [vmem:[%s13] sm:$0xff]
  %v3232 = vld [vmem:[%s13 + $0x8] sm:$0xff]
  %v3233 = vld [vmem:[%s13 + $0x10] sm:$0xff]
  %v3234 = vld [vmem:[%s13 + $0x18] sm:$0xff]
  %v3235 = vld [vmem:[%s15] sm:$0x1]
  %v3237 = vlaneseq
  %v3238 = vshrl.u32 %v3237, 7
  %v3239 = vsub.s32 0, %v3238
  %v3240 = vrot.slane %v3235, %v3239
  %v3243 = vsel %vm215, %v3223, 0
  %v3246 = vsel %vm215, %v3224, 0
  %v3249 = vsel %vm215, %v3225, 0
  %v3252 = vsel %vm215, %v3226, 0
  %v3255 = vsel %vm215, %v3227, 0
  %v3258 = vsel %vm215, %v3228, 0
  %v3261 = vsel %vm215, %v3229, 0
  %v3264 = vsel %vm215, %v3230, 0
  %3266 = vmatprep.subr.mxu0 0.0
  %3267 = vmatpush1.msra.mxu0 %v3231
  %3268 = vmatprep.subr.mxu0 0.0
  %3269 = vmatpush1.msra.mxu0 %v3232
  %3270 = vmatprep.subr.mxu0 0.0
  %3271 = vmatpush1.msra.mxu0 %v3233
  %3272 = vmatprep.subr.mxu0 0.0
  %3273 = vmatpush1.msra.mxu0 %v3234
  %3274 = vmatprep.subr.mxu0 0.0
  %3275 = vmatpush1.msra.mxu0 0.0
  %3276 = vmatprep.subr.mxu0 0.0
  %3277 = vmatpush1.msra.mxu0 0.0
  %3278 = vmatprep.subr.mxu0 0.0
  %3279 = vmatpush1.msra.mxu0 0.0
  %3280 = vmatprep.subr.mxu0 0.0
  %3281 = vmatpush1.msra.mxu0 0.0
  %3282 = vmatprep.subr.mxu0 0.0
  %3283 = vmatpush1.msra.mxu0 0.0
  %3284 = vmatprep.subr.mxu0 0.0
  %3285 = vmatpush1.msra.mxu0 0.0
  %3286 = vmatprep.subr.mxu0 0.0
  %3287 = vmatpush1.msra.mxu0 0.0
  %3288 = vmatprep.subr.mxu0 0.0
  %3289 = vmatpush1.msra.mxu0 0.0
  %3290 = vmatprep.subr.mxu0 0.0
  %3291 = vmatpush1.msra.mxu0 0.0
  %3292 = vmatprep.subr.mxu0 0.0
  %3293 = vmatpush1.msra.mxu0 0.0
  %3294 = vmatprep.subr.mxu0 0.0
  %3295 = vmatpush1.msra.mxu0 0.0
  %3296 = vmatprep.subr.mxu0 0.0
  %3297 = vmatpush1.msra.mxu0 0.0
  %3298 = vmatprep.subr.mxu0 0.0
  %3299 = vmatpush1.msra.mxu0 0.0
  %3300 = vmatprep.subr.mxu0 0.0
  %3301 = vmatpush1.msra.mxu0 0.0
  %3302 = vmatprep.subr.mxu0 0.0
  %3303 = vmatpush1.msra.mxu0 0.0
  %3304 = vmatprep.subr.mxu0 0.0
  %3305 = vmatpush1.msra.mxu0 0.0
  %3306 = vmatprep.subr.mxu0 0.0
  %3307 = vmatpush1.msra.mxu0 0.0
  %3308 = vmatprep.subr.mxu0 0.0
  %3309 = vmatpush1.msra.mxu0 0.0
  %3310 = vmatprep.subr.mxu0 0.0
  %3311 = vmatpush1.msra.mxu0 0.0
  %3312 = vmatprep.subr.mxu0 0.0
  %3313 = vmatpush1.msra.mxu0 0.0
  %3314 = vmatprep.subr.mxu0 0.0
  %3315 = vmatpush1.msra.mxu0 0.0
  %3316 = vmatprep.subr.mxu0 0.0
  %3317 = vmatpush1.msra.mxu0 0.0
  %3318 = vmatprep.subr.mxu0 0.0
  %3319 = vmatpush1.msra.mxu0 0.0
  %3320 = vmatprep.subr.mxu0 0.0
  %3321 = vmatpush1.msra.mxu0 0.0
  %3322 = vmatprep.subr.mxu0 0.0
  %3323 = vmatpush1.msra.mxu0 0.0
  %3324 = vmatprep.subr.mxu0 0.0
  %3325 = vmatpush1.msra.mxu0 0.0
  %3326 = vmatprep.subr.mxu0 0.0
  %3327 = vmatpush1.msra.mxu0 0.0
  %3328 = vmatprep.subr.mxu0 0.0
  %3329 = vmatpush1.msra.mxu0 0.0
  %3330 = vmatprep.mubr.f32.mxu0 0.0
  %3331 = vmatmul.mubr.f32.gmra.mrb[0].mxu0 %v3243
  %v3332 = vpop.f32.mrb[0].mxu0
  %v3333 = vadd.f32 %v3240, %v3332
  %v3334 = vpop.f32.mrb[0].mxu0
  %3335 = vmatprep.mubr.f32.mxu0 0.0
  %3336 = vmatmul.mubr.f32.gmra.mrb[0].mxu0 %v3246
  %v3337 = vpop.f32.mrb[0].mxu0
  %v3338 = vadd.f32 %v3240, %v3337
  %v3339 = vpop.f32.mrb[0].mxu0
  %3340 = vmatprep.mubr.f32.mxu0 0.0
  %3341 = vmatmul.mubr.f32.gmra.mrb[0].mxu0 %v3249
  %v3342 = vpop.f32.mrb[0].mxu0
  %v3343 = vadd.f32 %v3240, %v3342
  %v3344 = vpop.f32.mrb[0].mxu0
  %3345 = vmatprep.mubr.f32.mxu0 0.0
  %3346 = vmatmul.mubr.f32.gmra.mrb[0].mxu0 %v3252
  %v3347 = vpop.f32.mrb[0].mxu0
  %v3348 = vadd.f32 %v3240, %v3347
  %v3349 = vpop.f32.mrb[0].mxu0
  %3350 = vmatprep.mubr.f32.mxu0 0.0
  %3351 = vmatmul.mubr.f32.gmra.mrb[0].mxu0 %v3255
  %v3352 = vpop.f32.mrb[0].mxu0
  %v3353 = vadd.f32 %v3240, %v3352
  %v3354 = vpop.f32.mrb[0].mxu0
  %3355 = vmatprep.mubr.f32.mxu0 0.0
  %3356 = vmatmul.mubr.f32.gmra.mrb[0].mxu0 %v3258
  %v3357 = vpop.f32.mrb[0].mxu0
  %v3358 = vadd.f32 %v3240, %v3357
  %v3359 = vpop.f32.mrb[0].mxu0
  %3360 = vmatprep.mubr.f32.mxu0 0.0
  %3361 = vmatmul.mubr.f32.gmra.mrb[0].mxu0 %v3261
  %v3362 = vpop.f32.mrb[0].mxu0
  %v3363 = vadd.f32 %v3240, %v3362
  %v3364 = vpop.f32.mrb[0].mxu0
  %3365 = vmatprep.mubr.f32.mxu0 0.0
  %3366 = vmatmul.mubr.f32.gmra.mrb[0].mxu0 %v3264
  %v3367 = vpop.f32.mrb[0].mxu0
  %v3368 = vadd.f32 %v3240, %v3367
  %v3369 = vpop.f32.mrb[0].mxu0
  %3370 = vdwg.mxu0
  %v3371 = vld [vmem:[%s14] sm:$0xff]
  %v3372 = vld [vmem:[%s14 + $0x8] sm:$0xff]
  %v3373 = vld [vmem:[%s14 + $0x10] sm:$0xff]
  %v3374 = vld [vmem:[%s14 + $0x18] sm:$0xff]
  %3375 = vmatprep.subr.mxu0 0.0
  %3376 = vmatpush1.msra.mxu0 %v3371
  %3377 = vmatprep.subr.mxu0 0.0
  %3378 = vmatpush1.msra.mxu0 %v3372
  %3379 = vmatprep.subr.mxu0 0.0
  %3380 = vmatpush1.msra.mxu0 %v3373
  %3381 = vmatprep.subr.mxu0 0.0
  %3382 = vmatpush1.msra.mxu0 %v3374
  %3383 = vmatprep.subr.mxu0 0.0
  %3384 = vmatpush1.msra.mxu0 0.0
  %3385 = vmatprep.subr.mxu0 0.0
  %3386 = vmatpush1.msra.mxu0 0.0
  %3387 = vmatprep.subr.mxu0 0.0
  %3388 = vmatpush1.msra.mxu0 0.0
  %3389 = vmatprep.subr.mxu0 0.0
  %3390 = vmatpush1.msra.mxu0 0.0
  %3391 = vmatprep.subr.mxu0 0.0
  %3392 = vmatpush1.msra.mxu0 0.0
  %3393 = vmatprep.subr.mxu0 0.0
  %3394 = vmatpush1.msra.mxu0 0.0
  %3395 = vmatprep.subr.mxu0 0.0
  %3396 = vmatpush1.msra.mxu0 0.0
  %3397 = vmatprep.subr.mxu0 0.0
  %3398 = vmatpush1.msra.mxu0 0.0
  %3399 = vmatprep.subr.mxu0 0.0
  %3400 = vmatpush1.msra.mxu0 0.0
  %3401 = vmatprep.subr.mxu0 0.0
  %3402 = vmatpush1.msra.mxu0 0.0
  %3403 = vmatprep.subr.mxu0 0.0
  %3404 = vmatpush1.msra.mxu0 0.0
  %3405 = vmatprep.subr.mxu0 0.0
  %3406 = vmatpush1.msra.mxu0 0.0
  %3407 = vmatprep.subr.mxu0 0.0
  %3408 = vmatpush1.msra.mxu0 0.0
  %3409 = vmatprep.subr.mxu0 0.0
  %3410 = vmatpush1.msra.mxu0 0.0
  %3411 = vmatprep.subr.mxu0 0.0
  %3412 = vmatpush1.msra.mxu0 0.0
  %3413 = vmatprep.subr.mxu0 0.0
  %3414 = vmatpush1.msra.mxu0 0.0
  %3415 = vmatprep.subr.mxu0 0.0
  %3416 = vmatpush1.msra.mxu0 0.0
  %3417 = vmatprep.subr.mxu0 0.0
  %3418 = vmatpush1.msra.mxu0 0.0
  %3419 = vmatprep.subr.mxu0 0.0
  %3420 = vmatpush1.msra.mxu0 0.0
  %3421 = vmatprep.subr.mxu0 0.0
  %3422 = vmatpush1.msra.mxu0 0.0
  %3423 = vmatprep.subr.mxu0 0.0
  %3424 = vmatpush1.msra.mxu0 0.0
  %3425 = vmatprep.subr.mxu0 0.0
  %3426 = vmatpush1.msra.mxu0 0.0
  %3427 = vmatprep.subr.mxu0 0.0
  %3428 = vmatpush1.msra.mxu0 0.0
  %3429 = vmatprep.subr.mxu0 0.0
  %3430 = vmatpush1.msra.mxu0 0.0
  %3431 = vmatprep.subr.mxu0 0.0
  %3432 = vmatpush1.msra.mxu0 0.0
  %3433 = vmatprep.subr.mxu0 0.0
  %3434 = vmatpush1.msra.mxu0 0.0
  %3435 = vmatprep.subr.mxu0 0.0
  %3436 = vmatpush1.msra.mxu0 0.0
  %3437 = vmatprep.subr.mxu0 0.0
  %3438 = vmatpush1.msra.mxu0 0.0
  %3439 = vmatprep.mubr.f32.mxu0 0.0
  %3440 = vmatmul.mubr.f32.gmra.mrb[0].mxu0 %v217
  %v3441 = vpop.f32.mrb[0].mxu0
  %v3442 = vadd.f32 0.0, %v3441
  %v3443 = vpop.f32.mrb[0].mxu0
  %3444 = vdwg.mxu0
  %v3445 = vadd.f32 %v3333, %v3442
  %v3446 = vxor.u32 %v3445, 2147483648
  %v3447 = vmul.f32 %v3446, 1.442695
  %v3448 = vpow.pop %v3447
  %v3449 = vadd.f32 %v3448, 1.0
  %v3450 = vrcp.pop %v3449
  %v3451 = vmul.f32 1.0, %v3450
  %v3452 = vtanh.pop %v3445
  %v3453 = vmul.f32 %v3451, 0.0
  %3455 = vrot.lane.b32.xlu0 %v3452, 64
  %v3456 = vpop.permute.xlu0 %3455
  %v3458 = vmul.f32 %v3451, %v3456
  %3460 = vrot.lane.b32.xlu0 %v3458, 32
  %v3461 = vpop.permute.xlu0 %3460
  %v3463 = vadd.f32 %v3453, %v3461
  %v3464 = vtanh.pop %v3463
  %3466 = vrot.lane.b32.xlu0 %v3464, 64
  %v3467 = vpop.permute.xlu0 %3466
  %v3469 = vmul.f32 %v3451, %v3467
  %3471 = vrot.lane.b32.xlu0 %v3469, 32
  %v3472 = vpop.permute.xlu0 %3471
  %3474 = vst.msk [vmem:[#allocation2] sm:$0xff] %vm215, %v3472
  %v3475 = vsel %vm215, %v3472, 0
  %3477 = vmatprep.subr.mxu0 0.0
  %3478 = vmatpush1.msra.mxu0 %v3371
  %3479 = vmatprep.subr.mxu0 0.0
  %3480 = vmatpush1.msra.mxu0 %v3372
  %3481 = vmatprep.subr.mxu0 0.0
  %3482 = vmatpush1.msra.mxu0 %v3373
  %3483 = vmatprep.subr.mxu0 0.0
  %3484 = vmatpush1.msra.mxu0 %v3374
  %3485 = vmatprep.subr.mxu0 0.0
  %3486 = vmatpush1.msra.mxu0 0.0
  %3487 = vmatprep.subr.mxu0 0.0
  %3488 = vmatpush1.msra.mxu0 0.0
  %3489 = vmatprep.subr.mxu0 0.0
  %3490 = vmatpush1.msra.mxu0 0.0
  %3491 = vmatprep.subr.mxu0 0.0
  %3492 = vmatpush1.msra.mxu0 0.0
  %3493 = vmatprep.subr.mxu0 0.0
  %3494 = vmatpush1.msra.mxu0 0.0
  %3495 = vmatprep.subr.mxu0 0.0
  %3496 = vmatpush1.msra.mxu0 0.0
  %3497 = vmatprep.subr.mxu0 0.0
  %3498 = vmatpush1.msra.mxu0 0.0
  %3499 = vmatprep.subr.mxu0 0.0
  %3500 = vmatpush1.msra.mxu0 0.0
  %3501 = vmatprep.subr.mxu0 0.0
  %3502 = vmatpush1.msra.mxu0 0.0
  %3503 = vmatprep.subr.mxu0 0.0
  %3504 = vmatpush1.msra.mxu0 0.0
  %3505 = vmatprep.subr.mxu0 0.0
  %3506 = vmatpush1.msra.mxu0 0.0
  %3507 = vmatprep.subr.mxu0 0.0
  %3508 = vmatpush1.msra.mxu0 0.0
  %3509 = vmatprep.subr.mxu0 0.0
  %3510 = vmatpush1.msra.mxu0 0.0
  %3511 = vmatprep.subr.mxu0 0.0
  %3512 = vmatpush1.msra.mxu0 0.0
  %3513 = vmatprep.subr.mxu0 0.0
  %3514 = vmatpush1.msra.mxu0 0.0
  %3515 = vmatprep.subr.mxu0 0.0
  %3516 = vmatpush1.msra.mxu0 0.0
  %3517 = vmatprep.subr.mxu0 0.0
  %3518 = vmatpush1.msra.mxu0 0.0
  %3519 = vmatprep.subr.mxu0 0.0
  %3520 = vmatpush1.msra.mxu0 0.0
  %3521 = vmatprep.subr.mxu0 0.0
  %3522 = vmatpush1.msra.mxu0 0.0
  %3523 = vmatprep.subr.mxu0 0.0
  %3524 = vmatpush1.msra.mxu0 0.0
  %3525 = vmatprep.subr.mxu0 0.0
  %3526 = vmatpush1.msra.mxu0 0.0
  %3527 = vmatprep.subr.mxu0 0.0
  %3528 = vmatpush1.msra.mxu0 0.0
  %3529 = vmatprep.subr.mxu0 0.0
  %3530 = vmatpush1.msra.mxu0 0.0
  %3531 = vmatprep.subr.mxu0 0.0
  %3532 = vmatpush1.msra.mxu0 0.0
  %3533 = vmatprep.subr.mxu0 0.0
  %3534 = vmatpush1.msra.mxu0 0.0
  %3535 = vmatprep.subr.mxu0 0.0
  %3536 = vmatpush1.msra.mxu0 0.0
  %3537 = vmatprep.subr.mxu0 0.0
  %3538 = vmatpush1.msra.mxu0 0.0
  %3539 = vmatprep.subr.mxu0 0.0
  %3540 = vmatpush1.msra.mxu0 0.0
  %3541 = vmatprep.mubr.f32.mxu0 0.0
  %3542 = vmatmul.mubr.f32.gmra.mrb[0].mxu0 %v3475
  %v3543 = vpop.f32.mrb[0].mxu0
  %v3544 = vadd.f32 0.0, %v3543
  %v3545 = vpop.f32.mrb[0].mxu0
  %3546 = vdwg.mxu0
  %v3547 = vadd.f32 %v3338, %v3544
  %v3548 = vxor.u32 %v3547, 2147483648
  %v3549 = vmul.f32 %v3548, 1.442695
  %v3550 = vpow.pop %v3549
  %v3551 = vadd.f32 %v3550, 1.0
  %v3552 = vrcp.pop %v3551
  %v3553 = vmul.f32 1.0, %v3552
  %v3554 = vtanh.pop %v3547
  %v3555 = vmul.f32 %v3553, %v3463
  %3557 = vrot.lane.b32.xlu0 %v3554, 64
  %v3558 = vpop.permute.xlu0 %3557
  %v3560 = vmul.f32 %v3553, %v3558
  %3562 = vrot.lane.b32.xlu0 %v3560, 32
  %v3563 = vpop.permute.xlu0 %3562
  %v3565 = vadd.f32 %v3555, %v3563
  %v3566 = vtanh.pop %v3565
  %3568 = vrot.lane.b32.xlu0 %v3566, 64
  %v3569 = vpop.permute.xlu0 %3568
  %v3571 = vmul.f32 %v3553, %v3569
  %3573 = vrot.lane.b32.xlu0 %v3571, 32
  %v3574 = vpop.permute.xlu0 %3573
  %3576 = vst.msk [vmem:[#allocation2 + $0x8] sm:$0xff] %vm215, %v3574
  %v3577 = vsel %vm215, %v3574, 0
  %3579 = vmatprep.subr.mxu0 0.0
  %3580 = vmatpush1.msra.mxu0 %v3371
  %3581 = vmatprep.subr.mxu0 0.0
  %3582 = vmatpush1.msra.mxu0 %v3372
  %3583 = vmatprep.subr.mxu0 0.0
  %3584 = vmatpush1.msra.mxu0 %v3373
  %3585 = vmatprep.subr.mxu0 0.0
  %3586 = vmatpush1.msra.mxu0 %v3374
  %3587 = vmatprep.subr.mxu0 0.0
  %3588 = vmatpush1.msra.mxu0 0.0
  %3589 = vmatprep.subr.mxu0 0.0
  %3590 = vmatpush1.msra.mxu0 0.0
  %3591 = vmatprep.subr.mxu0 0.0
  %3592 = vmatpush1.msra.mxu0 0.0
  %3593 = vmatprep.subr.mxu0 0.0
  %3594 = vmatpush1.msra.mxu0 0.0
  %3595 = vmatprep.subr.mxu0 0.0
  %3596 = vmatpush1.msra.mxu0 0.0
  %3597 = vmatprep.subr.mxu0 0.0
  %3598 = vmatpush1.msra.mxu0 0.0
  %3599 = vmatprep.subr.mxu0 0.0
  %3600 = vmatpush1.msra.mxu0 0.0
  %3601 = vmatprep.subr.mxu0 0.0
  %3602 = vmatpush1.msra.mxu0 0.0
  %3603 = vmatprep.subr.mxu0 0.0
  %3604 = vmatpush1.msra.mxu0 0.0
  %3605 = vmatprep.subr.mxu0 0.0
  %3606 = vmatpush1.msra.mxu0 0.0
  %3607 = vmatprep.subr.mxu0 0.0
  %3608 = vmatpush1.msra.mxu0 0.0
  %3609 = vmatprep.subr.mxu0 0.0
  %3610 = vmatpush1.msra.mxu0 0.0
  %3611 = vmatprep.subr.mxu0 0.0
  %3612 = vmatpush1.msra.mxu0 0.0
  %3613 = vmatprep.subr.mxu0 0.0
  %3614 = vmatpush1.msra.mxu0 0.0
  %3615 = vmatprep.subr.mxu0 0.0
  %3616 = vmatpush1.msra.mxu0 0.0
  %3617 = vmatprep.subr.mxu0 0.0
  %3618 = vmatpush1.msra.mxu0 0.0
  %3619 = vmatprep.subr.mxu0 0.0
  %3620 = vmatpush1.msra.mxu0 0.0
  %3621 = vmatprep.subr.mxu0 0.0
  %3622 = vmatpush1.msra.mxu0 0.0
  %3623 = vmatprep.subr.mxu0 0.0
  %3624 = vmatpush1.msra.mxu0 0.0
  %3625 = vmatprep.subr.mxu0 0.0
  %3626 = vmatpush1.msra.mxu0 0.0
  %3627 = vmatprep.subr.mxu0 0.0
  %3628 = vmatpush1.msra.mxu0 0.0
  %3629 = vmatprep.subr.mxu0 0.0
  %3630 = vmatpush1.msra.mxu0 0.0
  %3631 = vmatprep.subr.mxu0 0.0
  %3632 = vmatpush1.msra.mxu0 0.0
  %3633 = vmatprep.subr.mxu0 0.0
  %3634 = vmatpush1.msra.mxu0 0.0
  %3635 = vmatprep.subr.mxu0 0.0
  %3636 = vmatpush1.msra.mxu0 0.0
  %3637 = vmatprep.subr.mxu0 0.0
  %3638 = vmatpush1.msra.mxu0 0.0
  %3639 = vmatprep.subr.mxu0 0.0
  %3640 = vmatpush1.msra.mxu0 0.0
  %3641 = vmatprep.subr.mxu0 0.0
  %3642 = vmatpush1.msra.mxu0 0.0
  %3643 = vmatprep.mubr.f32.mxu0 0.0
  %3644 = vmatmul.mubr.f32.gmra.mrb[0].mxu0 %v3577
  %v3645 = vpop.f32.mrb[0].mxu0
  %v3646 = vadd.f32 0.0, %v3645
  %v3647 = vpop.f32.mrb[0].mxu0
  %3648 = vdwg.mxu0
  %v3649 = vadd.f32 %v3343, %v3646
  %v3650 = vxor.u32 %v3649, 2147483648
  %v3651 = vmul.f32 %v3650, 1.442695
  %v3652 = vpow.pop %v3651
  %v3653 = vadd.f32 %v3652, 1.0
  %v3654 = vrcp.pop %v3653
  %v3655 = vmul.f32 1.0, %v3654
  %v3656 = vtanh.pop %v3649
  %v3657 = vmul.f32 %v3655, %v3565
  %3659 = vrot.lane.b32.xlu0 %v3656, 64
  %v3660 = vpop.permute.xlu0 %3659
  %v3662 = vmul.f32 %v3655, %v3660
  %3664 = vrot.lane.b32.xlu0 %v3662, 32
  %v3665 = vpop.permute.xlu0 %3664
  %v3667 = vadd.f32 %v3657, %v3665
  %v3668 = vtanh.pop %v3667
  %3670 = vrot.lane.b32.xlu0 %v3668, 64
  %v3671 = vpop.permute.xlu0 %3670
  %v3673 = vmul.f32 %v3655, %v3671
  %3675 = vrot.lane.b32.xlu0 %v3673, 32
  %v3676 = vpop.permute.xlu0 %3675
  %3678 = vst.msk [vmem:[#allocation2 + $0x10] sm:$0xff] %vm215, %v3676
  %v3679 = vsel %vm215, %v3676, 0
  %3681 = vmatprep.subr.mxu0 0.0
  %3682 = vmatpush1.msra.mxu0 %v3371
  %3683 = vmatprep.subr.mxu0 0.0
  %3684 = vmatpush1.msra.mxu0 %v3372
  %3685 = vmatprep.subr.mxu0 0.0
  %3686 = vmatpush1.msra.mxu0 %v3373
  %3687 = vmatprep.subr.mxu0 0.0
  %3688 = vmatpush1.msra.mxu0 %v3374
  %3689 = vmatprep.subr.mxu0 0.0
  %3690 = vmatpush1.msra.mxu0 0.0
  %3691 = vmatprep.subr.mxu0 0.0
  %3692 = vmatpush1.msra.mxu0 0.0
  %3693 = vmatprep.subr.mxu0 0.0
  %3694 = vmatpush1.msra.mxu0 0.0
  %3695 = vmatprep.subr.mxu0 0.0
  %3696 = vmatpush1.msra.mxu0 0.0
  %3697 = vmatprep.subr.mxu0 0.0
  %3698 = vmatpush1.msra.mxu0 0.0
  %3699 = vmatprep.subr.mxu0 0.0
  %3700 = vmatpush1.msra.mxu0 0.0
  %3701 = vmatprep.subr.mxu0 0.0
  %3702 = vmatpush1.msra.mxu0 0.0
  %3703 = vmatprep.subr.mxu0 0.0
  %3704 = vmatpush1.msra.mxu0 0.0
  %3705 = vmatprep.subr.mxu0 0.0
  %3706 = vmatpush1.msra.mxu0 0.0
  %3707 = vmatprep.subr.mxu0 0.0
  %3708 = vmatpush1.msra.mxu0 0.0
  %3709 = vmatprep.subr.mxu0 0.0
  %3710 = vmatpush1.msra.mxu0 0.0
  %3711 = vmatprep.subr.mxu0 0.0
  %3712 = vmatpush1.msra.mxu0 0.0
  %3713 = vmatprep.subr.mxu0 0.0
  %3714 = vmatpush1.msra.mxu0 0.0
  %3715 = vmatprep.subr.mxu0 0.0
  %3716 = vmatpush1.msra.mxu0 0.0
  %3717 = vmatprep.subr.mxu0 0.0
  %3718 = vmatpush1.msra.mxu0 0.0
  %3719 = vmatprep.subr.mxu0 0.0
  %3720 = vmatpush1.msra.mxu0 0.0
  %3721 = vmatprep.subr.mxu0 0.0
  %3722 = vmatpush1.msra.mxu0 0.0
  %3723 = vmatprep.subr.mxu0 0.0
  %3724 = vmatpush1.msra.mxu0 0.0
  %3725 = vmatprep.subr.mxu0 0.0
  %3726 = vmatpush1.msra.mxu0 0.0
  %3727 = vmatprep.subr.mxu0 0.0
  %3728 = vmatpush1.msra.mxu0 0.0
  %3729 = vmatprep.subr.mxu0 0.0
  %3730 = vmatpush1.msra.mxu0 0.0
  %3731 = vmatprep.subr.mxu0 0.0
  %3732 = vmatpush1.msra.mxu0 0.0
  %3733 = vmatprep.subr.mxu0 0.0
  %3734 = vmatpush1.msra.mxu0 0.0
  %3735 = vmatprep.subr.mxu0 0.0
  %3736 = vmatpush1.msra.mxu0 0.0
  %3737 = vmatprep.subr.mxu0 0.0
  %3738 = vmatpush1.msra.mxu0 0.0
  %3739 = vmatprep.subr.mxu0 0.0
  %3740 = vmatpush1.msra.mxu0 0.0
  %3741 = vmatprep.subr.mxu0 0.0
  %3742 = vmatpush1.msra.mxu0 0.0
  %3743 = vmatprep.subr.mxu0 0.0
  %3744 = vmatpush1.msra.mxu0 0.0
  %3745 = vmatprep.mubr.f32.mxu0 0.0
  %3746 = vmatmul.mubr.f32.gmra.mrb[0].mxu0 %v3679
  %v3747 = vpop.f32.mrb[0].mxu0
  %v3748 = vadd.f32 0.0, %v3747
  %v3749 = vpop.f32.mrb[0].mxu0
  %3750 = vdwg.mxu0
  %v3751 = vadd.f32 %v3348, %v3748
  %v3752 = vxor.u32 %v3751, 2147483648
  %v3753 = vmul.f32 %v3752, 1.442695
  %v3754 = vpow.pop %v3753
  %v3755 = vadd.f32 %v3754, 1.0
  %v3756 = vrcp.pop %v3755
  %v3757 = vmul.f32 1.0, %v3756
  %v3758 = vtanh.pop %v3751
  %v3759 = vmul.f32 %v3757, %v3667
  %3761 = vrot.lane.b32.xlu0 %v3758, 64
  %v3762 = vpop.permute.xlu0 %3761
  %v3764 = vmul.f32 %v3757, %v3762
  %3766 = vrot.lane.b32.xlu0 %v3764, 32
  %v3767 = vpop.permute.xlu0 %3766
  %v3769 = vadd.f32 %v3759, %v3767
  %v3770 = vtanh.pop %v3769
  %3772 = vrot.lane.b32.xlu0 %v3770, 64
  %v3773 = vpop.permute.xlu0 %3772
  %v3775 = vmul.f32 %v3757, %v3773
  %3777 = vrot.lane.b32.xlu0 %v3775, 32
  %v3778 = vpop.permute.xlu0 %3777
  %3780 = vst.msk [vmem:[#allocation2 + $0x18] sm:$0xff] %vm215, %v3778
  %v3781 = vsel %vm215, %v3778, 0
  %3783 = vmatprep.subr.mxu0 0.0
  %3784 = vmatpush1.msra.mxu0 %v3371
  %3785 = vmatprep.subr.mxu0 0.0
  %3786 = vmatpush1.msra.mxu0 %v3372
  %3787 = vmatprep.subr.mxu0 0.0
  %3788 = vmatpush1.msra.mxu0 %v3373
  %3789 = vmatprep.subr.mxu0 0.0
  %3790 = vmatpush1.msra.mxu0 %v3374
  %3791 = vmatprep.subr.mxu0 0.0
  %3792 = vmatpush1.msra.mxu0 0.0
  %3793 = vmatprep.subr.mxu0 0.0
  %3794 = vmatpush1.msra.mxu0 0.0
  %3795 = vmatprep.subr.mxu0 0.0
  %3796 = vmatpush1.msra.mxu0 0.0
  %3797 = vmatprep.subr.mxu0 0.0
  %3798 = vmatpush1.msra.mxu0 0.0
  %3799 = vmatprep.subr.mxu0 0.0
  %3800 = vmatpush1.msra.mxu0 0.0
  %3801 = vmatprep.subr.mxu0 0.0
  %3802 = vmatpush1.msra.mxu0 0.0
  %3803 = vmatprep.subr.mxu0 0.0
  %3804 = vmatpush1.msra.mxu0 0.0
  %3805 = vmatprep.subr.mxu0 0.0
  %3806 = vmatpush1.msra.mxu0 0.0
  %3807 = vmatprep.subr.mxu0 0.0
  %3808 = vmatpush1.msra.mxu0 0.0
  %3809 = vmatprep.subr.mxu0 0.0
  %3810 = vmatpush1.msra.mxu0 0.0
  %3811 = vmatprep.subr.mxu0 0.0
  %3812 = vmatpush1.msra.mxu0 0.0
  %3813 = vmatprep.subr.mxu0 0.0
  %3814 = vmatpush1.msra.mxu0 0.0
  %3815 = vmatprep.subr.mxu0 0.0
  %3816 = vmatpush1.msra.mxu0 0.0
  %3817 = vmatprep.subr.mxu0 0.0
  %3818 = vmatpush1.msra.mxu0 0.0
  %3819 = vmatprep.subr.mxu0 0.0
  %3820 = vmatpush1.msra.mxu0 0.0
  %3821 = vmatprep.subr.mxu0 0.0
  %3822 = vmatpush1.msra.mxu0 0.0
  %3823 = vmatprep.subr.mxu0 0.0
  %3824 = vmatpush1.msra.mxu0 0.0
  %3825 = vmatprep.subr.mxu0 0.0
  %3826 = vmatpush1.msra.mxu0 0.0
  %3827 = vmatprep.subr.mxu0 0.0
  %3828 = vmatpush1.msra.mxu0 0.0
  %3829 = vmatprep.subr.mxu0 0.0
  %3830 = vmatpush1.msra.mxu0 0.0
  %3831 = vmatprep.subr.mxu0 0.0
  %3832 = vmatpush1.msra.mxu0 0.0
  %3833 = vmatprep.subr.mxu0 0.0
  %3834 = vmatpush1.msra.mxu0 0.0
  %3835 = vmatprep.subr.mxu0 0.0
  %3836 = vmatpush1.msra.mxu0 0.0
  %3837 = vmatprep.subr.mxu0 0.0
  %3838 = vmatpush1.msra.mxu0 0.0
  %3839 = vmatprep.subr.mxu0 0.0
  %3840 = vmatpush1.msra.mxu0 0.0
  %3841 = vmatprep.subr.mxu0 0.0
  %3842 = vmatpush1.msra.mxu0 0.0
  %3843 = vmatprep.subr.mxu0 0.0
  %3844 = vmatpush1.msra.mxu0 0.0
  %3845 = vmatprep.subr.mxu0 0.0
  %3846 = vmatpush1.msra.mxu0 0.0
  %3847 = vmatprep.mubr.f32.mxu0 0.0
  %3848 = vmatmul.mubr.f32.gmra.mrb[0].mxu0 %v3781
  %v3849 = vpop.f32.mrb[0].mxu0
  %v3850 = vadd.f32 0.0, %v3849
  %v3851 = vpop.f32.mrb[0].mxu0
  %3852 = vdwg.mxu0
  %v3853 = vadd.f32 %v3353, %v3850
  %v3854 = vxor.u32 %v3853, 2147483648
  %v3855 = vmul.f32 %v3854, 1.442695
  %v3856 = vpow.pop %v3855
  %v3857 = vadd.f32 %v3856, 1.0
  %v3858 = vrcp.pop %v3857
  %v3859 = vmul.f32 1.0, %v3858
  %v3860 = vtanh.pop %v3853
  %v3861 = vmul.f32 %v3859, %v3769
  %3863 = vrot.lane.b32.xlu0 %v3860, 64
  %v3864 = vpop.permute.xlu0 %3863
  %v3866 = vmul.f32 %v3859, %v3864
  %3868 = vrot.lane.b32.xlu0 %v3866, 32
  %v3869 = vpop.permute.xlu0 %3868
  %v3871 = vadd.f32 %v3861, %v3869
  %v3872 = vtanh.pop %v3871
  %3874 = vrot.lane.b32.xlu0 %v3872, 64
  %v3875 = vpop.permute.xlu0 %3874
  %v3877 = vmul.f32 %v3859, %v3875
  %3879 = vrot.lane.b32.xlu0 %v3877, 32
  %v3880 = vpop.permute.xlu0 %3879
  %3882 = vst.msk [vmem:[#allocation2 + $0x20] sm:$0xff] %vm215, %v3880
  %v3883 = vsel %vm215, %v3880, 0
  %3885 = vmatprep.subr.mxu0 0.0
  %3886 = vmatpush1.msra.mxu0 %v3371
  %3887 = vmatprep.subr.mxu0 0.0
  %3888 = vmatpush1.msra.mxu0 %v3372
  %3889 = vmatprep.subr.mxu0 0.0
  %3890 = vmatpush1.msra.mxu0 %v3373
  %3891 = vmatprep.subr.mxu0 0.0
  %3892 = vmatpush1.msra.mxu0 %v3374
  %3893 = vmatprep.subr.mxu0 0.0
  %3894 = vmatpush1.msra.mxu0 0.0
  %3895 = vmatprep.subr.mxu0 0.0
  %3896 = vmatpush1.msra.mxu0 0.0
  %3897 = vmatprep.subr.mxu0 0.0
  %3898 = vmatpush1.msra.mxu0 0.0
  %3899 = vmatprep.subr.mxu0 0.0
  %3900 = vmatpush1.msra.mxu0 0.0
  %3901 = vmatprep.subr.mxu0 0.0
  %3902 = vmatpush1.msra.mxu0 0.0
  %3903 = vmatprep.subr.mxu0 0.0
  %3904 = vmatpush1.msra.mxu0 0.0
  %3905 = vmatprep.subr.mxu0 0.0
  %3906 = vmatpush1.msra.mxu0 0.0
  %3907 = vmatprep.subr.mxu0 0.0
  %3908 = vmatpush1.msra.mxu0 0.0
  %3909 = vmatprep.subr.mxu0 0.0
  %3910 = vmatpush1.msra.mxu0 0.0
  %3911 = vmatprep.subr.mxu0 0.0
  %3912 = vmatpush1.msra.mxu0 0.0
  %3913 = vmatprep.subr.mxu0 0.0
  %3914 = vmatpush1.msra.mxu0 0.0
  %3915 = vmatprep.subr.mxu0 0.0
  %3916 = vmatpush1.msra.mxu0 0.0
  %3917 = vmatprep.subr.mxu0 0.0
  %3918 = vmatpush1.msra.mxu0 0.0
  %3919 = vmatprep.subr.mxu0 0.0
  %3920 = vmatpush1.msra.mxu0 0.0
  %3921 = vmatprep.subr.mxu0 0.0
  %3922 = vmatpush1.msra.mxu0 0.0
  %3923 = vmatprep.subr.mxu0 0.0
  %3924 = vmatpush1.msra.mxu0 0.0
  %3925 = vmatprep.subr.mxu0 0.0
  %3926 = vmatpush1.msra.mxu0 0.0
  %3927 = vmatprep.subr.mxu0 0.0
  %3928 = vmatpush1.msra.mxu0 0.0
  %3929 = vmatprep.subr.mxu0 0.0
  %3930 = vmatpush1.msra.mxu0 0.0
  %3931 = vmatprep.subr.mxu0 0.0
  %3932 = vmatpush1.msra.mxu0 0.0
  %3933 = vmatprep.subr.mxu0 0.0
  %3934 = vmatpush1.msra.mxu0 0.0
  %3935 = vmatprep.subr.mxu0 0.0
  %3936 = vmatpush1.msra.mxu0 0.0
  %3937 = vmatprep.subr.mxu0 0.0
  %3938 = vmatpush1.msra.mxu0 0.0
  %3939 = vmatprep.subr.mxu0 0.0
  %3940 = vmatpush1.msra.mxu0 0.0
  %3941 = vmatprep.subr.mxu0 0.0
  %3942 = vmatpush1.msra.mxu0 0.0
  %3943 = vmatprep.subr.mxu0 0.0
  %3944 = vmatpush1.msra.mxu0 0.0
  %3945 = vmatprep.subr.mxu0 0.0
  %3946 = vmatpush1.msra.mxu0 0.0
  %3947 = vmatprep.subr.mxu0 0.0
  %3948 = vmatpush1.msra.mxu0 0.0
  %3949 = vmatprep.mubr.f32.mxu0 0.0
  %3950 = vmatmul.mubr.f32.gmra.mrb[0].mxu0 %v3883
  %v3951 = vpop.f32.mrb[0].mxu0
  %v3952 = vadd.f32 0.0, %v3951
  %v3953 = vpop.f32.mrb[0].mxu0
  %3954 = vdwg.mxu0
  %v3955 = vadd.f32 %v3358, %v3952
  %v3956 = vxor.u32 %v3955, 2147483648
  %v3957 = vmul.f32 %v3956, 1.442695
  %v3958 = vpow.pop %v3957
  %v3959 = vadd.f32 %v3958, 1.0
  %v3960 = vrcp.pop %v3959
  %v3961 = vmul.f32 1.0, %v3960
  %v3962 = vtanh.pop %v3955
  %v3963 = vmul.f32 %v3961, %v3871
  %3965 = vrot.lane.b32.xlu0 %v3962, 64
  %v3966 = vpop.permute.xlu0 %3965
  %v3968 = vmul.f32 %v3961, %v3966
  %3970 = vrot.lane.b32.xlu0 %v3968, 32
  %v3971 = vpop.permute.xlu0 %3970
  %v3973 = vadd.f32 %v3963, %v3971
  %v3974 = vtanh.pop %v3973
  %3976 = vrot.lane.b32.xlu0 %v3974, 64
  %v3977 = vpop.permute.xlu0 %3976
  %v3979 = vmul.f32 %v3961, %v3977
  %3981 = vrot.lane.b32.xlu0 %v3979, 32
  %v3982 = vpop.permute.xlu0 %3981
  %3984 = vst.msk [vmem:[#allocation2 + $0x28] sm:$0xff] %vm215, %v3982
  %v3985 = vsel %vm215, %v3982, 0
  %3987 = vmatprep.subr.mxu0 0.0
  %3988 = vmatpush1.msra.mxu0 %v3371
  %3989 = vmatprep.subr.mxu0 0.0
  %3990 = vmatpush1.msra.mxu0 %v3372
  %3991 = vmatprep.subr.mxu0 0.0
  %3992 = vmatpush1.msra.mxu0 %v3373
  %3993 = vmatprep.subr.mxu0 0.0
  %3994 = vmatpush1.msra.mxu0 %v3374
  %3995 = vmatprep.subr.mxu0 0.0
  %3996 = vmatpush1.msra.mxu0 0.0
  %3997 = vmatprep.subr.mxu0 0.0
  %3998 = vmatpush1.msra.mxu0 0.0
  %3999 = vmatprep.subr.mxu0 0.0
  %4000 = vmatpush1.msra.mxu0 0.0
  %4001 = vmatprep.subr.mxu0 0.0
  %4002 = vmatpush1.msra.mxu0 0.0
  %4003 = vmatprep.subr.mxu0 0.0
  %4004 = vmatpush1.msra.mxu0 0.0
  %4005 = vmatprep.subr.mxu0 0.0
  %4006 = vmatpush1.msra.mxu0 0.0
  %4007 = vmatprep.subr.mxu0 0.0
  %4008 = vmatpush1.msra.mxu0 0.0
  %4009 = vmatprep.subr.mxu0 0.0
  %4010 = vmatpush1.msra.mxu0 0.0
  %4011 = vmatprep.subr.mxu0 0.0
  %4012 = vmatpush1.msra.mxu0 0.0
  %4013 = vmatprep.subr.mxu0 0.0
  %4014 = vmatpush1.msra.mxu0 0.0
  %4015 = vmatprep.subr.mxu0 0.0
  %4016 = vmatpush1.msra.mxu0 0.0
  %4017 = vmatprep.subr.mxu0 0.0
  %4018 = vmatpush1.msra.mxu0 0.0
  %4019 = vmatprep.subr.mxu0 0.0
  %4020 = vmatpush1.msra.mxu0 0.0
  %4021 = vmatprep.subr.mxu0 0.0
  %4022 = vmatpush1.msra.mxu0 0.0
  %4023 = vmatprep.subr.mxu0 0.0
  %4024 = vmatpush1.msra.mxu0 0.0
  %4025 = vmatprep.subr.mxu0 0.0
  %4026 = vmatpush1.msra.mxu0 0.0
  %4027 = vmatprep.subr.mxu0 0.0
  %4028 = vmatpush1.msra.mxu0 0.0
  %4029 = vmatprep.subr.mxu0 0.0
  %4030 = vmatpush1.msra.mxu0 0.0
  %4031 = vmatprep.subr.mxu0 0.0
  %4032 = vmatpush1.msra.mxu0 0.0
  %4033 = vmatprep.subr.mxu0 0.0
  %4034 = vmatpush1.msra.mxu0 0.0
  %4035 = vmatprep.subr.mxu0 0.0
  %4036 = vmatpush1.msra.mxu0 0.0
  %4037 = vmatprep.subr.mxu0 0.0
  %4038 = vmatpush1.msra.mxu0 0.0
  %4039 = vmatprep.subr.mxu0 0.0
  %4040 = vmatpush1.msra.mxu0 0.0
  %4041 = vmatprep.subr.mxu0 0.0
  %4042 = vmatpush1.msra.mxu0 0.0
  %4043 = vmatprep.subr.mxu0 0.0
  %4044 = vmatpush1.msra.mxu0 0.0
  %4045 = vmatprep.subr.mxu0 0.0
  %4046 = vmatpush1.msra.mxu0 0.0
  %4047 = vmatprep.subr.mxu0 0.0
  %4048 = vmatpush1.msra.mxu0 0.0
  %4049 = vmatprep.subr.mxu0 0.0
  %4050 = vmatpush1.msra.mxu0 0.0
  %4051 = vmatprep.mubr.f32.mxu0 0.0
  %4052 = vmatmul.mubr.f32.gmra.mrb[0].mxu0 %v3985
  %v4053 = vpop.f32.mrb[0].mxu0
  %v4054 = vadd.f32 0.0, %v4053
  %v4055 = vpop.f32.mrb[0].mxu0
  %4056 = vdwg.mxu0
  %v4057 = vadd.f32 %v3363, %v4054
  %v4058 = vxor.u32 %v4057, 2147483648
  %v4059 = vmul.f32 %v4058, 1.442695
  %v4060 = vpow.pop %v4059
  %v4061 = vadd.f32 %v4060, 1.0
  %v4062 = vrcp.pop %v4061
  %v4063 = vmul.f32 1.0, %v4062
  %v4064 = vtanh.pop %v4057
  %v4065 = vmul.f32 %v4063, %v3973
  %4067 = vrot.lane.b32.xlu0 %v4064, 64
  %v4068 = vpop.permute.xlu0 %4067
  %v4070 = vmul.f32 %v4063, %v4068
  %4072 = vrot.lane.b32.xlu0 %v4070, 32
  %v4073 = vpop.permute.xlu0 %4072
  %v4075 = vadd.f32 %v4065, %v4073
  %v4076 = vtanh.pop %v4075
  %4078 = vrot.lane.b32.xlu0 %v4076, 64
  %v4079 = vpop.permute.xlu0 %4078
  %v4081 = vmul.f32 %v4063, %v4079
  %4083 = vrot.lane.b32.xlu0 %v4081, 32
  %v4084 = vpop.permute.xlu0 %4083
  %4086 = vst.msk [vmem:[#allocation2 + $0x30] sm:$0xff] %vm215, %v4084
  %v4087 = vsel %vm215, %v4084, 0
  %4089 = vmatprep.subr.mxu0 0.0
  %4090 = vmatpush1.msra.mxu0 %v3371
  %4091 = vmatprep.subr.mxu0 0.0
  %4092 = vmatpush1.msra.mxu0 %v3372
  %4093 = vmatprep.subr.mxu0 0.0
  %4094 = vmatpush1.msra.mxu0 %v3373
  %4095 = vmatprep.subr.mxu0 0.0
  %4096 = vmatpush1.msra.mxu0 %v3374
  %4097 = vmatprep.subr.mxu0 0.0
  %4098 = vmatpush1.msra.mxu0 0.0
  %4099 = vmatprep.subr.mxu0 0.0
  %4100 = vmatpush1.msra.mxu0 0.0
  %4101 = vmatprep.subr.mxu0 0.0
  %4102 = vmatpush1.msra.mxu0 0.0
  %4103 = vmatprep.subr.mxu0 0.0
  %4104 = vmatpush1.msra.mxu0 0.0
  %4105 = vmatprep.subr.mxu0 0.0
  %4106 = vmatpush1.msra.mxu0 0.0
  %4107 = vmatprep.subr.mxu0 0.0
  %4108 = vmatpush1.msra.mxu0 0.0
  %4109 = vmatprep.subr.mxu0 0.0
  %4110 = vmatpush1.msra.mxu0 0.0
  %4111 = vmatprep.subr.mxu0 0.0
  %4112 = vmatpush1.msra.mxu0 0.0
  %4113 = vmatprep.subr.mxu0 0.0
  %4114 = vmatpush1.msra.mxu0 0.0
  %4115 = vmatprep.subr.mxu0 0.0
  %4116 = vmatpush1.msra.mxu0 0.0
  %4117 = vmatprep.subr.mxu0 0.0
  %4118 = vmatpush1.msra.mxu0 0.0
  %4119 = vmatprep.subr.mxu0 0.0
  %4120 = vmatpush1.msra.mxu0 0.0
  %4121 = vmatprep.subr.mxu0 0.0
  %4122 = vmatpush1.msra.mxu0 0.0
  %4123 = vmatprep.subr.mxu0 0.0
  %4124 = vmatpush1.msra.mxu0 0.0
  %4125 = vmatprep.subr.mxu0 0.0
  %4126 = vmatpush1.msra.mxu0 0.0
  %4127 = vmatprep.subr.mxu0 0.0
  %4128 = vmatpush1.msra.mxu0 0.0
  %4129 = vmatprep.subr.mxu0 0.0
  %4130 = vmatpush1.msra.mxu0 0.0
  %4131 = vmatprep.subr.mxu0 0.0
  %4132 = vmatpush1.msra.mxu0 0.0
  %4133 = vmatprep.subr.mxu0 0.0
  %4134 = vmatpush1.msra.mxu0 0.0
  %4135 = vmatprep.subr.mxu0 0.0
  %4136 = vmatpush1.msra.mxu0 0.0
  %4137 = vmatprep.subr.mxu0 0.0
  %4138 = vmatpush1.msra.mxu0 0.0
  %4139 = vmatprep.subr.mxu0 0.0
  %4140 = vmatpush1.msra.mxu0 0.0
  %4141 = vmatprep.subr.mxu0 0.0
  %4142 = vmatpush1.msra.mxu0 0.0
  %4143 = vmatprep.subr.mxu0 0.0
  %4144 = vmatpush1.msra.mxu0 0.0
  %4145 = vmatprep.subr.mxu0 0.0
  %4146 = vmatpush1.msra.mxu0 0.0
  %4147 = vmatprep.subr.mxu0 0.0
  %4148 = vmatpush1.msra.mxu0 0.0
  %4149 = vmatprep.subr.mxu0 0.0
  %4150 = vmatpush1.msra.mxu0 0.0
  %4151 = vmatprep.subr.mxu0 0.0
  %4152 = vmatpush1.msra.mxu0 0.0
  %4153 = vmatprep.mubr.f32.mxu0 0.0
  %4154 = vmatmul.mubr.f32.gmra.mrb[0].mxu0 %v4087
  %v4155 = vpop.f32.mrb[0].mxu0
  %v4156 = vadd.f32 0.0, %v4155
  %v4157 = vpop.f32.mrb[0].mxu0
  %4158 = vdwg.mxu0
  %v4159 = vadd.f32 %v3368, %v4156
  %v4160 = vxor.u32 %v4159, 2147483648
  %v4161 = vmul.f32 %v4160, 1.442695
  %v4162 = vpow.pop %v4161
  %v4163 = vadd.f32 %v4162, 1.0
  %v4164 = vrcp.pop %v4163
  %v4165 = vmul.f32 1.0, %v4164
  %v4166 = vtanh.pop %v4159
  %v4167 = vmul.f32 %v4165, %v4075
  %4169 = vrot.lane.b32.xlu0 %v4166, 64
  %v4170 = vpop.permute.xlu0 %4169
  %v4172 = vmul.f32 %v4165, %v4170
  %4174 = vrot.lane.b32.xlu0 %v4172, 32
  %v4175 = vpop.permute.xlu0 %4174
  %v4177 = vadd.f32 %v4167, %v4175
  %v4178 = vtanh.pop %v4177
  %4180 = vrot.lane.b32.xlu0 %v4178, 64
  %v4181 = vpop.permute.xlu0 %4180
  %v4183 = vmul.f32 %v4165, %v4181
  %4185 = vrot.lane.b32.xlu0 %v4183, 32
  %v4186 = vpop.permute.xlu0 %4185
  %4188 = vst.msk [vmem:[#allocation2 + $0x38] sm:$0xff] %vm215, %v4186
  %v4189 = vld [vmem:[#allocation2] sm:$0xff]
  %v4190 = vld [vmem:[#allocation2 + $0x8] sm:$0xff]
  %v4191 = vld [vmem:[#allocation2 + $0x10] sm:$0xff]
  %v4192 = vld [vmem:[#allocation2 + $0x18] sm:$0xff]
  %v4193 = vld [vmem:[#allocation2 + $0x20] sm:$0xff]
  %v4194 = vld [vmem:[#allocation2 + $0x28] sm:$0xff]
  %v4195 = vld [vmem:[#allocation2 + $0x30] sm:$0xff]
  %v4196 = vld [vmem:[#allocation2 + $0x38] sm:$0xff]
  %v4197 = vld [vmem:[%s16] sm:$0xff]
  %v4198 = vld [vmem:[%s16 + $0x8] sm:$0xff]
  %v4199 = vld [vmem:[%s16 + $0x10] sm:$0xff]
  %v4200 = vld [vmem:[%s16 + $0x18] sm:$0xff]
  %v4201 = vld [vmem:[%s17] sm:$0x1]
  %v4203 = vlaneseq
  %v4204 = vshrl.u32 %v4203, 7
  %v4205 = vsub.s32 0, %v4204
  %v4206 = vrot.slane %v4201, %v4205
  %v4209 = vsel %vm215, %v4189, 0
  %v4212 = vsel %vm215, %v4190, 0
  %v4215 = vsel %vm215, %v4191, 0
  %v4218 = vsel %vm215, %v4192, 0
  %v4221 = vsel %vm215, %v4193, 0
  %v4224 = vsel %vm215, %v4194, 0
  %v4227 = vsel %vm215, %v4195, 0
  %v4230 = vsel %vm215, %v4196, 0
  %4232 = vmatprep.subr.mxu0 0.0
  %4233 = vmatpush1.msra.mxu0 %v4197
  %4234 = vmatprep.subr.mxu0 0.0
  %4235 = vmatpush1.msra.mxu0 %v4198
  %4236 = vmatprep.subr.mxu0 0.0
  %4237 = vmatpush1.msra.mxu0 %v4199
  %4238 = vmatprep.subr.mxu0 0.0
  %4239 = vmatpush1.msra.mxu0 %v4200
  %4240 = vmatprep.subr.mxu0 0.0
  %4241 = vmatpush1.msra.mxu0 0.0
  %4242 = vmatprep.subr.mxu0 0.0
  %4243 = vmatpush1.msra.mxu0 0.0
  %4244 = vmatprep.subr.mxu0 0.0
  %4245 = vmatpush1.msra.mxu0 0.0
  %4246 = vmatprep.subr.mxu0 0.0
  %4247 = vmatpush1.msra.mxu0 0.0
  %4248 = vmatprep.subr.mxu0 0.0
  %4249 = vmatpush1.msra.mxu0 0.0
  %4250 = vmatprep.subr.mxu0 0.0
  %4251 = vmatpush1.msra.mxu0 0.0
  %4252 = vmatprep.subr.mxu0 0.0
  %4253 = vmatpush1.msra.mxu0 0.0
  %4254 = vmatprep.subr.mxu0 0.0
  %4255 = vmatpush1.msra.mxu0 0.0
  %4256 = vmatprep.subr.mxu0 0.0
  %4257 = vmatpush1.msra.mxu0 0.0
  %4258 = vmatprep.subr.mxu0 0.0
  %4259 = vmatpush1.msra.mxu0 0.0
  %4260 = vmatprep.subr.mxu0 0.0
  %4261 = vmatpush1.msra.mxu0 0.0
  %4262 = vmatprep.subr.mxu0 0.0
  %4263 = vmatpush1.msra.mxu0 0.0
  %4264 = vmatprep.subr.mxu0 0.0
  %4265 = vmatpush1.msra.mxu0 0.0
  %4266 = vmatprep.subr.mxu0 0.0
  %4267 = vmatpush1.msra.mxu0 0.0
  %4268 = vmatprep.subr.mxu0 0.0
  %4269 = vmatpush1.msra.mxu0 0.0
  %4270 = vmatprep.subr.mxu0 0.0
  %4271 = vmatpush1.msra.mxu0 0.0
  %4272 = vmatprep.subr.mxu0 0.0
  %4273 = vmatpush1.msra.mxu0 0.0
  %4274 = vmatprep.subr.mxu0 0.0
  %4275 = vmatpush1.msra.mxu0 0.0
  %4276 = vmatprep.subr.mxu0 0.0
  %4277 = vmatpush1.msra.mxu0 0.0
  %4278 = vmatprep.subr.mxu0 0.0
  %4279 = vmatpush1.msra.mxu0 0.0
  %4280 = vmatprep.subr.mxu0 0.0
  %4281 = vmatpush1.msra.mxu0 0.0
  %4282 = vmatprep.subr.mxu0 0.0
  %4283 = vmatpush1.msra.mxu0 0.0
  %4284 = vmatprep.subr.mxu0 0.0
  %4285 = vmatpush1.msra.mxu0 0.0
  %4286 = vmatprep.subr.mxu0 0.0
  %4287 = vmatpush1.msra.mxu0 0.0
  %4288 = vmatprep.subr.mxu0 0.0
  %4289 = vmatpush1.msra.mxu0 0.0
  %4290 = vmatprep.subr.mxu0 0.0
  %4291 = vmatpush1.msra.mxu0 0.0
  %4292 = vmatprep.subr.mxu0 0.0
  %4293 = vmatpush1.msra.mxu0 0.0
  %4294 = vmatprep.subr.mxu0 0.0
  %4295 = vmatpush1.msra.mxu0 0.0
  %4296 = vmatprep.mubr.f32.mxu0 0.0
  %4297 = vmatmul.mubr.f32.gmra.mrb[0].mxu0 %v4209
  %v4298 = vpop.f32.mrb[0].mxu0
  %v4299 = vadd.f32 %v4206, %v4298
  %v4300 = vpop.f32.mrb[0].mxu0
  %4301 = vmatprep.mubr.f32.mxu0 0.0
  %4302 = vmatmul.mubr.f32.gmra.mrb[0].mxu0 %v4212
  %v4303 = vpop.f32.mrb[0].mxu0
  %v4304 = vadd.f32 %v4206, %v4303
  %v4305 = vpop.f32.mrb[0].mxu0
  %4306 = vmatprep.mubr.f32.mxu0 0.0
  %4307 = vmatmul.mubr.f32.gmra.mrb[0].mxu0 %v4215
  %v4308 = vpop.f32.mrb[0].mxu0
  %v4309 = vadd.f32 %v4206, %v4308
  %v4310 = vpop.f32.mrb[0].mxu0
  %4311 = vmatprep.mubr.f32.mxu0 0.0
  %4312 = vmatmul.mubr.f32.gmra.mrb[0].mxu0 %v4218
  %v4313 = vpop.f32.mrb[0].mxu0
  %v4314 = vadd.f32 %v4206, %v4313
  %v4315 = vpop.f32.mrb[0].mxu0
  %4316 = vmatprep.mubr.f32.mxu0 0.0
  %4317 = vmatmul.mubr.f32.gmra.mrb[0].mxu0 %v4221
  %v4318 = vpop.f32.mrb[0].mxu0
  %v4319 = vadd.f32 %v4206, %v4318
  %v4320 = vpop.f32.mrb[0].mxu0
  %4321 = vmatprep.mubr.f32.mxu0 0.0
  %4322 = vmatmul.mubr.f32.gmra.mrb[0].mxu0 %v4224
  %v4323 = vpop.f32.mrb[0].mxu0
  %v4324 = vadd.f32 %v4206, %v4323
  %v4325 = vpop.f32.mrb[0].mxu0
  %4326 = vmatprep.mubr.f32.mxu0 0.0
  %4327 = vmatmul.mubr.f32.gmra.mrb[0].mxu0 %v4227
  %v4328 = vpop.f32.mrb[0].mxu0
  %v4329 = vadd.f32 %v4206, %v4328
  %v4330 = vpop.f32.mrb[0].mxu0
  %4331 = vmatprep.mubr.f32.mxu0 0.0
  %4332 = vmatmul.mubr.f32.gmra.mrb[0].mxu0 %v4230
  %v4333 = vpop.f32.mrb[0].mxu0
  %v4334 = vadd.f32 %v4206, %v4333
  %v4335 = vpop.f32.mrb[0].mxu0
  %4336 = vdwg.mxu0
  %v4337 = vlaneseq
  %v4338 = vand.u32 %v4337, 127
  %vm4339 = vcmp.eq.s32.totalorder %v4338, 1
  %v4340 = vtanh.pop %v4299
  %v4341 = vtanh.pop %v4304
  %v4342 = vtanh.pop %v4309
  %v4343 = vtanh.pop %v4314
  %v4344 = vtanh.pop %v4319
  %v4345 = vtanh.pop %v4324
  %v4346 = vtanh.pop %v4329
  %v4347 = vtanh.pop %v4334
  %v4348 = vsel %vm4339, %v4340, %v4299
  %v4349 = vsel %vm4339, %v4341, %v4304
  %v4350 = vsel %vm4339, %v4342, %v4309
  %v4351 = vsel %vm4339, %v4343, %v4314
  %v4352 = vsel %vm4339, %v4344, %v4319
  %v4353 = vsel %vm4339, %v4345, %v4324
  %v4354 = vsel %vm4339, %v4346, %v4329
  %v4355 = vsel %vm4339, %v4347, %v4334
  %vm4356 = vcmask 15360
  %4357 = vst.msk [vmem:[%s19] sm:$0xff] %vm4356, %v4348
  %4358 = vst.msk [vmem:[%s19 + $0x8] sm:$0xff] %vm4356, %v4349
  %4359 = vst.msk [vmem:[%s19 + $0x10] sm:$0xff] %vm4356, %v4350
  %4360 = vst.msk [vmem:[%s19 + $0x18] sm:$0xff] %vm4356, %v4351
  %4361 = vst.msk [vmem:[%s19 + $0x20] sm:$0xff] %vm4356, %v4352
  %4362 = vst.msk [vmem:[%s19 + $0x28] sm:$0xff] %vm4356, %v4353
  %4363 = vst.msk [vmem:[%s19 + $0x30] sm:$0xff] %vm4356, %v4354
  %4364 = vst.msk [vmem:[%s19 + $0x38] sm:$0xff] %vm4356, %v4355
  // Predicated region
  $region74: #{lstm_vae_forward.1} parent=0 // pred_check
    _
  $region75: #{lstm_vae_forward.1} parent=0 // pred_check_branch
    %4366 = sbr.rel (0) target = $region77
  $region76: #{lstm_vae_forward.1} parent=0 // pred_region
    _
  $region77: #{lstm_vae_forward.1} parent=0 // pred_fallthru
    _
  // Predicated region
  $region78: #{lstm_vae_forward.1} parent=0 // pred_check
    _
  $region79: #{lstm_vae_forward.1} parent=0 // pred_check_branch
    %4368 = sbr.rel (0) target = $region81
  $region80: #{lstm_vae_forward.1} parent=0 // pred_region
    _
  $region81: #{lstm_vae_forward.1} parent=0 // pred_fallthru
    _
  // Predicated region
  $region82: #{lstm_vae_forward.1} parent=0 // pred_check
    _
  $region83: #{lstm_vae_forward.1} parent=0 // pred_check_branch
    %4370 = sbr.rel (0) target = $region85
  $region84: #{lstm_vae_forward.1} parent=0 // pred_region
    _
  $region85: #{lstm_vae_forward.1} parent=0 // pred_fallthru
    _
  // Predicated region
  $region86: #{lstm_vae_forward.1} parent=0 // pred_check
    _
  $region87: #{lstm_vae_forward.1} parent=0 // pred_check_branch
    %4372 = sbr.rel (0) target = $region89
  $region88: #{lstm_vae_forward.1} parent=0 // pred_region
    _
  $region89: #{lstm_vae_forward.1} parent=0 // pred_fallthru
    _

</llo_original>
